<compile_context>
chip_gen: v6e
topology: v6e:2x2x1
jax: 0.10.0
libtpu: 0.0.40
codegen_flags: <defaults>
</compile_context>

<pallas_src>
import functools
import math

import jax
import jax.numpy as jnp
from jax.experimental import pallas as pl
from jax.experimental.pallas import tpu as pltpu


def _round_up(x, m):
    return (x + m - 1) // m * m


def _pick_tiling(hw, target):
    """Pick lane tile (multiple of 128). Prefer an exact divisor of HW so no
    padding (and therefore no post-kernel crop copy) is needed."""
    target = max(128, _round_up(target, 128))
    if hw % 128 == 0:
        best = 128
        for t in range(256, min(target, hw) + 1, 128):
            if hw % t == 0:
                best = t
        return best, hw
    tile = min(target, _round_up(hw, 128))
    return tile, _round_up(hw, tile)


# ----------------------------------------------------------------------------
# Fused kernel: backbone -> folded autoencoder -> chunked attention ->
#               weighted pool -> classifier.
# Layout: channels on sublanes, H*W (tile) on lanes (NCHW-native, no transposes).
# ----------------------------------------------------------------------------
def _local_features_kernel(
    x_ref,                         # (Cin, T)  f32
    enc_w_ref, enc_b_ref,          # (Ce, Cin) f32, (Ce, 1) f32   synthetic backbone
    ae_w_ref, ae_b_ref,            # (Ce, Ce)  bf16, (Ce, 1) f32  folded AutoEncoder
    at1w_ref, at1b_ref,            # (F,  Ce)  bf16, (F, 1)  f32  Attention.conv1 (BN folded)
    at2w_ref, at2b_ref,            # (1,  F)   bf16, (1, 1)  f32  Attention.conv2
    clsw_ref, clsb_ref,            # (NC, Ce)  f32,  (NC, 1) f32  classifier
    emb_ref, recon_ref, prob_ref, cls_ref,   # outputs (emb/recon bf16, prob/cls f32)
    pool_acc,                      # scratch (Ce, 1) f32
    *, hw, tile, f_chunk, mask_tail):
    t = pl.program_id(1)

    @pl.when(t == 0)
    def _():
        pool_acc[...] = jnp.zeros_like(pool_acc)

    # --- backbone: 1x1 conv + ReLU (runs under no_grad in the reference) ---
    # TODO(synk): the real `encoder` is an external backbone; synthesized here as a
    # pointwise conv so its output feature map has encoder.out_channels() channels.
    x = x_ref[...]                                                     # (Cin, T) f32
    emb = jnp.dot(enc_w_ref[...], x, preferred_element_type=jnp.float32)
    emb = jnp.maximum(emb + enc_b_ref[...], 0.0)                       # (Ce, T) f32
    emb_bf = emb.astype(jnp.bfloat16)
    emb_ref[...] = emb_bf                                              # bf16 writeback

    # --- AutoEncoder: decoder(encoder(x)) has no mid nonlinearity -> single matmul ---
    recon = jnp.dot(ae_w_ref[...], emb_bf,
                    preferred_element_type=jnp.float32) + ae_b_ref[...]
    recon = jnp.maximum(recon, 0.0)                                    # (Ce, T) f32
    recon_bf = recon.astype(jnp.bfloat16)
    recon_ref[...] = recon_bf                                          # bf16 writeback

    # --- Attention: softplus(conv2(relu(BN(conv1(recon))))); BN folded into conv1.
    #     F chunked so the (F, T) hidden never materializes in full. ---
    F = at1w_ref.shape[0]
    score = jnp.zeros((1, recon.shape[1]), jnp.float32)
    for c in range(0, F, f_chunk):
        fc = min(f_chunk, F - c)
        w1 = at1w_ref[c:c + fc, :]                                     # (fc, Ce) bf16
        b1 = at1b_ref[c:c + fc, :]                                     # (fc, 1)  f32
        w2 = at2w_ref[:, c:c + fc]                                     # (1, fc)  bf16
        a = jnp.dot(w1, recon_bf, preferred_element_type=jnp.float32) + b1
        a = jnp.maximum(a, 0.0)
        score = score + jnp.dot(w2, a.astype(jnp.bfloat16),
                                preferred_element_type=jnp.float32)
    score = score + at2b_ref[...]                                      # (1, T) f32
    # numerically stable softplus: max(x,0) + log(1 + exp(-|x|))
    prob = jnp.maximum(score, 0.0) + jnp.log(1.0 + jnp.exp(-jnp.abs(score)))
    prob_ref[...] = prob

    # --- attention-weighted spatial sum (mask padded HW columns only if padded) ---
    if mask_tail:
        col = jax.lax.broadcasted_iota(jnp.int32, prob.shape, 1) + t * tile
        prob_w = jnp.where(col < hw, prob, 0.0)
    else:
        prob_w = prob
    pool_acc[...] += jnp.sum(recon * prob_w, axis=1, keepdims=True)

    # --- classifier on the last HW tile of this batch element ---
    @pl.when(t == pl.num_programs(1) - 1)
    def _():
        cls_ref[...] = (jnp.dot(clsw_ref[...], pool_acc[...],
                                preferred_element_type=jnp.float32) + clsb_ref[...])


def encoder_local_features_forward(x_nchw, p, *, hw_tile=2048, f_chunk=256):
    """x_nchw: (B, Cin, H, W) f32.  Returns (embedding, reconstruction, cls, probability).
    embedding / reconstruction are bf16 (HBM-writeback optimization); prob / cls are f32."""
    B, Cin, H, W = x_nchw.shape
    HW = H * W
    Ce = p["ae_w"].shape[0]
    NC = p["cls_w"].shape[0]
    F = p["att1_w"].shape[0]
    f_chunk = min(f_chunk, F)

    tile, hw_pad = _pick_tiling(HW, hw_tile)
    n_t = hw_pad // tile
    mask_tail = hw_pad != HW

    x = x_nchw.reshape(B, Cin, HW)
    if mask_tail:
        x = jnp.pad(x, ((0, 0), (0, 0), (0, hw_pad - HW)))

    def tile_spec(c):  # per-(batch, hw-tile) block: channels on sublanes, HW on lanes
        return pl.BlockSpec((None, c, tile), lambda b, t: (b, 0, t))

    def param_spec(arr):  # small weight / bias, fully VMEM-resident, constant over grid
        return pl.BlockSpec(arr.shape, lambda b, t: (0, 0))

    params = (p["enc_w"], p["enc_b"], p["ae_w"], p["ae_b"],
              p["att1_w"], p["att1_b"], p["att2_w"], p["att2_b"],
              p["cls_w"], p["cls_b"])

    emb, recon, prob, cls = pl.pallas_call(
        functools.partial(_local_features_kernel, hw=HW, tile=tile,
                          f_chunk=f_chunk, mask_tail=mask_tail),
        out_shape=(
            jax.ShapeDtypeStruct((B, Ce, hw_pad), jnp.bfloat16),   # embedding
            jax.ShapeDtypeStruct((B, Ce, hw_pad), jnp.bfloat16),   # reconstruction
            jax.ShapeDtypeStruct((B, 1, hw_pad), jnp.float32),     # probability
            jax.ShapeDtypeStruct((B, NC, 1), jnp.float32),         # cls logits
        ),
        grid=(B, n_t),
        in_specs=[tile_spec(Cin)] + [param_spec(a) for a in params],
        out_specs=(
            tile_spec(Ce),
            tile_spec(Ce),
            tile_spec(1),
            pl.BlockSpec((None, NC, 1), lambda b, t: (b, 0, 0)),
        ),
        scratch_shapes=[pltpu.VMEM((Ce, 1), jnp.float32)],
        compiler_params=pltpu.CompilerParams(
            dimension_semantics=("parallel", "arbitrary"),
            vmem_limit_bytes=32 * 1024 * 1024),
    )(x, *params)

    if mask_tail:
        # Fallback path only when HW is not a multiple of 128 (crop forces a copy).
        emb = emb[:, :, :HW]
        recon = recon[:, :, :HW]
        prob = prob[:, :, :HW]
    embedding = emb.reshape(B, Ce, H, W)
    reconstruction = recon.reshape(B, Ce, H, W)
    probability = prob.reshape(B, 1, H, W)
    cls = cls.reshape(B, NC)
    return embedding, reconstruction, cls, probability


# ----------------------------------------------------------------------------
# Module wrapper: parameter setup (PyTorch-style inits), BN + AutoEncoder folding,
# and a pure-JAX f32 reference for validation.
# ----------------------------------------------------------------------------
class EncoderLocalFeaturesPallas:
    def __init__(self, key, in_channels, encoder_channels=128, ae_channels=128,
                 attention_filters=512, num_classes=1, bn_eps=1e-5):
        self.bn_eps = bn_eps
        ks = jax.random.split(key, 12)

        def conv_init(k, out_c, in_c):
            lim = 1.0 / math.sqrt(in_c)
            kw, kb = jax.random.split(k)
            w = jax.random.uniform(kw, (out_c, in_c), minval=-lim, maxval=lim)
            b = jax.random.uniform(kb, (out_c, 1), minval=-lim, maxval=lim)
            return w.astype(jnp.float32), b.astype(jnp.float32)

        # synthetic backbone (encoder.out_channels() == encoder_channels)
        enc_w, enc_b = conv_init(ks[0], encoder_channels, in_channels)
        # AutoEncoder(encoder_channels, num_channels=ae_channels)
        ae_enc_w, ae_enc_b = conv_init(ks[1], ae_channels, encoder_channels)
        ae_dec_w, ae_dec_b = conv_init(ks[2], encoder_channels, ae_channels)
        # Attention(encoder_channels, hidden_filters=attention_filters)
        att1_w, att1_b = conv_init(ks[3], attention_filters, encoder_channels)
        att2_w, att2_b = conv_init(ks[4], 1, attention_filters)
        bn_gamma = jax.random.uniform(ks[5], (attention_filters,), minval=0.5, maxval=1.5)
        bn_beta = 0.1 * jax.random.normal(ks[6], (attention_filters,))
        bn_mean = 0.1 * jax.random.normal(ks[7], (attention_filters,))
        bn_var = jax.random.uniform(ks[8], (attention_filters,), minval=0.5, maxval=1.5)
        # classifier = nn.Linear(encoder_channels, num_classes)
        lim = 1.0 / math.sqrt(encoder_channels)
        cls_w = jax.random.uniform(ks[9], (num_classes, encoder_channels),
                                   minval=-lim, maxval=lim).astype(jnp.float32)
        cls_b = jax.random.uniform(ks[10], (num_classes, 1),
                                   minval=-lim, maxval=lim).astype(jnp.float32)

        # Fold the linear AutoEncoder (no nonlinearity between encoder & decoder) in f32.
        ae_w_fold = (ae_dec_w @ ae_enc_w).astype(jnp.float32)                  # (Ce, Ce)
        ae_b_fold = (ae_dec_w @ ae_enc_b + ae_dec_b).astype(jnp.float32)       # (Ce, 1)

        # Fold inference-mode BatchNorm2d into attention conv1 (y = scale*conv1(x) + shift).
        # TODO(synk): training-mode BN (batch statistics) is not implemented.
        scale = bn_gamma / jnp.sqrt(bn_var + bn_eps)
        att1_wf = (att1_w * scale[:, None]).astype(jnp.float32)
        att1_bf = (scale * (att1_b[:, 0] - bn_mean) + bn_beta)[:, None].astype(jnp.float32)

        bf16 = jnp.bfloat16
        self.params = dict(
            enc_w=enc_w, enc_b=enc_b,                         # tiny Cin: keep f32
            ae_w=ae_w_fold.astype(bf16), ae_b=ae_b_fold,
            att1_w=att1_wf.astype(bf16), att1_b=att1_bf,
            att2_w=att2_w.astype(bf16), att2_b=att2_b,
            cls_w=cls_w, cls_b=cls_b,
        )
        # full-precision unfused copies for the pure-JAX reference
        self._ref = dict(
            enc_w=enc_w, enc_b=enc_b, ae_enc_w=ae_enc_w, ae_enc_b=ae_enc_b,
            ae_dec_w=ae_dec_w, ae_dec_b=ae_dec_b,
            att1_w=att1_w, att1_b=att1_b, att2_w=att2_w, att2_b=att2_b,
            bn_gamma=bn_gamma, bn_beta=bn_beta, bn_mean=bn_mean, bn_var=bn_var,
            cls_w=cls_w, cls_b=cls_b,
        )

    def __call__(self, features, hw_tile=2048):
        return encoder_local_features_forward(features, self.params, hw_tile=hw_tile)

    def reference(self, x_nchw):
        """Pure-JAX f32 forward (no Pallas, unfused BN / AE) for numeric validation."""
        p = self._ref
        B, Cin, H, W = x_nchw.shape
        x = x_nchw.reshape(B, Cin, H * W).astype(jnp.float32)

        def conv(w, b, z):  # 1x1 conv in (B, C, HW) layout
            return jnp.einsum("oc,bcl->bol", w, z) + b[None, :, :]

        emb = jax.nn.relu(conv(p["enc_w"], p["enc_b"], x))
        h = conv(p["ae_enc_w"], p["ae_enc_b"], emb)
        recon = jax.nn.relu(conv(p["ae_dec_w"], p["ae_dec_b"], h))
        a = conv(p["att1_w"], p["att1_b"], recon)
        a = (a - p["bn_mean"][None, :, None]) / jnp.sqrt(p["bn_var"][None, :, None] + self.bn_eps)
        a = a * p["bn_gamma"][None, :, None] + p["bn_beta"][None, :, None]
        a = jax.nn.relu(a)
        score = conv(p["att2_w"], p["att2_b"], a)
        prob = jax.nn.softplus(score)
        pooled = jnp.sum(recon * prob, axis=2)                          # (B, Ce)
        cls = pooled @ p["cls_w"].T + p["cls_b"][:, 0][None, :]
        Ce = p["enc_w"].shape[0]
        return (emb.reshape(B, Ce, H, W), recon.reshape(B, Ce, H, W),
                cls, prob.reshape(B, 1, H, W))


if __name__ == "__main__":
    key = jax.random.PRNGKey(0)
    kx, kp = jax.random.split(key)

    B, Cin, H, W = 2, 4, 16, 16
    encoder_channels = 128       # encoder.out_channels() of the synthetic backbone
    num_classes = 1              # module default

    images = jax.random.normal(kx, (B, Cin, H, W), dtype=jnp.float32)
    model = EncoderLocalFeaturesPallas(kp, Cin, encoder_channels=encoder_channels,
                                       num_classes=num_classes)

    embedding, reconstruction, cls, probability = model(images)
    jax.block_until_ready((embedding, reconstruction, cls, probability))

    assert embedding.shape == (B, encoder_channels, H, W)
    assert reconstruction.shape == (B, encoder_channels, H, W)
    assert cls.shape == (B, num_classes)
    assert probability.shape == (B, 1, H, W)

    # validate bf16-matmul / bf16-output kernel against the f32 pure-JAX reference
    r_emb, r_recon, r_cls, r_prob = model.reference(images)
    for name, got, want in (("embedding", embedding, r_emb),
                            ("reconstruction", reconstruction, r_recon),
                            ("cls", cls, r_cls),
                            ("probability", probability, r_prob)):
        err = float(jnp.max(jnp.abs(got.astype(jnp.float32) - want)))
        ref = float(jnp.max(jnp.abs(want)))
        assert err <= 0.05 * ref + 0.2, f"{name}: max|err|={err}, max|ref|={ref}"

    print("KERNEL_OK")
</pallas_src>

<mosaic_0001>
module attributes {stable_mosaic.version = 11 : i64} {
  func.func @_local_features_kernel(%arg0: i32, %arg1: i32, %arg2: memref<1x4x256xf32, #tpu.memory_space<vmem>>, %arg3: memref<128x4xf32, #tpu.memory_space<vmem>>, %arg4: memref<128x1xf32, #tpu.memory_space<vmem>>, %arg5: memref<128x128xbf16, #tpu.memory_space<vmem>>, %arg6: memref<128x1xf32, #tpu.memory_space<vmem>>, %arg7: memref<512x128xbf16, #tpu.memory_space<vmem>>, %arg8: memref<512x1xf32, #tpu.memory_space<vmem>>, %arg9: memref<1x512xbf16, #tpu.memory_space<vmem>>, %arg10: memref<1x1xf32, #tpu.memory_space<vmem>>, %arg11: memref<1x128xf32, #tpu.memory_space<vmem>>, %arg12: memref<1x1xf32, #tpu.memory_space<vmem>>, %arg13: memref<1x128x256xbf16, #tpu.memory_space<vmem>>, %arg14: memref<1x128x256xbf16, #tpu.memory_space<vmem>>, %arg15: memref<1x1x256xf32, #tpu.memory_space<vmem>>, %arg16: memref<1x1x1xf32, #tpu.memory_space<vmem>>, %arg17: memref<128x1xf32, #tpu.memory_space<vmem>>) attributes {dimension_semantics = [#tpu.dimension_semantics<parallel>, #tpu.dimension_semantics<arbitrary>], iteration_bounds = array<i64: 2, 1>, scalar_prefetch = 0 : i64, scratch_operands = 1 : i64, tpu.core_type = #tpu.core_type<tc>, window_params = [{transform_indices = @transform_0, window_bounds = array<i64: 1, 4, 256>}, {pipeline_mode = #tpu.pipeline_mode<synchronous>, transform_indices = @transform_1, window_bounds = array<i64: 128, 4>}, {pipeline_mode = #tpu.pipeline_mode<synchronous>, transform_indices = @transform_2, window_bounds = array<i64: 128, 1>}, {pipeline_mode = #tpu.pipeline_mode<synchronous>, transform_indices = @transform_3, window_bounds = array<i64: 128, 128>}, {pipeline_mode = #tpu.pipeline_mode<synchronous>, transform_indices = @transform_4, window_bounds = array<i64: 128, 1>}, {pipeline_mode = #tpu.pipeline_mode<synchronous>, transform_indices = @transform_5, window_bounds = array<i64: 512, 128>}, {pipeline_mode = #tpu.pipeline_mode<synchronous>, transform_indices = @transform_6, window_bounds = array<i64: 512, 1>}, {pipeline_mode = #tpu.pipeline_mode<synchronous>, transform_indices = @transform_7, window_bounds = array<i64: 1, 512>}, {pipeline_mode = #tpu.pipeline_mode<synchronous>, transform_indices = @transform_8, window_bounds = array<i64: 1, 1>}, {pipeline_mode = #tpu.pipeline_mode<synchronous>, transform_indices = @transform_9, window_bounds = array<i64: 1, 128>}, {pipeline_mode = #tpu.pipeline_mode<synchronous>, transform_indices = @transform_10, window_bounds = array<i64: 1, 1>}, {transform_indices = @transform_11, window_bounds = array<i64: 1, 128, 256>}, {transform_indices = @transform_12, window_bounds = array<i64: 1, 128, 256>}, {transform_indices = @transform_13, window_bounds = array<i64: 1, 1, 256>}, {transform_indices = @transform_14, window_bounds = array<i64: 1, 1, 1>}]} {
    %c0_i32 = arith.constant 0 : i32
    %0 = arith.cmpi eq, %arg1, %c0_i32 : i32
    %1 = arith.extui %0 : i1 to i32
    %c0_i32_0 = arith.constant 0 : i32
    %2 = arith.cmpi ne, %1, %c0_i32_0 : i32
    scf.if %2 {
      %cst_53 = arith.constant 0.000000e+00 : f32
      %76 = vector.broadcast %cst_53 : f32 to vector<128x1xf32>
      %c0_54 = arith.constant 0 : index
      %c0_55 = arith.constant 0 : index
      %77 = vector.load %arg17[%c0_54, %c0_55] : memref<128x1xf32, #tpu.memory_space<vmem>>, vector<128x1xf32>
      tpu.vector_store %arg17[%c0_54, %c0_55], %76 {strides = array<i32>} : memref<128x1xf32, #tpu.memory_space<vmem>>, vector<128x1xf32>,
    } else {
    }
    %c0 = arith.constant 0 : index
    %c0_1 = arith.constant 0 : index
    %c0_2 = arith.constant 0 : index
    %3 = vector.load %arg2[%c0, %c0_1, %c0_2] : memref<1x4x256xf32, #tpu.memory_space<vmem>>, vector<1x4x256xf32>
    %4 = vector.shape_cast %3 : vector<1x4x256xf32> to vector<4x256xf32>
    %c0_3 = arith.constant 0 : index
    %c0_4 = arith.constant 0 : index
    %5 = vector.load %arg3[%c0_3, %c0_4] : memref<128x4xf32, #tpu.memory_space<vmem>>, vector<128x4xf32>
    %cst = arith.constant dense<0.000000e+00> : vector<128x256xf32>
    %6 = tpu.matmul %5, %4, %cst {dimension_numbers = #tpu.dot_dimension_numbers<[1], [0], [0], [1], [0, 0, 1, 1], [], []>} : vector<128x4xf32>, vector<4x256xf32>, vector<128x256xf32> -> vector<128x256xf32>
    %c0_5 = arith.constant 0 : index
    %c0_6 = arith.constant 0 : index
    %7 = vector.load %arg4[%c0_5, %c0_6] : memref<128x1xf32, #tpu.memory_space<vmem>>, vector<128x1xf32>
    %8 = vector.broadcast %7 : vector<128x1xf32> to vector<128x256xf32>
    %9 = arith.addf %6, %8 : vector<128x256xf32>
    %cst_7 = arith.constant 0.000000e+00 : f32
    %10 = vector.broadcast %cst_7 : f32 to vector<128x256xf32>
    %11 = arith.maximumf %9, %10 : vector<128x256xf32>
    %12 = arith.truncf %11 : vector<128x256xf32> to vector<128x256xbf16>
    %c0_8 = arith.constant 0 : index
    %c0_9 = arith.constant 0 : index
    %c0_10 = arith.constant 0 : index
    %13 = vector.load %arg13[%c0_8, %c0_9, %c0_10] : memref<1x128x256xbf16, #tpu.memory_space<vmem>>, vector<1x128x256xbf16>
    %14 = vector.shape_cast %13 : vector<1x128x256xbf16> to vector<128x256xbf16>
    %15 = vector.shape_cast %12 : vector<128x256xbf16> to vector<1x128x256xbf16>
    tpu.vector_store %arg13[%c0_8, %c0_9, %c0_10], %15 {strides = array<i32>} : memref<1x128x256xbf16, #tpu.memory_space<vmem>>, vector<1x128x256xbf16>,
    %c0_11 = arith.constant 0 : index
    %c0_12 = arith.constant 0 : index
    %16 = vector.load %arg5[%c0_11, %c0_12] : memref<128x128xbf16, #tpu.memory_space<vmem>>, vector<128x128xbf16>
    %cst_13 = arith.constant dense<0.000000e+00> : vector<128x256xf32>
    %17 = tpu.matmul %16, %12, %cst_13 {dimension_numbers = #tpu.dot_dimension_numbers<[1], [0], [0], [1], [0, 0, 1, 1], [], []>} : vector<128x128xbf16>, vector<128x256xbf16>, vector<128x256xf32> -> vector<128x256xf32>
    %c0_14 = arith.constant 0 : index
    %c0_15 = arith.constant 0 : index
    %18 = vector.load %arg6[%c0_14, %c0_15] : memref<128x1xf32, #tpu.memory_space<vmem>>, vector<128x1xf32>
    %19 = vector.broadcast %18 : vector<128x1xf32> to vector<128x256xf32>
    %20 = arith.addf %17, %19 : vector<128x256xf32>
    %cst_16 = arith.constant 0.000000e+00 : f32
    %21 = vector.broadcast %cst_16 : f32 to vector<128x256xf32>
    %22 = arith.maximumf %20, %21 : vector<128x256xf32>
    %23 = arith.truncf %22 : vector<128x256xf32> to vector<128x256xbf16>
    %c0_17 = arith.constant 0 : index
    %c0_18 = arith.constant 0 : index
    %c0_19 = arith.constant 0 : index
    %24 = vector.load %arg14[%c0_17, %c0_18, %c0_19] : memref<1x128x256xbf16, #tpu.memory_space<vmem>>, vector<1x128x256xbf16>
    %25 = vector.shape_cast %24 : vector<1x128x256xbf16> to vector<128x256xbf16>
    %26 = vector.shape_cast %23 : vector<128x256xbf16> to vector<1x128x256xbf16>
    tpu.vector_store %arg14[%c0_17, %c0_18, %c0_19], %26 {strides = array<i32>} : memref<1x128x256xbf16, #tpu.memory_space<vmem>>, vector<1x128x256xbf16>,
    %cst_20 = arith.constant 0.000000e+00 : f32
    %27 = vector.broadcast %cst_20 : f32 to vector<1x256xf32>
    %c0_21 = arith.constant 0 : index
    %c0_22 = arith.constant 0 : index
    %28 = vector.load %arg7[%c0_21, %c0_22] : memref<512x128xbf16, #tpu.memory_space<vmem>>, vector<256x128xbf16>
    %c0_23 = arith.constant 0 : index
    %c0_24 = arith.constant 0 : index
    %29 = vector.load %arg8[%c0_23, %c0_24] : memref<512x1xf32, #tpu.memory_space<vmem>>, vector<256x1xf32>
    %c0_25 = arith.constant 0 : index
    %c0_26 = arith.constant 0 : index
    %30 = vector.load %arg9[%c0_25, %c0_26] : memref<1x512xbf16, #tpu.memory_space<vmem>>, vector<1x256xbf16>
    %cst_27 = arith.constant dense<0.000000e+00> : vector<256x256xf32>
    %31 = tpu.matmul %28, %23, %cst_27 {dimension_numbers = #tpu.dot_dimension_numbers<[1], [0], [0], [1], [0, 0, 1, 1], [], []>} : vector<256x128xbf16>, vector<128x256xbf16>, vector<256x256xf32> -> vector<256x256xf32>
    %32 = vector.broadcast %29 : vector<256x1xf32> to vector<256x256xf32>
    %33 = arith.addf %31, %32 : vector<256x256xf32>
    %cst_28 = arith.constant 0.000000e+00 : f32
    %34 = vector.broadcast %cst_28 : f32 to vector<256x256xf32>
    %35 = arith.maximumf %33, %34 : vector<256x256xf32>
    %36 = arith.truncf %35 : vector<256x256xf32> to vector<256x256xbf16>
    %cst_29 = arith.constant dense<0.000000e+00> : vector<1x256xf32>
    %37 = tpu.matmul %30, %36, %cst_29 {dimension_numbers = #tpu.dot_dimension_numbers<[1], [0], [0], [1], [0, 0, 1, 1], [], []>} : vector<1x256xbf16>, vector<256x256xbf16>, vector<1x256xf32> -> vector<1x256xf32>
    %38 = arith.addf %27, %37 : vector<1x256xf32>
    %c256 = arith.constant 256 : index
    %c0_30 = arith.constant 0 : index
    %39 = vector.load %arg7[%c256, %c0_30] : memref<512x128xbf16, #tpu.memory_space<vmem>>, vector<256x128xbf16>
    %c256_31 = arith.constant 256 : index
    %c0_32 = arith.constant 0 : index
    %40 = vector.load %arg8[%c256_31, %c0_32] : memref<512x1xf32, #tpu.memory_space<vmem>>, vector<256x1xf32>
    %c0_33 = arith.constant 0 : index
    %c256_34 = arith.constant 256 : index
    %41 = vector.load %arg9[%c0_33, %c256_34] : memref<1x512xbf16, #tpu.memory_space<vmem>>, vector<1x256xbf16>
    %cst_35 = arith.constant dense<0.000000e+00> : vector<256x256xf32>
    %42 = tpu.matmul %39, %23, %cst_35 {dimension_numbers = #tpu.dot_dimension_numbers<[1], [0], [0], [1], [0, 0, 1, 1], [], []>} : vector<256x128xbf16>, vector<128x256xbf16>, vector<256x256xf32> -> vector<256x256xf32>
    %43 = vector.broadcast %40 : vector<256x1xf32> to vector<256x256xf32>
    %44 = arith.addf %42, %43 : vector<256x256xf32>
    %cst_36 = arith.constant 0.000000e+00 : f32
    %45 = vector.broadcast %cst_36 : f32 to vector<256x256xf32>
    %46 = arith.maximumf %44, %45 : vector<256x256xf32>
    %47 = arith.truncf %46 : vector<256x256xf32> to vector<256x256xbf16>
    %cst_37 = arith.constant dense<0.000000e+00> : vector<1x256xf32>
    %48 = tpu.matmul %41, %47, %cst_37 {dimension_numbers = #tpu.dot_dimension_numbers<[1], [0], [0], [1], [0, 0, 1, 1], [], []>} : vector<1x256xbf16>, vector<256x256xbf16>, vector<1x256xf32> -> vector<1x256xf32>
    %49 = arith.addf %38, %48 : vector<1x256xf32>
    %c0_38 = arith.constant 0 : index
    %c0_39 = arith.constant 0 : index
    %50 = vector.load %arg10[%c0_38, %c0_39] : memref<1x1xf32, #tpu.memory_space<vmem>>, vector<1x1xf32>
    %51 = vector.broadcast %50 : vector<1x1xf32> to vector<1x256xf32>
    %52 = arith.addf %49, %51 : vector<1x256xf32>
    %cst_40 = arith.constant 0.000000e+00 : f32
    %53 = vector.broadcast %cst_40 : f32 to vector<1x256xf32>
    %54 = arith.maximumf %52, %53 : vector<1x256xf32>
    %55 = math.absf %52 : vector<1x256xf32>
    %cst_41 = arith.constant 0.000000e+00 : f32
    %56 = vector.broadcast %cst_41 : f32 to vector<1x256xf32>
    %57 = arith.subf %56, %55 : vector<1x256xf32>
    %58 = math.exp %57 : vector<1x256xf32>
    %cst_42 = arith.constant 1.000000e+00 : f32
    %59 = vector.broadcast %cst_42 : f32 to vector<1x256xf32>
    %60 = arith.addf %59, %58 : vector<1x256xf32>
    %61 = math.log %60 : vector<1x256xf32>
    %62 = arith.addf %54, %61 : vector<1x256xf32>
    %c0_43 = arith.constant 0 : index
    %c0_44 = arith.constant 0 : index
    %c0_45 = arith.constant 0 : index
    %63 = vector.load %arg15[%c0_43, %c0_44, %c0_45] : memref<1x1x256xf32, #tpu.memory_space<vmem>>, vector<1x1x256xf32>
    %64 = vector.shape_cast %63 : vector<1x1x256xf32> to vector<1x256xf32>
    %65 = vector.shape_cast %62 : vector<1x256xf32> to vector<1x1x256xf32>
    tpu.vector_store %arg15[%c0_43, %c0_44, %c0_45], %65 {strides = array<i32>} : memref<1x1x256xf32, #tpu.memory_space<vmem>>, vector<1x1x256xf32>,
    %c0_46 = arith.constant 0 : index
    %c0_47 = arith.constant 0 : index
    %66 = vector.load %arg17[%c0_46, %c0_47] : memref<128x1xf32, #tpu.memory_space<vmem>>, vector<128x1xf32>
    %67 = vector.broadcast %62 : vector<1x256xf32> to vector<128x256xf32>
    %68 = arith.mulf %22, %67 : vector<128x256xf32>
    %cst_48 = arith.constant dense<0.000000e+00> : vector<128xf32>
    %69 = vector.multi_reduction <add>, %68, %cst_48 [1] : vector<128x256xf32> to vector<128xf32>
    %70 = vector.shape_cast %69 : vector<128xf32> to vector<128x1xf32>
    %71 = arith.addf %66, %70 : vector<128x1xf32>
    %c0_49 = arith.constant 0 : index
    %c0_50 = arith.constant 0 : index
    %72 = vector.load %arg17[%c0_49, %c0_50] : memref<128x1xf32, #tpu.memory_space<vmem>>, vector<128x1xf32>
    tpu.vector_store %arg17[%c0_49, %c0_50], %71 {strides = array<i32>} : memref<128x1xf32, #tpu.memory_space<vmem>>, vector<128x1xf32>,
    %c0_i32_51 = arith.constant 0 : i32
    %73 = arith.cmpi eq, %arg1, %c0_i32_51 : i32
    %74 = arith.extui %73 : i1 to i32
    %c0_i32_52 = arith.constant 0 : i32
    %75 = arith.cmpi ne, %74, %c0_i32_52 : i32
    scf.if %75 {
      %c0_53 = arith.constant 0 : index
      %c0_54 = arith.constant 0 : index
      %76 = vector.load %arg11[%c0_53, %c0_54] : memref<1x128xf32, #tpu.memory_space<vmem>>, vector<1x128xf32>
      %c0_55 = arith.constant 0 : index
      %c0_56 = arith.constant 0 : index
      %77 = vector.load %arg17[%c0_55, %c0_56] : memref<128x1xf32, #tpu.memory_space<vmem>>, vector<128x1xf32>
      %cst_57 = arith.constant dense<0.000000e+00> : vector<1x1xf32>
      %78 = tpu.matmul %76, %77, %cst_57 {dimension_numbers = #tpu.dot_dimension_numbers<[1], [0], [0], [1], [0, 0, 1, 1], [], []>} : vector<1x128xf32>, vector<128x1xf32>, vector<1x1xf32> -> vector<1x1xf32>
      %c0_58 = arith.constant 0 : index
      %c0_59 = arith.constant 0 : index
      %79 = vector.load %arg12[%c0_58, %c0_59] : memref<1x1xf32, #tpu.memory_space<vmem>>, vector<1x1xf32>
      %80 = arith.addf %78, %79 : vector<1x1xf32>
      %c0_60 = arith.constant 0 : index
      %c0_61 = arith.constant 0 : index
      %c0_62 = arith.constant 0 : index
      %81 = vector.load %arg16[%c0_60, %c0_61, %c0_62] : memref<1x1x1xf32, #tpu.memory_space<vmem>>, vector<1x1x1xf32>
      %82 = vector.shape_cast %81 : vector<1x1x1xf32> to vector<1x1xf32>
      %83 = vector.shape_cast %80 : vector<1x1xf32> to vector<1x1x1xf32>
      tpu.vector_store %arg16[%c0_60, %c0_61, %c0_62], %83 {strides = array<i32>} : memref<1x1x1xf32, #tpu.memory_space<vmem>>, vector<1x1x1xf32>,
    } else {
    }
    return
  }
  func.func @transform_0(%arg0: i32, %arg1: i32) -> (i32, i32, i32) {
    %c0_i32 = arith.constant 0 : i32
    %c0_i32_0 = arith.constant 0 : i32
    return %arg0, %c0_i32, %arg1 : i32, i32, i32
  }
  func.func @transform_1(%arg0: i32, %arg1: i32) -> (i32, i32) {
    %c0_i32 = arith.constant 0 : i32
    %c0_i32_0 = arith.constant 0 : i32
    %c0_i32_1 = arith.constant 0 : i32
    return %c0_i32, %c0_i32_0 : i32, i32
  }
  func.func @transform_2(%arg0: i32, %arg1: i32) -> (i32, i32) {
    %c0_i32 = arith.constant 0 : i32
    %c0_i32_0 = arith.constant 0 : i32
    %c0_i32_1 = arith.constant 0 : i32
    return %c0_i32, %c0_i32_0 : i32, i32
  }
  func.func @transform_3(%arg0: i32, %arg1: i32) -> (i32, i32) {
    %c0_i32 = arith.constant 0 : i32
    %c0_i32_0 = arith.constant 0 : i32
    %c0_i32_1 = arith.constant 0 : i32
    return %c0_i32, %c0_i32_0 : i32, i32
  }
  func.func @transform_4(%arg0: i32, %arg1: i32) -> (i32, i32) {
    %c0_i32 = arith.constant 0 : i32
    %c0_i32_0 = arith.constant 0 : i32
    %c0_i32_1 = arith.constant 0 : i32
    return %c0_i32, %c0_i32_0 : i32, i32
  }
  func.func @transform_5(%arg0: i32, %arg1: i32) -> (i32, i32) {
    %c0_i32 = arith.constant 0 : i32
    %c0_i32_0 = arith.constant 0 : i32
    %c0_i32_1 = arith.constant 0 : i32
    return %c0_i32, %c0_i32_0 : i32, i32
  }
  func.func @transform_6(%arg0: i32, %arg1: i32) -> (i32, i32) {
    %c0_i32 = arith.constant 0 : i32
    %c0_i32_0 = arith.constant 0 : i32
    %c0_i32_1 = arith.constant 0 : i32
    return %c0_i32, %c0_i32_0 : i32, i32
  }
  func.func @transform_7(%arg0: i32, %arg1: i32) -> (i32, i32) {
    %c0_i32 = arith.constant 0 : i32
    %c0_i32_0 = arith.constant 0 : i32
    %c0_i32_1 = arith.constant 0 : i32
    return %c0_i32, %c0_i32_0 : i32, i32
  }
  func.func @transform_8(%arg0: i32, %arg1: i32) -> (i32, i32) {
    %c0_i32 = arith.constant 0 : i32
    %c0_i32_0 = arith.constant 0 : i32
    %c0_i32_1 = arith.constant 0 : i32
    return %c0_i32, %c0_i32_0 : i32, i32
  }
  func.func @transform_9(%arg0: i32, %arg1: i32) -> (i32, i32) {
    %c0_i32 = arith.constant 0 : i32
    %c0_i32_0 = arith.constant 0 : i32
    %c0_i32_1 = arith.constant 0 : i32
    return %c0_i32, %c0_i32_0 : i32, i32
  }
  func.func @transform_10(%arg0: i32, %arg1: i32) -> (i32, i32) {
    %c0_i32 = arith.constant 0 : i32
    %c0_i32_0 = arith.constant 0 : i32
    %c0_i32_1 = arith.constant 0 : i32
    return %c0_i32, %c0_i32_0 : i32, i32
  }
  func.func @transform_11(%arg0: i32, %arg1: i32) -> (i32, i32, i32) {
    %c0_i32 = arith.constant 0 : i32
    %c0_i32_0 = arith.constant 0 : i32
    return %arg0, %c0_i32, %arg1 : i32, i32, i32
  }
  func.func @transform_12(%arg0: i32, %arg1: i32) -> (i32, i32, i32) {
    %c0_i32 = arith.constant 0 : i32
    %c0_i32_0 = arith.constant 0 : i32
    return %arg0, %c0_i32, %arg1 : i32, i32, i32
  }
  func.func @transform_13(%arg0: i32, %arg1: i32) -> (i32, i32, i32) {
    %c0_i32 = arith.constant 0 : i32
    %c0_i32_0 = arith.constant 0 : i32
    return %arg0, %c0_i32, %arg1 : i32, i32, i32
  }
  func.func @transform_14(%arg0: i32, %arg1: i32) -> (i32, i32, i32) {
    %c0_i32 = arith.constant 0 : i32
    %c0_i32_0 = arith.constant 0 : i32
    %c0_i32_1 = arith.constant 0 : i32
    return %arg0, %c0_i32, %c0_i32_0 : i32, i32, i32
  }
}

</mosaic_0001>

<llo_original>
// kernel: tpu_custom_call.1
$region0: #{tpu_custom_call.1}
  #allocation0 [shape = 'u32[]', space=smem, size = 0x4, offset = 0x4, fixed_abs, tag = 'smem constant byte address 0x4 - core index']
  #allocation1 [shape = 'u32[144,128]{1,0:T(1,128)}', space=vmem, size = 0x12000, scoped, tag = 'internal scratch']
  #allocation2 [shape = 'f32[128,1]{1,0:T(8,128)}', space=vmem, size = 0x10000, scoped, tag = 'scratch operand']
  #allocation3 [shape = 'f32[1,1]{1,0:T(1,128)S(1)}', space=vmem, size = 0x200, scoped, tag = 'scoped memory for tpu_custom_call.1']
  #allocation4 [shape = 'f32[1,1]{1,0:T(1,128)S(1)}', space=vmem, size = 0x200, scoped, tag = 'scoped memory for tpu_custom_call.1']
  %s0 = inlined_call_operand.vmem [shape: f32[2,4,256], index: 0, kind: input, shape index: {}]
  %s1 = inlined_call_operand.vmem [shape: f32[128,4], index: 1, kind: input, shape index: {}]
  %s2 = inlined_call_operand.vmem [shape: f32[128,1], index: 2, kind: input, shape index: {}]
  %s3 = inlined_call_operand.vmem [shape: bf16[128,128], index: 3, kind: input, shape index: {}]
  %s4 = inlined_call_operand.vmem [shape: f32[128,1], index: 4, kind: input, shape index: {}]
  %s5 = inlined_call_operand.vmem [shape: bf16[512,128], index: 5, kind: input, shape index: {}]
  %s6 = inlined_call_operand.vmem [shape: f32[512,1], index: 6, kind: input, shape index: {}]
  %s7 = inlined_call_operand.vmem [shape: bf16[1,512], index: 7, kind: input, shape index: {}]
  %s8 = inlined_call_operand.<no memory space> [shape: f32[1,1], index: 8, kind: input, shape index: {}]
  %s9 = inlined_call_operand.vmem [shape: f32[1,128], index: 9, kind: input, shape index: {}]
  %s10 = inlined_call_operand.<no memory space> [shape: f32[1,1], index: 10, kind: input, shape index: {}]
  %s11 = inlined_call_operand.hbm [shape: bf16[2,128,256], index: 11, kind: output, shape index: {0}]
  %s12 = inlined_call_operand.hbm [shape: bf16[2,128,256], index: 12, kind: output, shape index: {1}]
  %s13 = inlined_call_operand.hbm [shape: f32[2,1,256], index: 13, kind: output, shape index: {2}]
  %s14 = inlined_call_operand.vmem [shape: f32[2,1,1], index: 14, kind: output, shape index: {3}]
  %15 = xla_tuple %s11, %s12, %s13, %s14
  %s16 = sld [smem:[#allocation0]]
  $region109: #{tpu_custom_call.1} parent=0
    _
  %s18 = ssub.s32 1, %s16
  %s19 = scalar_select 0, %s18, %s16
  %v20 = vstv %s8
  %21 = vst [vmem:[#allocation3] sm:$0x1] %v20
  %v22 = vstv %s10
  %23 = vst [vmem:[#allocation4] sm:$0x1] %v22
  $region1: #{tpu_custom_call.1} parent=0
    #allocation5 [shape = 'u8[131072]{0}', space=vmem, size = 0x20000, scoped, tag = 'output window, operand 0']
    #allocation6 [shape = 's32[2]{0}', space=sflag, size = 0x8, scoped, tag = 'scoped memory for tpu_custom_call.1']
    #allocation7 [shape = 'u8[131072]{0}', space=vmem, size = 0x20000, scoped, tag = 'output window, operand 1']
    #allocation8 [shape = 's32[2]{0}', space=sflag, size = 0x8, scoped, tag = 'scoped memory for tpu_custom_call.1']
    #allocation9 [shape = 'u8[2048]{0}', space=vmem, size = 0x800, scoped, tag = 'output window, operand 2']
    %24 = vsyncpa [#allocation6], 0
    %s25 = scalar_lea.sflag [#allocation6], 1
    %26 = vsyncpa %s25, 0
    %27 = vsyncpa [#allocation8], 0
    %s28 = scalar_lea.sflag [#allocation8], 1
    %29 = vsyncpa %s28, 0
    loop: start=0, step=1, limit=4
    $region2: #{tpu_custom_call.1} parent=1 // loop_pre_header
      _
    $region3: #{tpu_custom_call.1} parent=1 // loop_header
      %s31 = sphi 0, %s35
      %p32 = scmp.ge.s32.totalorder %s31, 4
      %s38 = sphi 0, %s50
      %s39 = sphi 0, %s46
      %s40 = sphi 0, %s38
      %s41 = sphi 0, %s39
      %s42 = sphi 0, %s40
      %s43 = sphi 0, %s41
      %s55 = sphi 0, %s57
      %s58 = sphi 0, %s55
      %s59 = sphi 0, %s58
      %s75 = sphi 0, %s59
      %s79 = sphi 0, %s79
      %s81 = sphi 0, %s79
      %s82 = sphi 0, %s81
      %s96 = sphi 0, %s82
      %s100 = sphi 0, %s100
      %s102 = sphi 0, %s100
      %s103 = sphi 0, %s102
      %s117 = sphi 0, %s103
      %s121 = sphi 0, %s121
      %s123 = sphi 0, %s121
      %s124 = sphi 0, %s123
      %s138 = sphi 0, %s124
      %s142 = sphi 0, %s142
      %s144 = sphi 0, %s142
      %s145 = sphi 0, %s144
      %s159 = sphi 0, %s145
      %s163 = sphi 0, %s163
      %s165 = sphi 0, %s163
      %s166 = sphi 0, %s165
      %s180 = sphi 0, %s166
      %s184 = sphi 0, %s184
      %s186 = sphi 0, %s184
      %s187 = sphi 0, %s186
      %s201 = sphi 0, %s187
      %s205 = sphi 0, %s205
      %s207 = sphi 0, %s205
      %s208 = sphi 0, %s207
      %s222 = sphi 0, %s208
      %s226 = sphi 0, %s226
      %s228 = sphi 0, %s226
      %s229 = sphi 0, %s228
      %s243 = sphi 0, %s229
      %s247 = sphi 0, %s247
      %s249 = sphi 0, %s247
      %s250 = sphi 0, %s249
      %s264 = sphi 0, %s250
      %s268 = sphi 0, %s268
      %s270 = sphi 0, %s268
      %s271 = sphi 0, %s270
      %s285 = sphi 0, %s271
      %s293 = sphi 0, %s295
      %s296 = sphi 0, %s293
      %s297 = sphi 0, %s296
      %s313 = sphi 0, %s297
      %s321 = sphi 0, %s323
      %s324 = sphi 0, %s321
      %s325 = sphi 0, %s324
      %s341 = sphi 0, %s325
      %s349 = sphi 0, %s351
      %s352 = sphi 0, %s349
      %s353 = sphi 0, %s352
      %s369 = sphi 0, %s353
      %s375 = sphi 0, %s377
      %s378 = sphi 0, %s375
      %s379 = sphi 0, %s378
      %s395 = sphi 0, %s379
    $region4: #{tpu_custom_call.1} parent=1 // loop_header_branch
      %34 = sbr.rel (%p32) target = $region8
    $region5: #{tpu_custom_call.1} parent=1 // loop_body
      %s36 = ssub.s32 %s31, 1
      %s37 = ssub.s32 %s31, 2
      %s44 = sadd.s32 1, %s39
      %p45 = scmp.ge.s32.totalorder %s44, 1
      %s46 = scalar_select %p45, 0, %s44
      %s47 = sadd.s32 1, %s38
      %s48 = scalar_select %p45, %s47, %s38
      %p49 = scmp.ge.s32.totalorder %s48, 2
      %s50 = scalar_select %p49, 0, %s48
      %s51 = ssub.s32 %s38, %s50
      %s52 = ssub.s32 %s39, %s46
      %s53 = sor.u32 %s51, %s52
      %p54 = scmp.eq.s32.totalorder %s53, 0
      %s56 = sadd.s32 %s55, 1
      %s57 = scalar_select %p54, %s55, %s56
      %p60 = pneg %p54
      %p61 = scmp.eq.s32.totalorder %s31, 1
      %p62 = por %p60, %p61
      %p63 = scmp.ne.s32.totalorder %s55, %s58
      %p64 = scmp.eq.s32.totalorder %s31, 0
      %p65 = por %p63, %p64
      %p66 = scmp.ne.s32.totalorder %s55, %s58
      %p67 = scmp.eq.s32.totalorder %s36, 1
      %p68 = por %p66, %p67
      %p69 = scmp.ne.s32.totalorder %s58, %s59
      %p70 = scmp.eq.s32.totalorder %s36, 0
      %p71 = por %p69, %p70
      %p72 = scmp.ne.s32.totalorder %s58, %s59
      %p73 = scmp.eq.s32.totalorder %s37, 1
      %p74 = por %p72, %p73
      %p76 = scmp.ne.s32.totalorder %s59, %s75
      %p77 = scmp.eq.s32.totalorder %s37, 0
      %p78 = por %p76, %p77
      %s80 = sadd.s32 %s79, 1
      %p83 = scmp.eq.s32.totalorder %s31, 1
      %p84 = scmp.ne.s32.totalorder %s79, %s81
      %p85 = scmp.eq.s32.totalorder %s31, 0
      %p86 = por %p84, %p85
      %p87 = scmp.ne.s32.totalorder %s79, %s81
      %p88 = scmp.eq.s32.totalorder %s36, 1
      %p89 = por %p87, %p88
      %p90 = scmp.ne.s32.totalorder %s81, %s82
      %p91 = scmp.eq.s32.totalorder %s36, 0
      %p92 = por %p90, %p91
      %p93 = scmp.ne.s32.totalorder %s81, %s82
      %p94 = scmp.eq.s32.totalorder %s37, 1
      %p95 = por %p93, %p94
      %p97 = scmp.ne.s32.totalorder %s82, %s96
      %p98 = scmp.eq.s32.totalorder %s37, 0
      %p99 = por %p97, %p98
      %s101 = sadd.s32 %s100, 1
      %p104 = scmp.eq.s32.totalorder %s31, 1
      %p105 = scmp.ne.s32.totalorder %s100, %s102
      %p106 = scmp.eq.s32.totalorder %s31, 0
      %p107 = por %p105, %p106
      %p108 = scmp.ne.s32.totalorder %s100, %s102
      %p109 = scmp.eq.s32.totalorder %s36, 1
      %p110 = por %p108, %p109
      %p111 = scmp.ne.s32.totalorder %s102, %s103
      %p112 = scmp.eq.s32.totalorder %s36, 0
      %p113 = por %p111, %p112
      %p114 = scmp.ne.s32.totalorder %s102, %s103
      %p115 = scmp.eq.s32.totalorder %s37, 1
      %p116 = por %p114, %p115
      %p118 = scmp.ne.s32.totalorder %s103, %s117
      %p119 = scmp.eq.s32.totalorder %s37, 0
      %p120 = por %p118, %p119
      %s122 = sadd.s32 %s121, 1
      %p125 = scmp.eq.s32.totalorder %s31, 1
      %p126 = scmp.ne.s32.totalorder %s121, %s123
      %p127 = scmp.eq.s32.totalorder %s31, 0
      %p128 = por %p126, %p127
      %p129 = scmp.ne.s32.totalorder %s121, %s123
      %p130 = scmp.eq.s32.totalorder %s36, 1
      %p131 = por %p129, %p130
      %p132 = scmp.ne.s32.totalorder %s123, %s124
      %p133 = scmp.eq.s32.totalorder %s36, 0
      %p134 = por %p132, %p133
      %p135 = scmp.ne.s32.totalorder %s123, %s124
      %p136 = scmp.eq.s32.totalorder %s37, 1
      %p137 = por %p135, %p136
      %p139 = scmp.ne.s32.totalorder %s124, %s138
      %p140 = scmp.eq.s32.totalorder %s37, 0
      %p141 = por %p139, %p140
      %s143 = sadd.s32 %s142, 1
      %p146 = scmp.eq.s32.totalorder %s31, 1
      %p147 = scmp.ne.s32.totalorder %s142, %s144
      %p148 = scmp.eq.s32.totalorder %s31, 0
      %p149 = por %p147, %p148
      %p150 = scmp.ne.s32.totalorder %s142, %s144
      %p151 = scmp.eq.s32.totalorder %s36, 1
      %p152 = por %p150, %p151
      %p153 = scmp.ne.s32.totalorder %s144, %s145
      %p154 = scmp.eq.s32.totalorder %s36, 0
      %p155 = por %p153, %p154
      %p156 = scmp.ne.s32.totalorder %s144, %s145
      %p157 = scmp.eq.s32.totalorder %s37, 1
      %p158 = por %p156, %p157
      %p160 = scmp.ne.s32.totalorder %s145, %s159
      %p161 = scmp.eq.s32.totalorder %s37, 0
      %p162 = por %p160, %p161
      %s164 = sadd.s32 %s163, 1
      %p167 = scmp.eq.s32.totalorder %s31, 1
      %p168 = scmp.ne.s32.totalorder %s163, %s165
      %p169 = scmp.eq.s32.totalorder %s31, 0
      %p170 = por %p168, %p169
      %p171 = scmp.ne.s32.totalorder %s163, %s165
      %p172 = scmp.eq.s32.totalorder %s36, 1
      %p173 = por %p171, %p172
      %p174 = scmp.ne.s32.totalorder %s165, %s166
      %p175 = scmp.eq.s32.totalorder %s36, 0
      %p176 = por %p174, %p175
      %p177 = scmp.ne.s32.totalorder %s165, %s166
      %p178 = scmp.eq.s32.totalorder %s37, 1
      %p179 = por %p177, %p178
      %p181 = scmp.ne.s32.totalorder %s166, %s180
      %p182 = scmp.eq.s32.totalorder %s37, 0
      %p183 = por %p181, %p182
      %s185 = sadd.s32 %s184, 1
      %p188 = scmp.eq.s32.totalorder %s31, 1
      %p189 = scmp.ne.s32.totalorder %s184, %s186
      %p190 = scmp.eq.s32.totalorder %s31, 0
      %p191 = por %p189, %p190
      %p192 = scmp.ne.s32.totalorder %s184, %s186
      %p193 = scmp.eq.s32.totalorder %s36, 1
      %p194 = por %p192, %p193
      %p195 = scmp.ne.s32.totalorder %s186, %s187
      %p196 = scmp.eq.s32.totalorder %s36, 0
      %p197 = por %p195, %p196
      %p198 = scmp.ne.s32.totalorder %s186, %s187
      %p199 = scmp.eq.s32.totalorder %s37, 1
      %p200 = por %p198, %p199
      %p202 = scmp.ne.s32.totalorder %s187, %s201
      %p203 = scmp.eq.s32.totalorder %s37, 0
      %p204 = por %p202, %p203
      %s206 = sadd.s32 %s205, 1
      %p209 = scmp.eq.s32.totalorder %s31, 1
      %p210 = scmp.ne.s32.totalorder %s205, %s207
      %p211 = scmp.eq.s32.totalorder %s31, 0
      %p212 = por %p210, %p211
      %p213 = scmp.ne.s32.totalorder %s205, %s207
      %p214 = scmp.eq.s32.totalorder %s36, 1
      %p215 = por %p213, %p214
      %p216 = scmp.ne.s32.totalorder %s207, %s208
      %p217 = scmp.eq.s32.totalorder %s36, 0
      %p218 = por %p216, %p217
      %p219 = scmp.ne.s32.totalorder %s207, %s208
      %p220 = scmp.eq.s32.totalorder %s37, 1
      %p221 = por %p219, %p220
      %p223 = scmp.ne.s32.totalorder %s208, %s222
      %p224 = scmp.eq.s32.totalorder %s37, 0
      %p225 = por %p223, %p224
      %s227 = sadd.s32 %s226, 1
      %p230 = scmp.eq.s32.totalorder %s31, 1
      %p231 = scmp.ne.s32.totalorder %s226, %s228
      %p232 = scmp.eq.s32.totalorder %s31, 0
      %p233 = por %p231, %p232
      %p234 = scmp.ne.s32.totalorder %s226, %s228
      %p235 = scmp.eq.s32.totalorder %s36, 1
      %p236 = por %p234, %p235
      %p237 = scmp.ne.s32.totalorder %s228, %s229
      %p238 = scmp.eq.s32.totalorder %s36, 0
      %p239 = por %p237, %p238
      %p240 = scmp.ne.s32.totalorder %s228, %s229
      %p241 = scmp.eq.s32.totalorder %s37, 1
      %p242 = por %p240, %p241
      %p244 = scmp.ne.s32.totalorder %s229, %s243
      %p245 = scmp.eq.s32.totalorder %s37, 0
      %p246 = por %p244, %p245
      %s248 = sadd.s32 %s247, 1
      %p251 = scmp.eq.s32.totalorder %s31, 1
      %p252 = scmp.ne.s32.totalorder %s247, %s249
      %p253 = scmp.eq.s32.totalorder %s31, 0
      %p254 = por %p252, %p253
      %p255 = scmp.ne.s32.totalorder %s247, %s249
      %p256 = scmp.eq.s32.totalorder %s36, 1
      %p257 = por %p255, %p256
      %p258 = scmp.ne.s32.totalorder %s249, %s250
      %p259 = scmp.eq.s32.totalorder %s36, 0
      %p260 = por %p258, %p259
      %p261 = scmp.ne.s32.totalorder %s249, %s250
      %p262 = scmp.eq.s32.totalorder %s37, 1
      %p263 = por %p261, %p262
      %p265 = scmp.ne.s32.totalorder %s250, %s264
      %p266 = scmp.eq.s32.totalorder %s37, 0
      %p267 = por %p265, %p266
      %s269 = sadd.s32 %s268, 1
      %p272 = scmp.eq.s32.totalorder %s31, 1
      %p273 = scmp.ne.s32.totalorder %s268, %s270
      %p274 = scmp.eq.s32.totalorder %s31, 0
      %p275 = por %p273, %p274
      %p276 = scmp.ne.s32.totalorder %s268, %s270
      %p277 = scmp.eq.s32.totalorder %s36, 1
      %p278 = por %p276, %p277
      %p279 = scmp.ne.s32.totalorder %s270, %s271
      %p280 = scmp.eq.s32.totalorder %s36, 0
      %p281 = por %p279, %p280
      %p282 = scmp.ne.s32.totalorder %s270, %s271
      %p283 = scmp.eq.s32.totalorder %s37, 1
      %p284 = por %p282, %p283
      %p286 = scmp.ne.s32.totalorder %s271, %s285
      %p287 = scmp.eq.s32.totalorder %s37, 0
      %p288 = por %p286, %p287
      %s289 = ssub.s32 %s38, %s50
      %s290 = ssub.s32 %s39, %s46
      %s291 = sor.u32 %s289, %s290
      %p292 = scmp.eq.s32.totalorder %s291, 0
      %s294 = sadd.s32 %s293, 1
      %s295 = scalar_select %p292, %s293, %s294
      %p298 = pneg %p292
      %p299 = scmp.eq.s32.totalorder %s31, 1
      %p300 = por %p298, %p299
      %p301 = scmp.ne.s32.totalorder %s293, %s296
      %p302 = scmp.eq.s32.totalorder %s31, 0
      %p303 = por %p301, %p302
      %p304 = scmp.ne.s32.totalorder %s293, %s296
      %p305 = scmp.eq.s32.totalorder %s36, 1
      %p306 = por %p304, %p305
      %p307 = scmp.ne.s32.totalorder %s296, %s297
      %p308 = scmp.eq.s32.totalorder %s36, 0
      %p309 = por %p307, %p308
      %p310 = scmp.ne.s32.totalorder %s296, %s297
      %p311 = scmp.eq.s32.totalorder %s37, 1
      %p312 = por %p310, %p311
      %p314 = scmp.ne.s32.totalorder %s297, %s313
      %p315 = scmp.eq.s32.totalorder %s37, 0
      %p316 = por %p314, %p315
      %s317 = ssub.s32 %s38, %s50
      %s318 = ssub.s32 %s39, %s46
      %s319 = sor.u32 %s317, %s318
      %p320 = scmp.eq.s32.totalorder %s319, 0
      %s322 = sadd.s32 %s321, 1
      %s323 = scalar_select %p320, %s321, %s322
      %p326 = pneg %p320
      %p327 = scmp.eq.s32.totalorder %s31, 1
      %p328 = por %p326, %p327
      %p329 = scmp.ne.s32.totalorder %s321, %s324
      %p330 = scmp.eq.s32.totalorder %s31, 0
      %p331 = por %p329, %p330
      %p332 = scmp.ne.s32.totalorder %s321, %s324
      %p333 = scmp.eq.s32.totalorder %s36, 1
      %p334 = por %p332, %p333
      %p335 = scmp.ne.s32.totalorder %s324, %s325
      %p336 = scmp.eq.s32.totalorder %s36, 0
      %p337 = por %p335, %p336
      %p338 = scmp.ne.s32.totalorder %s324, %s325
      %p339 = scmp.eq.s32.totalorder %s37, 1
      %p340 = por %p338, %p339
      %p342 = scmp.ne.s32.totalorder %s325, %s341
      %p343 = scmp.eq.s32.totalorder %s37, 0
      %p344 = por %p342, %p343
      %s345 = ssub.s32 %s38, %s50
      %s346 = ssub.s32 %s39, %s46
      %s347 = sor.u32 %s345, %s346
      %p348 = scmp.eq.s32.totalorder %s347, 0
      %s350 = sadd.s32 %s349, 1
      %s351 = scalar_select %p348, %s349, %s350
      %p354 = pneg %p348
      %p355 = scmp.eq.s32.totalorder %s31, 1
      %p356 = por %p354, %p355
      %p357 = scmp.ne.s32.totalorder %s349, %s352
      %p358 = scmp.eq.s32.totalorder %s31, 0
      %p359 = por %p357, %p358
      %p360 = scmp.ne.s32.totalorder %s349, %s352
      %p361 = scmp.eq.s32.totalorder %s36, 1
      %p362 = por %p360, %p361
      %p363 = scmp.ne.s32.totalorder %s352, %s353
      %p364 = scmp.eq.s32.totalorder %s36, 0
      %p365 = por %p363, %p364
      %p366 = scmp.ne.s32.totalorder %s352, %s353
      %p367 = scmp.eq.s32.totalorder %s37, 1
      %p368 = por %p366, %p367
      %p370 = scmp.ne.s32.totalorder %s353, %s369
      %p371 = scmp.eq.s32.totalorder %s37, 0
      %p372 = por %p370, %p371
      %s373 = ssub.s32 %s38, %s50
      %p374 = scmp.eq.s32.totalorder %s373, 0
      %s376 = sadd.s32 %s375, 1
      %s377 = scalar_select %p374, %s375, %s376
      %p380 = pneg %p374
      %p381 = scmp.eq.s32.totalorder %s31, 1
      %p382 = por %p380, %p381
      %p383 = scmp.ne.s32.totalorder %s375, %s378
      %p384 = scmp.eq.s32.totalorder %s31, 0
      %p385 = por %p383, %p384
      %p386 = scmp.ne.s32.totalorder %s375, %s378
      %p387 = scmp.eq.s32.totalorder %s36, 1
      %p388 = por %p386, %p387
      %p389 = scmp.ne.s32.totalorder %s378, %s379
      %p390 = scmp.eq.s32.totalorder %s36, 0
      %p391 = por %p389, %p390
      %p392 = scmp.ne.s32.totalorder %s378, %s379
      %p393 = scmp.eq.s32.totalorder %s37, 1
      %p394 = por %p392, %p393
      %p396 = scmp.ne.s32.totalorder %s379, %s395
      %p397 = scmp.eq.s32.totalorder %s37, 0
      %p398 = por %p396, %p397
      %p399 = scmp.le.s32.totalorder 1, %s31
      %p400 = scmp.lt.s32.totalorder %s31, 3
      %p401 = pnand %p399, %p400
      %p402 = pneg %p401
      // Predicated region
      $region9: #{tpu_custom_call.1} parent=5 // pred_check
        _
      $region10: #{tpu_custom_call.1} parent=5 // pred_check_branch
        %404 = sbr.rel (%p401) target = $region12
      $region11: #{tpu_custom_call.1} parent=5 // pred_region
        %s405 = ssub.s32 %s31, 1
        // Predicated region
        $region13: #{tpu_custom_call.1} parent=11 // pred_check
          %p406 = pneg %p92
        $region14: #{tpu_custom_call.1} parent=11 // pred_check_branch
          %408 = sbr.rel (%p406) target = $region16
        $region15: #{tpu_custom_call.1} parent=11 // pred_region
          _
        $region16: #{tpu_custom_call.1} parent=11 // pred_fallthru
          _
        // Predicated region
        $region17: #{tpu_custom_call.1} parent=11 // pred_check
          %p409 = pneg %p113
        $region18: #{tpu_custom_call.1} parent=11 // pred_check_branch
          %411 = sbr.rel (%p409) target = $region20
        $region19: #{tpu_custom_call.1} parent=11 // pred_region
          _
        $region20: #{tpu_custom_call.1} parent=11 // pred_fallthru
          _
        // Predicated region
        $region21: #{tpu_custom_call.1} parent=11 // pred_check
          %p412 = pneg %p134
        $region22: #{tpu_custom_call.1} parent=11 // pred_check_branch
          %414 = sbr.rel (%p412) target = $region24
        $region23: #{tpu_custom_call.1} parent=11 // pred_region
          _
        $region24: #{tpu_custom_call.1} parent=11 // pred_fallthru
          _
        // Predicated region
        $region25: #{tpu_custom_call.1} parent=11 // pred_check
          %p415 = pneg %p155
        $region26: #{tpu_custom_call.1} parent=11 // pred_check_branch
          %417 = sbr.rel (%p415) target = $region28
        $region27: #{tpu_custom_call.1} parent=11 // pred_region
          _
        $region28: #{tpu_custom_call.1} parent=11 // pred_fallthru
          _
        // Predicated region
        $region29: #{tpu_custom_call.1} parent=11 // pred_check
          %p418 = pneg %p176
        $region30: #{tpu_custom_call.1} parent=11 // pred_check_branch
          %420 = sbr.rel (%p418) target = $region32
        $region31: #{tpu_custom_call.1} parent=11 // pred_region
          _
        $region32: #{tpu_custom_call.1} parent=11 // pred_fallthru
          _
        // Predicated region
        $region33: #{tpu_custom_call.1} parent=11 // pred_check
          %p421 = pneg %p197
        $region34: #{tpu_custom_call.1} parent=11 // pred_check_branch
          %423 = sbr.rel (%p421) target = $region36
        $region35: #{tpu_custom_call.1} parent=11 // pred_region
          _
        $region36: #{tpu_custom_call.1} parent=11 // pred_fallthru
          _
        // Predicated region
        $region37: #{tpu_custom_call.1} parent=11 // pred_check
          %p424 = pneg %p218
        $region38: #{tpu_custom_call.1} parent=11 // pred_check_branch
          %426 = sbr.rel (%p424) target = $region40
        $region39: #{tpu_custom_call.1} parent=11 // pred_region
          _
        $region40: #{tpu_custom_call.1} parent=11 // pred_fallthru
          _
        // Predicated region
        $region41: #{tpu_custom_call.1} parent=11 // pred_check
          %p427 = pneg %p239
        $region42: #{tpu_custom_call.1} parent=11 // pred_check_branch
          %429 = sbr.rel (%p427) target = $region44
        $region43: #{tpu_custom_call.1} parent=11 // pred_region
          _
        $region44: #{tpu_custom_call.1} parent=11 // pred_fallthru
          _
        // Predicated region
        $region45: #{tpu_custom_call.1} parent=11 // pred_check
          %p430 = pneg %p260
        $region46: #{tpu_custom_call.1} parent=11 // pred_check_branch
          %432 = sbr.rel (%p430) target = $region48
        $region47: #{tpu_custom_call.1} parent=11 // pred_region
          _
        $region48: #{tpu_custom_call.1} parent=11 // pred_fallthru
          _
        // Predicated region
        $region49: #{tpu_custom_call.1} parent=11 // pred_check
          %p433 = pneg %p281
        $region50: #{tpu_custom_call.1} parent=11 // pred_check_branch
          %435 = sbr.rel (%p433) target = $region52
        $region51: #{tpu_custom_call.1} parent=11 // pred_region
          _
        $region52: #{tpu_custom_call.1} parent=11 // pred_fallthru
          _
      $region12: #{tpu_custom_call.1} parent=5 // pred_fallthru
        _
      %p436 = scmp.lt.s32.totalorder %s31, 2
      // Predicated region
      $region53: #{tpu_custom_call.1} parent=5 // pred_check
        %p437 = pneg %p436
      $region54: #{tpu_custom_call.1} parent=5 // pred_check_branch
        %439 = sbr.rel (%p437) target = $region56
      $region55: #{tpu_custom_call.1} parent=5 // pred_region
        // Predicated region
        $region57: #{tpu_custom_call.1} parent=55 // pred_check
          %p440 = pneg %p65
        $region58: #{tpu_custom_call.1} parent=55 // pred_check_branch
          %442 = sbr.rel (%p440) target = $region60
        $region59: #{tpu_custom_call.1} parent=55 // pred_region
          %s443 = smul.u32 2, %s39
          %p444 = scmp.lt.s32.totalorder %s38, 1
          %s445 = scalar_select %p444, %s38, 1
          %p446 = scmp.lt.s32.totalorder %s443, 1
          %s447 = scalar_select %p446, %s443, 1
          %s448 = smul.addr %s445, 2
          %s449 = sadd.s32 %s447, %s448
          %s450 = smul.addr %s449, 4
          %s451 = scalar_lea.vmem %s0, %s450
          %s452 = smul.u32 2, %s39
        $region60: #{tpu_custom_call.1} parent=55 // pred_fallthru
          _
      $region56: #{tpu_custom_call.1} parent=5 // pred_fallthru
        _
      %p453 = scmp.le.s32.totalorder 1, %s31
      %p454 = scmp.lt.s32.totalorder %s31, 3
      %p455 = pnand %p453, %p454
      %p456 = pneg %p455
      // Predicated region
      $region61: #{tpu_custom_call.1} parent=5 // pred_check
        _
      $region62: #{tpu_custom_call.1} parent=5 // pred_check_branch
        %458 = sbr.rel (%p455) target = $region64
      $region63: #{tpu_custom_call.1} parent=5 // pred_region
        %s459 = ssub.s32 %s31, 1
        %s460 = smul.u32 2, %s41
        %p461 = scmp.lt.s32.totalorder %s40, 1
        %s462 = scalar_select %p461, %s40, 1
        %p463 = scmp.lt.s32.totalorder %s460, 1
        %s464 = scalar_select %p463, %s460, 1
        %s465 = smul.addr %s462, 2
        %s466 = sadd.s32 %s464, %s465
        %s467 = smul.addr %s466, 4
        %s468 = scalar_lea.vmem %s0, %s467
        %p469 = pneg %p71
        %p470 = pneg %p68
        %p471 = pneg %p92
        %p472 = pneg %p89
        %p473 = pneg %p113
        %p474 = pneg %p110
        %p475 = pneg %p134
        %p476 = pneg %p131
        %p477 = pneg %p155
        %p478 = pneg %p152
        %p479 = pneg %p176
        %p480 = pneg %p173
        %p481 = pneg %p197
        %p482 = pneg %p194
        %p483 = pneg %p218
        %p484 = pneg %p215
        %p485 = pneg %p239
        %p486 = pneg %p236
        %p487 = pneg %p260
        %p488 = pneg %p257
        %p489 = pneg %p281
        %p490 = pneg %p278
        %p491 = pneg %p309
        %p492 = pneg %p306
        %s493 = sand.u32 %s296, 1
        %s494 = scalar_lea.sflag [#allocation6], %s493
        %s495 = sand.u32 %s296, 1
        %s496 = smul.addr %s495, 128
        %s497 = scalar_lea.vmem [#allocation5], %s496
        %p498 = pneg %p337
        %p499 = pneg %p334
        %s500 = sand.u32 %s36, 1
        %s501 = scalar_lea.sflag [#allocation8], %s500
        %s502 = sand.u32 %s324, 1
        %s503 = smul.addr %s502, 128
        %s504 = scalar_lea.vmem [#allocation7], %s503
        %p505 = pneg %p365
        %p506 = pneg %p362
        %s507 = sand.u32 %s36, 1
        %s508 = scalar_lea.sflag [#allocation8], %s507
        %s509 = sand.u32 %s352, 1
        %s510 = smul.addr %s509, 2
        %s511 = scalar_lea.vmem [#allocation9], %s510
        %p512 = pneg %p391
        %p513 = pneg %p388
        %p514 = scmp.lt.s32.totalorder %s40, 1
        %s515 = scalar_select %p514, %s40, 1
        %s516 = scalar_lea.vmem %s14, %s515
        %s517 = smul.u32 2, %s41
        %p518 = scmp.lt.s32.totalorder %s40, 1
        %s519 = scalar_select %p518, %s40, 1
        %p520 = scmp.lt.s32.totalorder %s517, 1
        %s521 = scalar_select %p520, %s517, 1
        %s522 = smul.addr %s519, 2
        %s523 = sadd.s32 %s521, %s522
        %s524 = smul.addr %s523, 4
        %s525 = scalar_lea.vmem %s0, %s524
        %s526 = smul.u32 2, %s41
        %s527 = smul.u32 2, %s41
        %s528 = smul.u32 2, %s41
        %s529 = smul.u32 2, %s41
        %p530 = scmp.lt.s32.totalorder %s40, 1
        %s531 = scalar_select %p530, %s40, 1
        %s532 = scalar_lea.vmem %s14, %s531
        %p534 = scmp.eq.s32.totalorder %s41, 0
        // Predicated region
        $region65: #{tpu_custom_call.1} parent=63 // pred_check
          %p535 = pneg %p534
        $region66: #{tpu_custom_call.1} parent=63 // pred_check_branch
          %537 = sbr.rel (%p535) target = $region68
        $region67: #{tpu_custom_call.1} parent=63 // pred_region
          %vm538 = vcmask 7168
          %539 = vst.msk [vmem:[#allocation2] sm:$0xff] %vm538, 0.0
          %540 = vst.msk [vmem:[#allocation2 + $0x8] sm:$0xff] %vm538, 0.0
          %541 = vst.msk [vmem:[#allocation2 + $0x10] sm:$0xff] %vm538, 0.0
          %542 = vst.msk [vmem:[#allocation2 + $0x18] sm:$0xff] %vm538, 0.0
          %543 = vst.msk [vmem:[#allocation2 + $0x20] sm:$0xff] %vm538, 0.0
          %544 = vst.msk [vmem:[#allocation2 + $0x28] sm:$0xff] %vm538, 0.0
          %545 = vst.msk [vmem:[#allocation2 + $0x30] sm:$0xff] %vm538, 0.0
          %546 = vst.msk [vmem:[#allocation2 + $0x38] sm:$0xff] %vm538, 0.0
          %547 = vst.msk [vmem:[#allocation2 + $0x40] sm:$0xff] %vm538, 0.0
          %548 = vst.msk [vmem:[#allocation2 + $0x48] sm:$0xff] %vm538, 0.0
          %549 = vst.msk [vmem:[#allocation2 + $0x50] sm:$0xff] %vm538, 0.0
          %550 = vst.msk [vmem:[#allocation2 + $0x58] sm:$0xff] %vm538, 0.0
          %551 = vst.msk [vmem:[#allocation2 + $0x60] sm:$0xff] %vm538, 0.0
          %552 = vst.msk [vmem:[#allocation2 + $0x68] sm:$0xff] %vm538, 0.0
          %553 = vst.msk [vmem:[#allocation2 + $0x70] sm:$0xff] %vm538, 0.0
          %554 = vst.msk [vmem:[#allocation2 + $0x78] sm:$0xff] %vm538, 0.0
        $region68: #{tpu_custom_call.1} parent=63 // pred_fallthru
          _
        %v555 = vld [vmem:[%s525] sm:$0xff]
        %v556 = vld [vmem:[%s1] sm:$0xff]
        %v557 = vld [vmem:[%s1 + $0x8] sm:$0xff]
        %v558 = vld [vmem:[%s1 + $0x10] sm:$0xff]
        %v559 = vld [vmem:[%s1 + $0x18] sm:$0xff]
        %v560 = vld [vmem:[%s1 + $0x20] sm:$0xff]
        %v561 = vld [vmem:[%s1 + $0x28] sm:$0xff]
        %v562 = vld [vmem:[%s1 + $0x30] sm:$0xff]
        %v563 = vld [vmem:[%s1 + $0x38] sm:$0xff]
        %v564 = vld [vmem:[%s1 + $0x40] sm:$0xff]
        %v565 = vld [vmem:[%s1 + $0x48] sm:$0xff]
        %v566 = vld [vmem:[%s1 + $0x50] sm:$0xff]
        %v567 = vld [vmem:[%s1 + $0x58] sm:$0xff]
        %v568 = vld [vmem:[%s1 + $0x60] sm:$0xff]
        %v569 = vld [vmem:[%s1 + $0x68] sm:$0xff]
        %v570 = vld [vmem:[%s1 + $0x70] sm:$0xff]
        %v571 = vld [vmem:[%s1 + $0x78] sm:$0xff]
        %v572 = vld [vmem:[%s2] sm:$0xff]
        %v573 = vld [vmem:[%s2 + $0x8] sm:$0xff]
        %v574 = vld [vmem:[%s2 + $0x10] sm:$0xff]
        %v575 = vld [vmem:[%s2 + $0x18] sm:$0xff]
        %v576 = vld [vmem:[%s2 + $0x20] sm:$0xff]
        %v577 = vld [vmem:[%s2 + $0x28] sm:$0xff]
        %v578 = vld [vmem:[%s2 + $0x30] sm:$0xff]
        %v579 = vld [vmem:[%s2 + $0x38] sm:$0xff]
        %v580 = vld [vmem:[%s2 + $0x40] sm:$0xff]
        %v581 = vld [vmem:[%s2 + $0x48] sm:$0xff]
        %v582 = vld [vmem:[%s2 + $0x50] sm:$0xff]
        %v583 = vld [vmem:[%s2 + $0x58] sm:$0xff]
        %v584 = vld [vmem:[%s2 + $0x60] sm:$0xff]
        %v585 = vld [vmem:[%s2 + $0x68] sm:$0xff]
        %v586 = vld [vmem:[%s2 + $0x70] sm:$0xff]
        %v587 = vld [vmem:[%s2 + $0x78] sm:$0xff]
        %589 = vset.pattern.permute.xlu0 0
        %590 = vperm.xlu0 %589, %v572
        %v591 = vpop.permute.xlu0 %590
        %594 = vset.pattern.permute.xlu0 0
        %595 = vperm.xlu0 %594, %v573
        %v596 = vpop.permute.xlu0 %595
        %599 = vset.pattern.permute.xlu0 0
        %600 = vperm.xlu0 %599, %v574
        %v601 = vpop.permute.xlu0 %600
        %604 = vset.pattern.permute.xlu0 0
        %605 = vperm.xlu0 %604, %v575
        %v606 = vpop.permute.xlu0 %605
        %609 = vset.pattern.permute.xlu0 0
        %610 = vperm.xlu0 %609, %v576
        %v611 = vpop.permute.xlu0 %610
        %614 = vset.pattern.permute.xlu0 0
        %615 = vperm.xlu0 %614, %v577
        %v616 = vpop.permute.xlu0 %615
        %619 = vset.pattern.permute.xlu0 0
        %620 = vperm.xlu0 %619, %v578
        %v621 = vpop.permute.xlu0 %620
        %624 = vset.pattern.permute.xlu0 0
        %625 = vperm.xlu0 %624, %v579
        %v626 = vpop.permute.xlu0 %625
        %629 = vset.pattern.permute.xlu0 0
        %630 = vperm.xlu0 %629, %v580
        %v631 = vpop.permute.xlu0 %630
        %634 = vset.pattern.permute.xlu0 0
        %635 = vperm.xlu0 %634, %v581
        %v636 = vpop.permute.xlu0 %635
        %639 = vset.pattern.permute.xlu0 0
        %640 = vperm.xlu0 %639, %v582
        %v641 = vpop.permute.xlu0 %640
        %644 = vset.pattern.permute.xlu0 0
        %645 = vperm.xlu0 %644, %v583
        %v646 = vpop.permute.xlu0 %645
        %649 = vset.pattern.permute.xlu0 0
        %650 = vperm.xlu0 %649, %v584
        %v651 = vpop.permute.xlu0 %650
        %654 = vset.pattern.permute.xlu0 0
        %655 = vperm.xlu0 %654, %v585
        %v656 = vpop.permute.xlu0 %655
        %659 = vset.pattern.permute.xlu0 0
        %660 = vperm.xlu0 %659, %v586
        %v661 = vpop.permute.xlu0 %660
        %664 = vset.pattern.permute.xlu0 0
        %665 = vperm.xlu0 %664, %v587
        %v666 = vpop.permute.xlu0 %665
        %v669 = vcombine.high %v555, %v555
        %vm670 = vcmask 31744
        %v672 = vsel %vm670, %v556, 0
        %v675 = vsel %vm670, %v557, 0
        %v678 = vsel %vm670, %v558, 0
        %v681 = vsel %vm670, %v559, 0
        %v684 = vsel %vm670, %v560, 0
        %v687 = vsel %vm670, %v561, 0
        %v690 = vsel %vm670, %v562, 0
        %v693 = vsel %vm670, %v563, 0
        %v696 = vsel %vm670, %v564, 0
        %v699 = vsel %vm670, %v565, 0
        %v702 = vsel %vm670, %v566, 0
        %v705 = vsel %vm670, %v567, 0
        %v708 = vsel %vm670, %v568, 0
        %v711 = vsel %vm670, %v569, 0
        %v714 = vsel %vm670, %v570, 0
        %v717 = vsel %vm670, %v571, 0
        %vm719 = vcmask 1043456
        %v720 = vsel %vm719, %v555, 0
        %v722 = vsel %vm719, %v669, 0
        %724 = vmatprep.subr.mxu0 0.0
        %725 = vmatpush1.msra.mxu0 0.0
        %726 = vmatprep.subr.mxu0 0.0
        %727 = vmatpush1.msra.mxu0 0.0
        %728 = vmatprep.subr.mxu0 0.0
        %729 = vmatpush1.msra.mxu0 0.0
        %730 = vmatprep.subr.mxu0 0.0
        %731 = vmatpush1.msra.mxu0 0.0
        %732 = vmatprep.subr.mxu0 0.0
        %733 = vmatpush1.msra.mxu0 0.0
        %734 = vmatprep.subr.mxu0 0.0
        %735 = vmatpush1.msra.mxu0 0.0
        %736 = vmatprep.subr.mxu0 0.0
        %737 = vmatpush1.msra.mxu0 0.0
        %738 = vmatprep.subr.mxu0 0.0
        %739 = vmatpush1.msra.mxu0 0.0
        %740 = vmatprep.subr.mxu0 0.0
        %741 = vmatpush1.msra.mxu0 0.0
        %742 = vmatprep.subr.mxu0 0.0
        %743 = vmatpush1.msra.mxu0 0.0
        %744 = vmatprep.subr.mxu0 0.0
        %745 = vmatpush1.msra.mxu0 0.0
        %746 = vmatprep.subr.mxu0 0.0
        %747 = vmatpush1.msra.mxu0 0.0
        %748 = vmatprep.subr.mxu0 0.0
        %749 = vmatpush1.msra.mxu0 0.0
        %750 = vmatprep.subr.mxu0 0.0
        %751 = vmatpush1.msra.mxu0 0.0
        %752 = vmatprep.subr.mxu0 0.0
        %753 = vmatpush1.msra.mxu0 0.0
        %754 = vmatprep.subr.mxu0 %v722
        %755 = vmatpush1.msra.mxu0 %v720
        %756 = vmatprep.subr.mxu0 0.0
        %757 = vmatpush2.msra.mxu0 0.0
        %758 = vmatprep.subr.mxu0 0.0
        %759 = vmatpush2.msra.mxu0 0.0
        %760 = vmatprep.subr.mxu0 0.0
        %761 = vmatpush2.msra.mxu0 0.0
        %762 = vmatprep.subr.mxu0 0.0
        %763 = vmatpush2.msra.mxu0 0.0
        %764 = vmatprep.subr.mxu0 0.0
        %765 = vmatpush2.msra.mxu0 0.0
        %766 = vmatprep.subr.mxu0 0.0
        %767 = vmatpush2.msra.mxu0 0.0
        %768 = vmatprep.subr.mxu0 0.0
        %769 = vmatpush2.msra.mxu0 0.0
        %770 = vmatprep.subr.mxu0 0.0
        %771 = vmatpush2.msra.mxu0 0.0
        %772 = vmatprep.subr.mxu0 0.0
        %773 = vmatpush2.msra.mxu0 0.0
        %774 = vmatprep.subr.mxu0 0.0
        %775 = vmatpush2.msra.mxu0 0.0
        %776 = vmatprep.subr.mxu0 0.0
        %777 = vmatpush2.msra.mxu0 0.0
        %778 = vmatprep.subr.mxu0 0.0
        %779 = vmatpush2.msra.mxu0 0.0
        %780 = vmatprep.subr.mxu0 0.0
        %781 = vmatpush2.msra.mxu0 0.0
        %782 = vmatprep.subr.mxu0 0.0
        %783 = vmatpush2.msra.mxu0 0.0
        %784 = vmatprep.subr.mxu0 0.0
        %785 = vmatpush2.msra.mxu0 0.0
        %786 = vmatprep.subr.mxu0 0.0
        %787 = vmatpush2.msra.mxu0 0.0
        %788 = vmatprep.mubr.f32.mxu0 0.0
        %789 = vmatmul.mubr.f32.gmra.mxu0 %v672
        %v790 = vpop.f32.mrf.mxu0
        %v791 = vadd.f32 %v591, %v790
        %v792 = vpop.f32.mrf.mxu0
        %v793 = vadd.f32 %v591, %v792
        %794 = vmatprep.mubr.f32.mxu0 0.0
        %795 = vmatmul.mubr.f32.gmra.mxu0 %v675
        %v796 = vpop.f32.mrf.mxu0
        %v797 = vadd.f32 %v596, %v796
        %v798 = vpop.f32.mrf.mxu0
        %v799 = vadd.f32 %v596, %v798
        %800 = vmatprep.mubr.f32.mxu0 0.0
        %801 = vmatmul.mubr.f32.gmra.mxu0 %v678
        %v802 = vpop.f32.mrf.mxu0
        %v803 = vadd.f32 %v601, %v802
        %v804 = vpop.f32.mrf.mxu0
        %v805 = vadd.f32 %v601, %v804
        %806 = vmatprep.mubr.f32.mxu0 0.0
        %807 = vmatmul.mubr.f32.gmra.mxu0 %v681
        %v808 = vpop.f32.mrf.mxu0
        %v809 = vadd.f32 %v606, %v808
        %v810 = vpop.f32.mrf.mxu0
        %v811 = vadd.f32 %v606, %v810
        %812 = vmatprep.mubr.f32.mxu0 0.0
        %813 = vmatmul.mubr.f32.gmra.mxu0 %v684
        %v814 = vpop.f32.mrf.mxu0
        %v815 = vadd.f32 %v611, %v814
        %v816 = vpop.f32.mrf.mxu0
        %v817 = vadd.f32 %v611, %v816
        %818 = vmatprep.mubr.f32.mxu0 0.0
        %819 = vmatmul.mubr.f32.gmra.mxu0 %v687
        %v820 = vpop.f32.mrf.mxu0
        %v821 = vadd.f32 %v616, %v820
        %v822 = vpop.f32.mrf.mxu0
        %v823 = vadd.f32 %v616, %v822
        %824 = vmatprep.mubr.f32.mxu0 0.0
        %825 = vmatmul.mubr.f32.gmra.mxu0 %v690
        %v826 = vpop.f32.mrf.mxu0
        %v827 = vadd.f32 %v621, %v826
        %v828 = vpop.f32.mrf.mxu0
        %v829 = vadd.f32 %v621, %v828
        %830 = vmatprep.mubr.f32.mxu0 0.0
        %831 = vmatmul.mubr.f32.gmra.mxu0 %v693
        %v832 = vpop.f32.mrf.mxu0
        %v833 = vadd.f32 %v626, %v832
        %v834 = vpop.f32.mrf.mxu0
        %v835 = vadd.f32 %v626, %v834
        %836 = vmatprep.mubr.f32.mxu0 0.0
        %837 = vmatmul.mubr.f32.gmra.mxu0 %v696
        %v838 = vpop.f32.mrf.mxu0
        %v839 = vadd.f32 %v631, %v838
        %v840 = vpop.f32.mrf.mxu0
        %v841 = vadd.f32 %v631, %v840
        %842 = vmatprep.mubr.f32.mxu0 0.0
        %843 = vmatmul.mubr.f32.gmra.mxu0 %v699
        %v844 = vpop.f32.mrf.mxu0
        %v845 = vadd.f32 %v636, %v844
        %v846 = vpop.f32.mrf.mxu0
        %v847 = vadd.f32 %v636, %v846
        %848 = vmatprep.mubr.f32.mxu0 0.0
        %849 = vmatmul.mubr.f32.gmra.mxu0 %v702
        %v850 = vpop.f32.mrf.mxu0
        %v851 = vadd.f32 %v641, %v850
        %v852 = vpop.f32.mrf.mxu0
        %v853 = vadd.f32 %v641, %v852
        %854 = vmatprep.mubr.f32.mxu0 0.0
        %855 = vmatmul.mubr.f32.gmra.mxu0 %v705
        %v856 = vpop.f32.mrf.mxu0
        %v857 = vadd.f32 %v646, %v856
        %v858 = vpop.f32.mrf.mxu0
        %v859 = vadd.f32 %v646, %v858
        %860 = vmatprep.mubr.f32.mxu0 0.0
        %861 = vmatmul.mubr.f32.gmra.mxu0 %v708
        %v862 = vpop.f32.mrf.mxu0
        %v863 = vadd.f32 %v651, %v862
        %v864 = vpop.f32.mrf.mxu0
        %v865 = vadd.f32 %v651, %v864
        %866 = vmatprep.mubr.f32.mxu0 0.0
        %867 = vmatmul.mubr.f32.gmra.mxu0 %v711
        %v868 = vpop.f32.mrf.mxu0
        %v869 = vadd.f32 %v656, %v868
        %v870 = vpop.f32.mrf.mxu0
        %v871 = vadd.f32 %v656, %v870
        %872 = vmatprep.mubr.f32.mxu0 0.0
        %873 = vmatmul.mubr.f32.gmra.mxu0 %v714
        %v874 = vpop.f32.mrf.mxu0
        %v875 = vadd.f32 %v661, %v874
        %v876 = vpop.f32.mrf.mxu0
        %v877 = vadd.f32 %v661, %v876
        %878 = vmatprep.mubr.f32.mxu0 0.0
        %879 = vmatmul.mubr.f32.gmra.mxu0 %v717
        %v880 = vpop.f32.mrf.mxu0
        %v881 = vadd.f32 %v666, %v880
        %v882 = vpop.f32.mrf.mxu0
        %v883 = vadd.f32 %v666, %v882
        %884 = vdwg.mxu0
        %v885 = vmax.f32 %v791, 0.0
        %v886 = vmax.f32 %v793, 0.0
        %v887 = vmax.f32 %v797, 0.0
        %v888 = vmax.f32 %v799, 0.0
        %v889 = vmax.f32 %v803, 0.0
        %v890 = vmax.f32 %v805, 0.0
        %v891 = vmax.f32 %v809, 0.0
        %v892 = vmax.f32 %v811, 0.0
        %v893 = vmax.f32 %v815, 0.0
        %v894 = vmax.f32 %v817, 0.0
        %v895 = vmax.f32 %v821, 0.0
        %v896 = vmax.f32 %v823, 0.0
        %v897 = vmax.f32 %v827, 0.0
        %v898 = vmax.f32 %v829, 0.0
        %v899 = vmax.f32 %v833, 0.0
        %v900 = vmax.f32 %v835, 0.0
        %v901 = vmax.f32 %v839, 0.0
        %v902 = vmax.f32 %v841, 0.0
        %v903 = vmax.f32 %v845, 0.0
        %v904 = vmax.f32 %v847, 0.0
        %v905 = vmax.f32 %v851, 0.0
        %v906 = vmax.f32 %v853, 0.0
        %v907 = vmax.f32 %v857, 0.0
        %v908 = vmax.f32 %v859, 0.0
        %v909 = vmax.f32 %v863, 0.0
        %v910 = vmax.f32 %v865, 0.0
        %v911 = vmax.f32 %v869, 0.0
        %v912 = vmax.f32 %v871, 0.0
        %v913 = vmax.f32 %v875, 0.0
        %v914 = vmax.f32 %v877, 0.0
        %v915 = vmax.f32 %v881, 0.0
        %v916 = vmax.f32 %v883, 0.0
        %v917 = vpack.c.bf16 %v887, %v885
        %v918 = vpack.c.bf16 %v888, %v886
        %v919 = vpack.c.bf16 %v891, %v889
        %v920 = vpack.c.bf16 %v892, %v890
        %v921 = vpack.c.bf16 %v895, %v893
        %v922 = vpack.c.bf16 %v896, %v894
        %v923 = vpack.c.bf16 %v899, %v897
        %v924 = vpack.c.bf16 %v900, %v898
        %v925 = vpack.c.bf16 %v903, %v901
        %v926 = vpack.c.bf16 %v904, %v902
        %v927 = vpack.c.bf16 %v907, %v905
        %v928 = vpack.c.bf16 %v908, %v906
        %v929 = vpack.c.bf16 %v911, %v909
        %v930 = vpack.c.bf16 %v912, %v910
        %v931 = vpack.c.bf16 %v915, %v913
        %v932 = vpack.c.bf16 %v916, %v914
        %v949 = vunpack.c.l.b16 %v917
        %v950 = vunpack.c.l.b16 %v918
        %v951 = vunpack.c.h.b16 %v917
        %v952 = vunpack.c.h.b16 %v918
        %v953 = vunpack.c.l.b16 %v919
        %v954 = vunpack.c.l.b16 %v920
        %v955 = vunpack.c.h.b16 %v919
        %v956 = vunpack.c.h.b16 %v920
        %v957 = vunpack.c.l.b16 %v921
        %v958 = vunpack.c.l.b16 %v922
        %v959 = vunpack.c.h.b16 %v921
        %v960 = vunpack.c.h.b16 %v922
        %v961 = vunpack.c.l.b16 %v923
        %v962 = vunpack.c.l.b16 %v924
        %v963 = vunpack.c.h.b16 %v923
        %v964 = vunpack.c.h.b16 %v924
        %v965 = vunpack.c.l.b16 %v925
        %v966 = vunpack.c.l.b16 %v926
        %v967 = vunpack.c.h.b16 %v925
        %v968 = vunpack.c.h.b16 %v926
        %v969 = vunpack.c.l.b16 %v927
        %v970 = vunpack.c.l.b16 %v928
        %v971 = vunpack.c.h.b16 %v927
        %v972 = vunpack.c.h.b16 %v928
        %v973 = vunpack.c.l.b16 %v929
        %v974 = vunpack.c.l.b16 %v930
        %v975 = vunpack.c.h.b16 %v929
        %v976 = vunpack.c.h.b16 %v930
        %v977 = vunpack.c.l.b16 %v931
        %v978 = vunpack.c.l.b16 %v932
        %v979 = vunpack.c.h.b16 %v931
        %v980 = vunpack.c.h.b16 %v932
        %v981 = vpack.c.b16 %v950, %v949
        %v982 = vpack.c.b16 %v952, %v951
        %v983 = vpack.c.b16 %v954, %v953
        %v984 = vpack.c.b16 %v956, %v955
        %v985 = vpack.c.b16 %v958, %v957
        %v986 = vpack.c.b16 %v960, %v959
        %v987 = vpack.c.b16 %v962, %v961
        %v988 = vpack.c.b16 %v964, %v963
        %v989 = vpack.c.b16 %v966, %v965
        %v990 = vpack.c.b16 %v968, %v967
        %v991 = vpack.c.b16 %v970, %v969
        %v992 = vpack.c.b16 %v972, %v971
        %v993 = vpack.c.b16 %v974, %v973
        %v994 = vpack.c.b16 %v976, %v975
        %v995 = vpack.c.b16 %v978, %v977
        %v996 = vpack.c.b16 %v980, %v979
        %1013 = vst [vmem:[%s497] sm:$0xff] %v981
        %1014 = vst [vmem:[%s497 + $0x8] sm:$0xff] %v982
        %1015 = vst [vmem:[%s497 + $0x10] sm:$0xff] %v983
        %1016 = vst [vmem:[%s497 + $0x18] sm:$0xff] %v984
        %1017 = vst [vmem:[%s497 + $0x20] sm:$0xff] %v985
        %1018 = vst [vmem:[%s497 + $0x28] sm:$0xff] %v986
        %1019 = vst [vmem:[%s497 + $0x30] sm:$0xff] %v987
        %1020 = vst [vmem:[%s497 + $0x38] sm:$0xff] %v988
        %1021 = vst [vmem:[%s497 + $0x40] sm:$0xff] %v989
        %1022 = vst [vmem:[%s497 + $0x48] sm:$0xff] %v990
        %1023 = vst [vmem:[%s497 + $0x50] sm:$0xff] %v991
        %1024 = vst [vmem:[%s497 + $0x58] sm:$0xff] %v992
        %1025 = vst [vmem:[%s497 + $0x60] sm:$0xff] %v993
        %1026 = vst [vmem:[%s497 + $0x68] sm:$0xff] %v994
        %1027 = vst [vmem:[%s497 + $0x70] sm:$0xff] %v995
        %1028 = vst [vmem:[%s497 + $0x78] sm:$0xff] %v996
        %v1029 = vld [vmem:[%s3] sm:$0xf]
        %v1030 = vld [vmem:[%s3 + $0x4] sm:$0xf]
        %v1031 = vld [vmem:[%s3 + $0x8] sm:$0xf]
        %v1032 = vld [vmem:[%s3 + $0xc] sm:$0xf]
        %v1033 = vld [vmem:[%s3 + $0x10] sm:$0xf]
        %v1034 = vld [vmem:[%s3 + $0x14] sm:$0xf]
        %v1035 = vld [vmem:[%s3 + $0x18] sm:$0xf]
        %v1036 = vld [vmem:[%s3 + $0x1c] sm:$0xf]
        %v1037 = vld [vmem:[%s3 + $0x20] sm:$0xf]
        %v1038 = vld [vmem:[%s3 + $0x24] sm:$0xf]
        %v1039 = vld [vmem:[%s3 + $0x28] sm:$0xf]
        %v1040 = vld [vmem:[%s3 + $0x2c] sm:$0xf]
        %v1041 = vld [vmem:[%s3 + $0x30] sm:$0xf]
        %v1042 = vld [vmem:[%s3 + $0x34] sm:$0xf]
        %v1043 = vld [vmem:[%s3 + $0x38] sm:$0xf]
        %v1044 = vld [vmem:[%s3 + $0x3c] sm:$0xf]
        %v1045 = vld [vmem:[%s4] sm:$0xff]
        %v1046 = vld [vmem:[%s4 + $0x8] sm:$0xff]
        %v1047 = vld [vmem:[%s4 + $0x10] sm:$0xff]
        %v1048 = vld [vmem:[%s4 + $0x18] sm:$0xff]
        %v1049 = vld [vmem:[%s4 + $0x20] sm:$0xff]
        %v1050 = vld [vmem:[%s4 + $0x28] sm:$0xff]
        %v1051 = vld [vmem:[%s4 + $0x30] sm:$0xff]
        %v1052 = vld [vmem:[%s4 + $0x38] sm:$0xff]
        %v1053 = vld [vmem:[%s4 + $0x40] sm:$0xff]
        %v1054 = vld [vmem:[%s4 + $0x48] sm:$0xff]
        %v1055 = vld [vmem:[%s4 + $0x50] sm:$0xff]
        %v1056 = vld [vmem:[%s4 + $0x58] sm:$0xff]
        %v1057 = vld [vmem:[%s4 + $0x60] sm:$0xff]
        %v1058 = vld [vmem:[%s4 + $0x68] sm:$0xff]
        %v1059 = vld [vmem:[%s4 + $0x70] sm:$0xff]
        %v1060 = vld [vmem:[%s4 + $0x78] sm:$0xff]
        %1062 = vset.pattern.permute.xlu0 0
        %1063 = vperm.xlu0 %1062, %v1045
        %v1064 = vpop.permute.xlu0 %1063
        %1067 = vset.pattern.permute.xlu0 0
        %1068 = vperm.xlu0 %1067, %v1046
        %v1069 = vpop.permute.xlu0 %1068
        %1072 = vset.pattern.permute.xlu0 0
        %1073 = vperm.xlu0 %1072, %v1047
        %v1074 = vpop.permute.xlu0 %1073
        %1077 = vset.pattern.permute.xlu0 0
        %1078 = vperm.xlu0 %1077, %v1048
        %v1079 = vpop.permute.xlu0 %1078
        %1082 = vset.pattern.permute.xlu0 0
        %1083 = vperm.xlu0 %1082, %v1049
        %v1084 = vpop.permute.xlu0 %1083
        %1087 = vset.pattern.permute.xlu0 0
        %1088 = vperm.xlu0 %1087, %v1050
        %v1089 = vpop.permute.xlu0 %1088
        %1092 = vset.pattern.permute.xlu0 0
        %1093 = vperm.xlu0 %1092, %v1051
        %v1094 = vpop.permute.xlu0 %1093
        %1097 = vset.pattern.permute.xlu0 0
        %1098 = vperm.xlu0 %1097, %v1052
        %v1099 = vpop.permute.xlu0 %1098
        %1102 = vset.pattern.permute.xlu0 0
        %1103 = vperm.xlu0 %1102, %v1053
        %v1104 = vpop.permute.xlu0 %1103
        %1107 = vset.pattern.permute.xlu0 0
        %1108 = vperm.xlu0 %1107, %v1054
        %v1109 = vpop.permute.xlu0 %1108
        %1112 = vset.pattern.permute.xlu0 0
        %1113 = vperm.xlu0 %1112, %v1055
        %v1114 = vpop.permute.xlu0 %1113
        %1117 = vset.pattern.permute.xlu0 0
        %1118 = vperm.xlu0 %1117, %v1056
        %v1119 = vpop.permute.xlu0 %1118
        %1122 = vset.pattern.permute.xlu0 0
        %1123 = vperm.xlu0 %1122, %v1057
        %v1124 = vpop.permute.xlu0 %1123
        %1127 = vset.pattern.permute.xlu0 0
        %1128 = vperm.xlu0 %1127, %v1058
        %v1129 = vpop.permute.xlu0 %1128
        %1132 = vset.pattern.permute.xlu0 0
        %1133 = vperm.xlu0 %1132, %v1059
        %v1134 = vpop.permute.xlu0 %1133
        %1137 = vset.pattern.permute.xlu0 0
        %1138 = vperm.xlu0 %1137, %v1060
        %v1139 = vpop.permute.xlu0 %1138
        %v1157 = vunpack.c.l.b16 %v1029
        %v1158 = vunpack.c.l.b16 %v1030
        %v1159 = vunpack.c.l.b16 %v1031
        %v1160 = vunpack.c.l.b16 %v1032
        %v1161 = vunpack.c.l.b16 %v1033
        %v1162 = vunpack.c.l.b16 %v1034
        %v1163 = vunpack.c.l.b16 %v1035
        %v1164 = vunpack.c.l.b16 %v1036
        %v1165 = vunpack.c.l.b16 %v1037
        %v1166 = vunpack.c.l.b16 %v1038
        %v1167 = vunpack.c.l.b16 %v1039
        %v1168 = vunpack.c.l.b16 %v1040
        %v1169 = vunpack.c.l.b16 %v1041
        %v1170 = vunpack.c.l.b16 %v1042
        %v1171 = vunpack.c.l.b16 %v1043
        %v1172 = vunpack.c.l.b16 %v1044
        %v1173 = vpack.c.b16 %v1158, %v1157
        %v1174 = vpack.c.b16 %v1160, %v1159
        %v1175 = vpack.c.b16 %v1162, %v1161
        %v1176 = vpack.c.b16 %v1164, %v1163
        %v1177 = vpack.c.b16 %v1166, %v1165
        %v1178 = vpack.c.b16 %v1168, %v1167
        %v1179 = vpack.c.b16 %v1170, %v1169
        %v1180 = vpack.c.b16 %v1172, %v1171
        %1189 = vmatprep.subr.bf16.mxu0 %v932
        %1190 = vmatpush1.bf16.msra.mxu0 %v931
        %1191 = vmatprep.subr.bf16.mxu0 %v930
        %1192 = vmatpush1.bf16.msra.mxu0 %v929
        %1193 = vmatprep.subr.bf16.mxu0 %v928
        %1194 = vmatpush1.bf16.msra.mxu0 %v927
        %1195 = vmatprep.subr.bf16.mxu0 %v926
        %1196 = vmatpush1.bf16.msra.mxu0 %v925
        %1197 = vmatprep.subr.bf16.mxu0 %v924
        %1198 = vmatpush1.bf16.msra.mxu0 %v923
        %1199 = vmatprep.subr.bf16.mxu0 %v922
        %1200 = vmatpush1.bf16.msra.mxu0 %v921
        %1201 = vmatprep.subr.bf16.mxu0 %v920
        %1202 = vmatpush1.bf16.msra.mxu0 %v919
        %1203 = vmatprep.subr.bf16.mxu0 %v918
        %1204 = vmatpush1.bf16.msra.mxu0 %v917
        %1205 = vmatprep.subr.bf16.mxu0 0
        %1206 = vmatpush2.bf16.msra.mxu0 0
        %1207 = vmatprep.subr.bf16.mxu0 0
        %1208 = vmatpush2.bf16.msra.mxu0 0
        %1209 = vmatprep.subr.bf16.mxu0 0
        %1210 = vmatpush2.bf16.msra.mxu0 0
        %1211 = vmatprep.subr.bf16.mxu0 0
        %1212 = vmatpush2.bf16.msra.mxu0 0
        %1213 = vmatprep.subr.bf16.mxu0 0
        %1214 = vmatpush2.bf16.msra.mxu0 0
        %1215 = vmatprep.subr.bf16.mxu0 0
        %1216 = vmatpush2.bf16.msra.mxu0 0
        %1217 = vmatprep.subr.bf16.mxu0 0
        %1218 = vmatpush2.bf16.msra.mxu0 0
        %1219 = vmatprep.subr.bf16.mxu0 0
        %1220 = vmatpush2.bf16.msra.mxu0 0
        %1221 = vmatprep.mubr.bf16.mxu0 0
        %1222 = vmatmul.mubr.bf16.gmra.mxu0 %v1173
        %v1223 = vpop.f32.mrf.mxu0
        %v1224 = vadd.f32 %v1064, %v1223
        %v1225 = vpop.f32.mrf.mxu0
        %v1226 = vadd.f32 %v1064, %v1225
        %v1227 = vpop.f32.mrf.mxu0
        %v1228 = vadd.f32 %v1069, %v1227
        %v1229 = vpop.f32.mrf.mxu0
        %v1230 = vadd.f32 %v1069, %v1229
        %1231 = vmatprep.mubr.bf16.mxu0 0
        %1232 = vmatmul.mubr.bf16.gmra.mxu0 %v1174
        %v1233 = vpop.f32.mrf.mxu0
        %v1234 = vadd.f32 %v1074, %v1233
        %v1235 = vpop.f32.mrf.mxu0
        %v1236 = vadd.f32 %v1074, %v1235
        %v1237 = vpop.f32.mrf.mxu0
        %v1238 = vadd.f32 %v1079, %v1237
        %v1239 = vpop.f32.mrf.mxu0
        %v1240 = vadd.f32 %v1079, %v1239
        %1241 = vmatprep.mubr.bf16.mxu0 0
        %1242 = vmatmul.mubr.bf16.gmra.mxu0 %v1175
        %v1243 = vpop.f32.mrf.mxu0
        %v1244 = vadd.f32 %v1084, %v1243
        %v1245 = vpop.f32.mrf.mxu0
        %v1246 = vadd.f32 %v1084, %v1245
        %v1247 = vpop.f32.mrf.mxu0
        %v1248 = vadd.f32 %v1089, %v1247
        %v1249 = vpop.f32.mrf.mxu0
        %v1250 = vadd.f32 %v1089, %v1249
        %1251 = vmatprep.mubr.bf16.mxu0 0
        %1252 = vmatmul.mubr.bf16.gmra.mxu0 %v1176
        %v1253 = vpop.f32.mrf.mxu0
        %v1254 = vadd.f32 %v1094, %v1253
        %v1255 = vpop.f32.mrf.mxu0
        %v1256 = vadd.f32 %v1094, %v1255
        %v1257 = vpop.f32.mrf.mxu0
        %v1258 = vadd.f32 %v1099, %v1257
        %v1259 = vpop.f32.mrf.mxu0
        %v1260 = vadd.f32 %v1099, %v1259
        %1261 = vmatprep.mubr.bf16.mxu0 0
        %1262 = vmatmul.mubr.bf16.gmra.mxu0 %v1177
        %v1263 = vpop.f32.mrf.mxu0
        %v1264 = vadd.f32 %v1104, %v1263
        %v1265 = vpop.f32.mrf.mxu0
        %v1266 = vadd.f32 %v1104, %v1265
        %v1267 = vpop.f32.mrf.mxu0
        %v1268 = vadd.f32 %v1109, %v1267
        %v1269 = vpop.f32.mrf.mxu0
        %v1270 = vadd.f32 %v1109, %v1269
        %1271 = vmatprep.mubr.bf16.mxu0 0
        %1272 = vmatmul.mubr.bf16.gmra.mxu0 %v1178
        %v1273 = vpop.f32.mrf.mxu0
        %v1274 = vadd.f32 %v1114, %v1273
        %v1275 = vpop.f32.mrf.mxu0
        %v1276 = vadd.f32 %v1114, %v1275
        %v1277 = vpop.f32.mrf.mxu0
        %v1278 = vadd.f32 %v1119, %v1277
        %v1279 = vpop.f32.mrf.mxu0
        %v1280 = vadd.f32 %v1119, %v1279
        %1281 = vmatprep.mubr.bf16.mxu0 0
        %1282 = vmatmul.mubr.bf16.gmra.mxu0 %v1179
        %v1283 = vpop.f32.mrf.mxu0
        %v1284 = vadd.f32 %v1124, %v1283
        %v1285 = vpop.f32.mrf.mxu0
        %v1286 = vadd.f32 %v1124, %v1285
        %v1287 = vpop.f32.mrf.mxu0
        %v1288 = vadd.f32 %v1129, %v1287
        %v1289 = vpop.f32.mrf.mxu0
        %v1290 = vadd.f32 %v1129, %v1289
        %1291 = vmatprep.mubr.bf16.mxu0 0
        %1292 = vmatmul.mubr.bf16.gmra.mxu0 %v1180
        %v1293 = vpop.f32.mrf.mxu0
        %v1294 = vadd.f32 %v1134, %v1293
        %v1295 = vpop.f32.mrf.mxu0
        %v1296 = vadd.f32 %v1134, %v1295
        %v1297 = vpop.f32.mrf.mxu0
        %v1298 = vadd.f32 %v1139, %v1297
        %v1299 = vpop.f32.mrf.mxu0
        %v1300 = vadd.f32 %v1139, %v1299
        %1301 = vdwg.mxu0
        %v1302 = vmax.f32 %v1224, 0.0
        %v1303 = vmax.f32 %v1226, 0.0
        %v1304 = vmax.f32 %v1228, 0.0
        %v1305 = vmax.f32 %v1230, 0.0
        %v1306 = vmax.f32 %v1234, 0.0
        %v1307 = vmax.f32 %v1236, 0.0
        %v1308 = vmax.f32 %v1238, 0.0
        %v1309 = vmax.f32 %v1240, 0.0
        %v1310 = vmax.f32 %v1244, 0.0
        %v1311 = vmax.f32 %v1246, 0.0
        %v1312 = vmax.f32 %v1248, 0.0
        %v1313 = vmax.f32 %v1250, 0.0
        %v1314 = vmax.f32 %v1254, 0.0
        %v1315 = vmax.f32 %v1256, 0.0
        %v1316 = vmax.f32 %v1258, 0.0
        %v1317 = vmax.f32 %v1260, 0.0
        %v1318 = vmax.f32 %v1264, 0.0
        %v1319 = vmax.f32 %v1266, 0.0
        %v1320 = vmax.f32 %v1268, 0.0
        %v1321 = vmax.f32 %v1270, 0.0
        %v1322 = vmax.f32 %v1274, 0.0
        %v1323 = vmax.f32 %v1276, 0.0
        %v1324 = vmax.f32 %v1278, 0.0
        %v1325 = vmax.f32 %v1280, 0.0
        %v1326 = vmax.f32 %v1284, 0.0
        %v1327 = vmax.f32 %v1286, 0.0
        %v1328 = vmax.f32 %v1288, 0.0
        %v1329 = vmax.f32 %v1290, 0.0
        %v1330 = vmax.f32 %v1294, 0.0
        %v1331 = vmax.f32 %v1296, 0.0
        %v1332 = vmax.f32 %v1298, 0.0
        %v1333 = vmax.f32 %v1300, 0.0
        %v1334 = vpack.c.bf16 %v1304, %v1302
        %v1335 = vpack.c.bf16 %v1305, %v1303
        %v1336 = vpack.c.bf16 %v1308, %v1306
        %v1337 = vpack.c.bf16 %v1309, %v1307
        %v1338 = vpack.c.bf16 %v1312, %v1310
        %v1339 = vpack.c.bf16 %v1313, %v1311
        %v1340 = vpack.c.bf16 %v1316, %v1314
        %v1341 = vpack.c.bf16 %v1317, %v1315
        %v1342 = vpack.c.bf16 %v1320, %v1318
        %v1343 = vpack.c.bf16 %v1321, %v1319
        %v1344 = vpack.c.bf16 %v1324, %v1322
        %v1345 = vpack.c.bf16 %v1325, %v1323
        %v1346 = vpack.c.bf16 %v1328, %v1326
        %v1347 = vpack.c.bf16 %v1329, %v1327
        %v1348 = vpack.c.bf16 %v1332, %v1330
        %v1349 = vpack.c.bf16 %v1333, %v1331
        %v1366 = vunpack.c.l.b16 %v1334
        %v1367 = vunpack.c.l.b16 %v1335
        %v1368 = vunpack.c.h.b16 %v1334
        %v1369 = vunpack.c.h.b16 %v1335
        %v1370 = vunpack.c.l.b16 %v1336
        %v1371 = vunpack.c.l.b16 %v1337
        %v1372 = vunpack.c.h.b16 %v1336
        %v1373 = vunpack.c.h.b16 %v1337
        %v1374 = vunpack.c.l.b16 %v1338
        %v1375 = vunpack.c.l.b16 %v1339
        %v1376 = vunpack.c.h.b16 %v1338
        %v1377 = vunpack.c.h.b16 %v1339
        %v1378 = vunpack.c.l.b16 %v1340
        %v1379 = vunpack.c.l.b16 %v1341
        %v1380 = vunpack.c.h.b16 %v1340
        %v1381 = vunpack.c.h.b16 %v1341
        %v1382 = vunpack.c.l.b16 %v1342
        %v1383 = vunpack.c.l.b16 %v1343
        %v1384 = vunpack.c.h.b16 %v1342
        %v1385 = vunpack.c.h.b16 %v1343
        %v1386 = vunpack.c.l.b16 %v1344
        %v1387 = vunpack.c.l.b16 %v1345
        %v1388 = vunpack.c.h.b16 %v1344
        %v1389 = vunpack.c.h.b16 %v1345
        %v1390 = vunpack.c.l.b16 %v1346
        %v1391 = vunpack.c.l.b16 %v1347
        %v1392 = vunpack.c.h.b16 %v1346
        %v1393 = vunpack.c.h.b16 %v1347
        %v1394 = vunpack.c.l.b16 %v1348
        %v1395 = vunpack.c.l.b16 %v1349
        %v1396 = vunpack.c.h.b16 %v1348
        %v1397 = vunpack.c.h.b16 %v1349
        %v1398 = vpack.c.b16 %v1367, %v1366
        %v1399 = vpack.c.b16 %v1369, %v1368
        %v1400 = vpack.c.b16 %v1371, %v1370
        %v1401 = vpack.c.b16 %v1373, %v1372
        %v1402 = vpack.c.b16 %v1375, %v1374
        %v1403 = vpack.c.b16 %v1377, %v1376
        %v1404 = vpack.c.b16 %v1379, %v1378
        %v1405 = vpack.c.b16 %v1381, %v1380
        %v1406 = vpack.c.b16 %v1383, %v1382
        %v1407 = vpack.c.b16 %v1385, %v1384
        %v1408 = vpack.c.b16 %v1387, %v1386
        %v1409 = vpack.c.b16 %v1389, %v1388
        %v1410 = vpack.c.b16 %v1391, %v1390
        %v1411 = vpack.c.b16 %v1393, %v1392
        %v1412 = vpack.c.b16 %v1395, %v1394
        %v1413 = vpack.c.b16 %v1397, %v1396
        %1430 = vst [vmem:[%s504] sm:$0xff] %v1398
        %1431 = vst [vmem:[%s504 + $0x8] sm:$0xff] %v1399
        %1432 = vst [vmem:[%s504 + $0x10] sm:$0xff] %v1400
        %1433 = vst [vmem:[%s504 + $0x18] sm:$0xff] %v1401
        %1434 = vst [vmem:[%s504 + $0x20] sm:$0xff] %v1402
        %1435 = vst [vmem:[%s504 + $0x28] sm:$0xff] %v1403
        %1436 = vst [vmem:[%s504 + $0x30] sm:$0xff] %v1404
        %1437 = vst [vmem:[%s504 + $0x38] sm:$0xff] %v1405
        %1438 = vst [vmem:[%s504 + $0x40] sm:$0xff] %v1406
        %1439 = vst [vmem:[%s504 + $0x48] sm:$0xff] %v1407
        %1440 = vst [vmem:[%s504 + $0x50] sm:$0xff] %v1408
        %1441 = vst [vmem:[%s504 + $0x58] sm:$0xff] %v1409
        %1442 = vst [vmem:[%s504 + $0x60] sm:$0xff] %v1410
        %1443 = vst [vmem:[%s504 + $0x68] sm:$0xff] %v1411
        %1444 = vst [vmem:[%s504 + $0x70] sm:$0xff] %v1412
        %1445 = vst [vmem:[%s504 + $0x78] sm:$0xff] %v1413
        %v1446 = vld [vmem:[%s5] sm:$0xf]
        %v1447 = vld [vmem:[%s5 + $0x4] sm:$0xf]
        %v1448 = vld [vmem:[%s5 + $0x8] sm:$0xf]
        %v1449 = vld [vmem:[%s5 + $0xc] sm:$0xf]
        %v1450 = vld [vmem:[%s5 + $0x10] sm:$0xf]
        %v1451 = vld [vmem:[%s5 + $0x14] sm:$0xf]
        %v1452 = vld [vmem:[%s5 + $0x18] sm:$0xf]
        %v1453 = vld [vmem:[%s5 + $0x1c] sm:$0xf]
        %v1454 = vld [vmem:[%s5 + $0x20] sm:$0xf]
        %v1455 = vld [vmem:[%s5 + $0x24] sm:$0xf]
        %v1456 = vld [vmem:[%s5 + $0x28] sm:$0xf]
        %v1457 = vld [vmem:[%s5 + $0x2c] sm:$0xf]
        %v1458 = vld [vmem:[%s5 + $0x30] sm:$0xf]
        %v1459 = vld [vmem:[%s5 + $0x34] sm:$0xf]
        %v1460 = vld [vmem:[%s5 + $0x38] sm:$0xf]
        %v1461 = vld [vmem:[%s5 + $0x3c] sm:$0xf]
        %v1462 = vld [vmem:[%s5 + $0x40] sm:$0xf]
        %v1463 = vld [vmem:[%s5 + $0x44] sm:$0xf]
        %v1464 = vld [vmem:[%s5 + $0x48] sm:$0xf]
        %v1465 = vld [vmem:[%s5 + $0x4c] sm:$0xf]
        %v1466 = vld [vmem:[%s5 + $0x50] sm:$0xf]
        %v1467 = vld [vmem:[%s5 + $0x54] sm:$0xf]
        %v1468 = vld [vmem:[%s5 + $0x58] sm:$0xf]
        %v1469 = vld [vmem:[%s5 + $0x5c] sm:$0xf]
        %v1470 = vld [vmem:[%s5 + $0x60] sm:$0xf]
        %v1471 = vld [vmem:[%s5 + $0x64] sm:$0xf]
        %v1472 = vld [vmem:[%s5 + $0x68] sm:$0xf]
        %v1473 = vld [vmem:[%s5 + $0x6c] sm:$0xf]
        %v1474 = vld [vmem:[%s5 + $0x70] sm:$0xf]
        %v1475 = vld [vmem:[%s5 + $0x74] sm:$0xf]
        %v1476 = vld [vmem:[%s5 + $0x78] sm:$0xf]
        %v1477 = vld [vmem:[%s5 + $0x7c] sm:$0xf]
        %v1478 = vld [vmem:[%s6] sm:$0xff]
        %v1479 = vld [vmem:[%s6 + $0x8] sm:$0xff]
        %v1480 = vld [vmem:[%s6 + $0x10] sm:$0xff]
        %v1481 = vld [vmem:[%s6 + $0x18] sm:$0xff]
        %v1482 = vld [vmem:[%s6 + $0x20] sm:$0xff]
        %v1483 = vld [vmem:[%s6 + $0x28] sm:$0xff]
        %v1484 = vld [vmem:[%s6 + $0x30] sm:$0xff]
        %v1485 = vld [vmem:[%s6 + $0x38] sm:$0xff]
        %v1486 = vld [vmem:[%s6 + $0x40] sm:$0xff]
        %v1487 = vld [vmem:[%s6 + $0x48] sm:$0xff]
        %v1488 = vld [vmem:[%s6 + $0x50] sm:$0xff]
        %v1489 = vld [vmem:[%s6 + $0x58] sm:$0xff]
        %v1490 = vld [vmem:[%s6 + $0x60] sm:$0xff]
        %v1491 = vld [vmem:[%s6 + $0x68] sm:$0xff]
        %v1492 = vld [vmem:[%s6 + $0x70] sm:$0xff]
        %v1493 = vld [vmem:[%s6 + $0x78] sm:$0xff]
        %v1494 = vld [vmem:[%s6 + $0x80] sm:$0xff]
        %v1495 = vld [vmem:[%s6 + $0x88] sm:$0xff]
        %v1496 = vld [vmem:[%s6 + $0x90] sm:$0xff]
        %v1497 = vld [vmem:[%s6 + $0x98] sm:$0xff]
        %v1498 = vld [vmem:[%s6 + $0xa0] sm:$0xff]
        %v1499 = vld [vmem:[%s6 + $0xa8] sm:$0xff]
        %v1500 = vld [vmem:[%s6 + $0xb0] sm:$0xff]
        %v1501 = vld [vmem:[%s6 + $0xb8] sm:$0xff]
        %v1502 = vld [vmem:[%s6 + $0xc0] sm:$0xff]
        %v1503 = vld [vmem:[%s6 + $0xc8] sm:$0xff]
        %v1504 = vld [vmem:[%s6 + $0xd0] sm:$0xff]
        %v1505 = vld [vmem:[%s6 + $0xd8] sm:$0xff]
        %v1506 = vld [vmem:[%s6 + $0xe0] sm:$0xff]
        %v1507 = vld [vmem:[%s6 + $0xe8] sm:$0xff]
        %v1508 = vld [vmem:[%s6 + $0xf0] sm:$0xff]
        %v1509 = vld [vmem:[%s6 + $0xf8] sm:$0xff]
        %v1510 = vld [vmem:[%s7] sm:$0x3]
        %1512 = vset.pattern.permute.xlu0 0
        %1513 = vperm.xlu0 %1512, %v1478
        %v1514 = vpop.permute.xlu0 %1513
        %1517 = vset.pattern.permute.xlu0 0
        %1518 = vperm.xlu0 %1517, %v1479
        %v1519 = vpop.permute.xlu0 %1518
        %1522 = vset.pattern.permute.xlu0 0
        %1523 = vperm.xlu0 %1522, %v1480
        %v1524 = vpop.permute.xlu0 %1523
        %1527 = vset.pattern.permute.xlu0 0
        %1528 = vperm.xlu0 %1527, %v1481
        %v1529 = vpop.permute.xlu0 %1528
        %1532 = vset.pattern.permute.xlu0 0
        %1533 = vperm.xlu0 %1532, %v1482
        %v1534 = vpop.permute.xlu0 %1533
        %1537 = vset.pattern.permute.xlu0 0
        %1538 = vperm.xlu0 %1537, %v1483
        %v1539 = vpop.permute.xlu0 %1538
        %1542 = vset.pattern.permute.xlu0 0
        %1543 = vperm.xlu0 %1542, %v1484
        %v1544 = vpop.permute.xlu0 %1543
        %1547 = vset.pattern.permute.xlu0 0
        %1548 = vperm.xlu0 %1547, %v1485
        %v1549 = vpop.permute.xlu0 %1548
        %1552 = vset.pattern.permute.xlu0 0
        %1553 = vperm.xlu0 %1552, %v1486
        %v1554 = vpop.permute.xlu0 %1553
        %1557 = vset.pattern.permute.xlu0 0
        %1558 = vperm.xlu0 %1557, %v1487
        %v1559 = vpop.permute.xlu0 %1558
        %1562 = vset.pattern.permute.xlu0 0
        %1563 = vperm.xlu0 %1562, %v1488
        %v1564 = vpop.permute.xlu0 %1563
        %1567 = vset.pattern.permute.xlu0 0
        %1568 = vperm.xlu0 %1567, %v1489
        %v1569 = vpop.permute.xlu0 %1568
        %1572 = vset.pattern.permute.xlu0 0
        %1573 = vperm.xlu0 %1572, %v1490
        %v1574 = vpop.permute.xlu0 %1573
        %1577 = vset.pattern.permute.xlu0 0
        %1578 = vperm.xlu0 %1577, %v1491
        %v1579 = vpop.permute.xlu0 %1578
        %1582 = vset.pattern.permute.xlu0 0
        %1583 = vperm.xlu0 %1582, %v1492
        %v1584 = vpop.permute.xlu0 %1583
        %1587 = vset.pattern.permute.xlu0 0
        %1588 = vperm.xlu0 %1587, %v1493
        %v1589 = vpop.permute.xlu0 %1588
        %1592 = vset.pattern.permute.xlu0 0
        %1593 = vperm.xlu0 %1592, %v1494
        %v1594 = vpop.permute.xlu0 %1593
        %1597 = vset.pattern.permute.xlu0 0
        %1598 = vperm.xlu0 %1597, %v1495
        %v1599 = vpop.permute.xlu0 %1598
        %1602 = vset.pattern.permute.xlu0 0
        %1603 = vperm.xlu0 %1602, %v1496
        %v1604 = vpop.permute.xlu0 %1603
        %1607 = vset.pattern.permute.xlu0 0
        %1608 = vperm.xlu0 %1607, %v1497
        %v1609 = vpop.permute.xlu0 %1608
        %1612 = vset.pattern.permute.xlu0 0
        %1613 = vperm.xlu0 %1612, %v1498
        %v1614 = vpop.permute.xlu0 %1613
        %1617 = vset.pattern.permute.xlu0 0
        %1618 = vperm.xlu0 %1617, %v1499
        %v1619 = vpop.permute.xlu0 %1618
        %1622 = vset.pattern.permute.xlu0 0
        %1623 = vperm.xlu0 %1622, %v1500
        %v1624 = vpop.permute.xlu0 %1623
        %1627 = vset.pattern.permute.xlu0 0
        %1628 = vperm.xlu0 %1627, %v1501
        %v1629 = vpop.permute.xlu0 %1628
        %1632 = vset.pattern.permute.xlu0 0
        %1633 = vperm.xlu0 %1632, %v1502
        %v1634 = vpop.permute.xlu0 %1633
        %1637 = vset.pattern.permute.xlu0 0
        %1638 = vperm.xlu0 %1637, %v1503
        %v1639 = vpop.permute.xlu0 %1638
        %1642 = vset.pattern.permute.xlu0 0
        %1643 = vperm.xlu0 %1642, %v1504
        %v1644 = vpop.permute.xlu0 %1643
        %1647 = vset.pattern.permute.xlu0 0
        %1648 = vperm.xlu0 %1647, %v1505
        %v1649 = vpop.permute.xlu0 %1648
        %1652 = vset.pattern.permute.xlu0 0
        %1653 = vperm.xlu0 %1652, %v1506
        %v1654 = vpop.permute.xlu0 %1653
        %1657 = vset.pattern.permute.xlu0 0
        %1658 = vperm.xlu0 %1657, %v1507
        %v1659 = vpop.permute.xlu0 %1658
        %1662 = vset.pattern.permute.xlu0 0
        %1663 = vperm.xlu0 %1662, %v1508
        %v1664 = vpop.permute.xlu0 %1663
        %1667 = vset.pattern.permute.xlu0 0
        %1668 = vperm.xlu0 %1667, %v1509
        %v1669 = vpop.permute.xlu0 %1668
        %v1703 = vunpack.c.l.b16 %v1446
        %v1704 = vunpack.c.l.b16 %v1447
        %v1705 = vunpack.c.l.b16 %v1448
        %v1706 = vunpack.c.l.b16 %v1449
        %v1707 = vunpack.c.l.b16 %v1450
        %v1708 = vunpack.c.l.b16 %v1451
        %v1709 = vunpack.c.l.b16 %v1452
        %v1710 = vunpack.c.l.b16 %v1453
        %v1711 = vunpack.c.l.b16 %v1454
        %v1712 = vunpack.c.l.b16 %v1455
        %v1713 = vunpack.c.l.b16 %v1456
        %v1714 = vunpack.c.l.b16 %v1457
        %v1715 = vunpack.c.l.b16 %v1458
        %v1716 = vunpack.c.l.b16 %v1459
        %v1717 = vunpack.c.l.b16 %v1460
        %v1718 = vunpack.c.l.b16 %v1461
        %v1719 = vunpack.c.l.b16 %v1462
        %v1720 = vunpack.c.l.b16 %v1463
        %v1721 = vunpack.c.l.b16 %v1464
        %v1722 = vunpack.c.l.b16 %v1465
        %v1723 = vunpack.c.l.b16 %v1466
        %v1724 = vunpack.c.l.b16 %v1467
        %v1725 = vunpack.c.l.b16 %v1468
        %v1726 = vunpack.c.l.b16 %v1469
        %v1727 = vunpack.c.l.b16 %v1470
        %v1728 = vunpack.c.l.b16 %v1471
        %v1729 = vunpack.c.l.b16 %v1472
        %v1730 = vunpack.c.l.b16 %v1473
        %v1731 = vunpack.c.l.b16 %v1474
        %v1732 = vunpack.c.l.b16 %v1475
        %v1733 = vunpack.c.l.b16 %v1476
        %v1734 = vunpack.c.l.b16 %v1477
        %v1735 = vpack.c.b16 %v1704, %v1703
        %v1736 = vpack.c.b16 %v1706, %v1705
        %v1737 = vpack.c.b16 %v1708, %v1707
        %v1738 = vpack.c.b16 %v1710, %v1709
        %v1739 = vpack.c.b16 %v1712, %v1711
        %v1740 = vpack.c.b16 %v1714, %v1713
        %v1741 = vpack.c.b16 %v1716, %v1715
        %v1742 = vpack.c.b16 %v1718, %v1717
        %v1743 = vpack.c.b16 %v1720, %v1719
        %v1744 = vpack.c.b16 %v1722, %v1721
        %v1745 = vpack.c.b16 %v1724, %v1723
        %v1746 = vpack.c.b16 %v1726, %v1725
        %v1747 = vpack.c.b16 %v1728, %v1727
        %v1748 = vpack.c.b16 %v1730, %v1729
        %v1749 = vpack.c.b16 %v1732, %v1731
        %v1750 = vpack.c.b16 %v1734, %v1733
        %1767 = vmatprep.subr.bf16.mxu0 %v1349
        %1768 = vmatpush1.bf16.msra.mxu0 %v1348
        %1769 = vmatprep.subr.bf16.mxu0 %v1347
        %1770 = vmatpush1.bf16.msra.mxu0 %v1346
        %1771 = vmatprep.subr.bf16.mxu0 %v1345
        %1772 = vmatpush1.bf16.msra.mxu0 %v1344
        %1773 = vmatprep.subr.bf16.mxu0 %v1343
        %1774 = vmatpush1.bf16.msra.mxu0 %v1342
        %1775 = vmatprep.subr.bf16.mxu0 %v1341
        %1776 = vmatpush1.bf16.msra.mxu0 %v1340
        %1777 = vmatprep.subr.bf16.mxu0 %v1339
        %1778 = vmatpush1.bf16.msra.mxu0 %v1338
        %1779 = vmatprep.subr.bf16.mxu0 %v1337
        %1780 = vmatpush1.bf16.msra.mxu0 %v1336
        %1781 = vmatprep.subr.bf16.mxu0 %v1335
        %1782 = vmatpush1.bf16.msra.mxu0 %v1334
        %1783 = vmatprep.subr.bf16.mxu0 0
        %1784 = vmatpush2.bf16.msra.mxu0 0
        %1785 = vmatprep.subr.bf16.mxu0 0
        %1786 = vmatpush2.bf16.msra.mxu0 0
        %1787 = vmatprep.subr.bf16.mxu0 0
        %1788 = vmatpush2.bf16.msra.mxu0 0
        %1789 = vmatprep.subr.bf16.mxu0 0
        %1790 = vmatpush2.bf16.msra.mxu0 0
        %1791 = vmatprep.subr.bf16.mxu0 0
        %1792 = vmatpush2.bf16.msra.mxu0 0
        %1793 = vmatprep.subr.bf16.mxu0 0
        %1794 = vmatpush2.bf16.msra.mxu0 0
        %1795 = vmatprep.subr.bf16.mxu0 0
        %1796 = vmatpush2.bf16.msra.mxu0 0
        %1797 = vmatprep.subr.bf16.mxu0 0
        %1798 = vmatpush2.bf16.msra.mxu0 0
        %1799 = vmatprep.mubr.bf16.mxu0 0
        %1800 = vmatmul.mubr.bf16.gmra.mxu0 %v1735
        %v1801 = vpop.f32.mrf.mxu0
        %v1802 = vadd.f32 %v1514, %v1801
        %v1803 = vpop.f32.mrf.mxu0
        %v1804 = vadd.f32 %v1514, %v1803
        %v1805 = vpop.f32.mrf.mxu0
        %v1806 = vadd.f32 %v1519, %v1805
        %v1807 = vpop.f32.mrf.mxu0
        %v1808 = vadd.f32 %v1519, %v1807
        %1809 = vmatprep.mubr.bf16.mxu0 0
        %1810 = vmatmul.mubr.bf16.gmra.mxu0 %v1736
        %v1811 = vpop.f32.mrf.mxu0
        %v1812 = vadd.f32 %v1524, %v1811
        %v1813 = vpop.f32.mrf.mxu0
        %v1814 = vadd.f32 %v1524, %v1813
        %v1815 = vpop.f32.mrf.mxu0
        %v1816 = vadd.f32 %v1529, %v1815
        %v1817 = vpop.f32.mrf.mxu0
        %v1818 = vadd.f32 %v1529, %v1817
        %1819 = vmatprep.mubr.bf16.mxu0 0
        %1820 = vmatmul.mubr.bf16.gmra.mxu0 %v1737
        %v1821 = vpop.f32.mrf.mxu0
        %v1822 = vadd.f32 %v1534, %v1821
        %v1823 = vpop.f32.mrf.mxu0
        %v1824 = vadd.f32 %v1534, %v1823
        %v1825 = vpop.f32.mrf.mxu0
        %v1826 = vadd.f32 %v1539, %v1825
        %v1827 = vpop.f32.mrf.mxu0
        %v1828 = vadd.f32 %v1539, %v1827
        %1829 = vmatprep.mubr.bf16.mxu0 0
        %1830 = vmatmul.mubr.bf16.gmra.mxu0 %v1738
        %v1831 = vpop.f32.mrf.mxu0
        %v1832 = vadd.f32 %v1544, %v1831
        %v1833 = vpop.f32.mrf.mxu0
        %v1834 = vadd.f32 %v1544, %v1833
        %v1835 = vpop.f32.mrf.mxu0
        %v1836 = vadd.f32 %v1549, %v1835
        %v1837 = vpop.f32.mrf.mxu0
        %v1838 = vadd.f32 %v1549, %v1837
        %1839 = vmatprep.mubr.bf16.mxu0 0
        %1840 = vmatmul.mubr.bf16.gmra.mxu0 %v1739
        %v1841 = vpop.f32.mrf.mxu0
        %v1842 = vadd.f32 %v1554, %v1841
        %v1843 = vpop.f32.mrf.mxu0
        %v1844 = vadd.f32 %v1554, %v1843
        %v1845 = vpop.f32.mrf.mxu0
        %v1846 = vadd.f32 %v1559, %v1845
        %v1847 = vpop.f32.mrf.mxu0
        %v1848 = vadd.f32 %v1559, %v1847
        %1849 = vmatprep.mubr.bf16.mxu0 0
        %1850 = vmatmul.mubr.bf16.gmra.mxu0 %v1740
        %v1851 = vpop.f32.mrf.mxu0
        %v1852 = vadd.f32 %v1564, %v1851
        %v1853 = vpop.f32.mrf.mxu0
        %v1854 = vadd.f32 %v1564, %v1853
        %v1855 = vpop.f32.mrf.mxu0
        %v1856 = vadd.f32 %v1569, %v1855
        %v1857 = vpop.f32.mrf.mxu0
        %v1858 = vadd.f32 %v1569, %v1857
        %1859 = vmatprep.mubr.bf16.mxu0 0
        %1860 = vmatmul.mubr.bf16.gmra.mxu0 %v1741
        %v1861 = vpop.f32.mrf.mxu0
        %v1862 = vadd.f32 %v1574, %v1861
        %v1863 = vpop.f32.mrf.mxu0
        %v1864 = vadd.f32 %v1574, %v1863
        %v1865 = vpop.f32.mrf.mxu0
        %v1866 = vadd.f32 %v1579, %v1865
        %v1867 = vpop.f32.mrf.mxu0
        %v1868 = vadd.f32 %v1579, %v1867
        %1869 = vmatprep.mubr.bf16.mxu0 0
        %1870 = vmatmul.mubr.bf16.gmra.mxu0 %v1742
        %v1871 = vpop.f32.mrf.mxu0
        %v1872 = vadd.f32 %v1584, %v1871
        %v1873 = vpop.f32.mrf.mxu0
        %v1874 = vadd.f32 %v1584, %v1873
        %v1875 = vpop.f32.mrf.mxu0
        %v1876 = vadd.f32 %v1589, %v1875
        %v1877 = vpop.f32.mrf.mxu0
        %v1878 = vadd.f32 %v1589, %v1877
        %1879 = vmatprep.mubr.bf16.mxu0 0
        %1880 = vmatmul.mubr.bf16.gmra.mxu0 %v1743
        %v1881 = vpop.f32.mrf.mxu0
        %v1882 = vadd.f32 %v1594, %v1881
        %v1883 = vpop.f32.mrf.mxu0
        %v1884 = vadd.f32 %v1594, %v1883
        %v1885 = vpop.f32.mrf.mxu0
        %v1886 = vadd.f32 %v1599, %v1885
        %v1887 = vpop.f32.mrf.mxu0
        %v1888 = vadd.f32 %v1599, %v1887
        %1889 = vmatprep.mubr.bf16.mxu0 0
        %1890 = vmatmul.mubr.bf16.gmra.mxu0 %v1744
        %v1891 = vpop.f32.mrf.mxu0
        %v1892 = vadd.f32 %v1604, %v1891
        %v1893 = vpop.f32.mrf.mxu0
        %v1894 = vadd.f32 %v1604, %v1893
        %v1895 = vpop.f32.mrf.mxu0
        %v1896 = vadd.f32 %v1609, %v1895
        %v1897 = vpop.f32.mrf.mxu0
        %v1898 = vadd.f32 %v1609, %v1897
        %1899 = vmatprep.mubr.bf16.mxu0 0
        %1900 = vmatmul.mubr.bf16.gmra.mxu0 %v1745
        %v1901 = vpop.f32.mrf.mxu0
        %v1902 = vadd.f32 %v1614, %v1901
        %v1903 = vpop.f32.mrf.mxu0
        %v1904 = vadd.f32 %v1614, %v1903
        %v1905 = vpop.f32.mrf.mxu0
        %v1906 = vadd.f32 %v1619, %v1905
        %v1907 = vpop.f32.mrf.mxu0
        %v1908 = vadd.f32 %v1619, %v1907
        %1909 = vmatprep.mubr.bf16.mxu0 0
        %1910 = vmatmul.mubr.bf16.gmra.mxu0 %v1746
        %v1911 = vpop.f32.mrf.mxu0
        %v1912 = vadd.f32 %v1624, %v1911
        %v1913 = vpop.f32.mrf.mxu0
        %v1914 = vadd.f32 %v1624, %v1913
        %v1915 = vpop.f32.mrf.mxu0
        %v1916 = vadd.f32 %v1629, %v1915
        %v1917 = vpop.f32.mrf.mxu0
        %v1918 = vadd.f32 %v1629, %v1917
        %1919 = vmatprep.mubr.bf16.mxu0 0
        %1920 = vmatmul.mubr.bf16.gmra.mxu0 %v1747
        %v1921 = vpop.f32.mrf.mxu0
        %v1922 = vadd.f32 %v1634, %v1921
        %v1923 = vpop.f32.mrf.mxu0
        %v1924 = vadd.f32 %v1634, %v1923
        %v1925 = vpop.f32.mrf.mxu0
        %v1926 = vadd.f32 %v1639, %v1925
        %v1927 = vpop.f32.mrf.mxu0
        %v1928 = vadd.f32 %v1639, %v1927
        %1929 = vmatprep.mubr.bf16.mxu0 0
        %1930 = vmatmul.mubr.bf16.gmra.mxu0 %v1748
        %v1931 = vpop.f32.mrf.mxu0
        %v1932 = vadd.f32 %v1644, %v1931
        %v1933 = vpop.f32.mrf.mxu0
        %v1934 = vadd.f32 %v1644, %v1933
        %v1935 = vpop.f32.mrf.mxu0
        %v1936 = vadd.f32 %v1649, %v1935
        %v1937 = vpop.f32.mrf.mxu0
        %v1938 = vadd.f32 %v1649, %v1937
        %1939 = vmatprep.mubr.bf16.mxu0 0
        %1940 = vmatmul.mubr.bf16.gmra.mxu0 %v1749
        %v1941 = vpop.f32.mrf.mxu0
        %v1942 = vadd.f32 %v1654, %v1941
        %v1943 = vpop.f32.mrf.mxu0
        %v1944 = vadd.f32 %v1654, %v1943
        %v1945 = vpop.f32.mrf.mxu0
        %v1946 = vadd.f32 %v1659, %v1945
        %v1947 = vpop.f32.mrf.mxu0
        %v1948 = vadd.f32 %v1659, %v1947
        %1949 = vmatprep.mubr.bf16.mxu0 0
        %1950 = vmatmul.mubr.bf16.gmra.mxu0 %v1750
        %v1951 = vpop.f32.mrf.mxu0
        %v1952 = vadd.f32 %v1664, %v1951
        %v1953 = vpop.f32.mrf.mxu0
        %v1954 = vadd.f32 %v1664, %v1953
        %v1955 = vpop.f32.mrf.mxu0
        %v1956 = vadd.f32 %v1669, %v1955
        %v1957 = vpop.f32.mrf.mxu0
        %v1958 = vadd.f32 %v1669, %v1957
        %1959 = vdwg.mxu0
        %v1960 = vmax.f32 %v1802, 0.0
        %v1961 = vmax.f32 %v1804, 0.0
        %v1962 = vmax.f32 %v1806, 0.0
        %v1963 = vmax.f32 %v1808, 0.0
        %v1964 = vmax.f32 %v1812, 0.0
        %v1965 = vmax.f32 %v1814, 0.0
        %v1966 = vmax.f32 %v1816, 0.0
        %v1967 = vmax.f32 %v1818, 0.0
        %v1968 = vmax.f32 %v1822, 0.0
        %v1969 = vmax.f32 %v1824, 0.0
        %v1970 = vmax.f32 %v1826, 0.0
        %v1971 = vmax.f32 %v1828, 0.0
        %v1972 = vmax.f32 %v1832, 0.0
        %v1973 = vmax.f32 %v1834, 0.0
        %v1974 = vmax.f32 %v1836, 0.0
        %v1975 = vmax.f32 %v1838, 0.0
        %v1976 = vmax.f32 %v1842, 0.0
        %v1977 = vmax.f32 %v1844, 0.0
        %v1978 = vmax.f32 %v1846, 0.0
        %v1979 = vmax.f32 %v1848, 0.0
        %v1980 = vmax.f32 %v1852, 0.0
        %v1981 = vmax.f32 %v1854, 0.0
        %v1982 = vmax.f32 %v1856, 0.0
        %v1983 = vmax.f32 %v1858, 0.0
        %v1984 = vmax.f32 %v1862, 0.0
        %v1985 = vmax.f32 %v1864, 0.0
        %v1986 = vmax.f32 %v1866, 0.0
        %v1987 = vmax.f32 %v1868, 0.0
        %v1988 = vmax.f32 %v1872, 0.0
        %v1989 = vmax.f32 %v1874, 0.0
        %v1990 = vmax.f32 %v1876, 0.0
        %v1991 = vmax.f32 %v1878, 0.0
        %v1992 = vmax.f32 %v1882, 0.0
        %v1993 = vmax.f32 %v1884, 0.0
        %v1994 = vmax.f32 %v1886, 0.0
        %v1995 = vmax.f32 %v1888, 0.0
        %v1996 = vmax.f32 %v1892, 0.0
        %v1997 = vmax.f32 %v1894, 0.0
        %v1998 = vmax.f32 %v1896, 0.0
        %v1999 = vmax.f32 %v1898, 0.0
        %v2000 = vmax.f32 %v1902, 0.0
        %v2001 = vmax.f32 %v1904, 0.0
        %v2002 = vmax.f32 %v1906, 0.0
        %v2003 = vmax.f32 %v1908, 0.0
        %v2004 = vmax.f32 %v1912, 0.0
        %v2005 = vmax.f32 %v1914, 0.0
        %v2006 = vmax.f32 %v1916, 0.0
        %v2007 = vmax.f32 %v1918, 0.0
        %v2008 = vmax.f32 %v1922, 0.0
        %v2009 = vmax.f32 %v1924, 0.0
        %v2010 = vmax.f32 %v1926, 0.0
        %v2011 = vmax.f32 %v1928, 0.0
        %v2012 = vmax.f32 %v1932, 0.0
        %v2013 = vmax.f32 %v1934, 0.0
        %v2014 = vmax.f32 %v1936, 0.0
        %v2015 = vmax.f32 %v1938, 0.0
        %v2016 = vmax.f32 %v1942, 0.0
        %v2017 = vmax.f32 %v1944, 0.0
        %v2018 = vmax.f32 %v1946, 0.0
        %v2019 = vmax.f32 %v1948, 0.0
        %v2020 = vmax.f32 %v1952, 0.0
        %v2021 = vmax.f32 %v1954, 0.0
        %v2022 = vmax.f32 %v1956, 0.0
        %v2023 = vmax.f32 %v1958, 0.0
        %v2024 = vpack.c.bf16 %v1962, %v1960
        %v2025 = vpack.c.bf16 %v1963, %v1961
        %v2026 = vpack.c.bf16 %v1966, %v1964
        %v2027 = vpack.c.bf16 %v1967, %v1965
        %v2028 = vpack.c.bf16 %v1970, %v1968
        %v2029 = vpack.c.bf16 %v1971, %v1969
        %v2030 = vpack.c.bf16 %v1974, %v1972
        %v2031 = vpack.c.bf16 %v1975, %v1973
        %v2032 = vpack.c.bf16 %v1978, %v1976
        %v2033 = vpack.c.bf16 %v1979, %v1977
        %v2034 = vpack.c.bf16 %v1982, %v1980
        %v2035 = vpack.c.bf16 %v1983, %v1981
        %v2036 = vpack.c.bf16 %v1986, %v1984
        %v2037 = vpack.c.bf16 %v1987, %v1985
        %v2038 = vpack.c.bf16 %v1990, %v1988
        %v2039 = vpack.c.bf16 %v1991, %v1989
        %v2040 = vpack.c.bf16 %v1994, %v1992
        %v2041 = vpack.c.bf16 %v1995, %v1993
        %v2042 = vpack.c.bf16 %v1998, %v1996
        %v2043 = vpack.c.bf16 %v1999, %v1997
        %v2044 = vpack.c.bf16 %v2002, %v2000
        %v2045 = vpack.c.bf16 %v2003, %v2001
        %v2046 = vpack.c.bf16 %v2006, %v2004
        %v2047 = vpack.c.bf16 %v2007, %v2005
        %v2048 = vpack.c.bf16 %v2010, %v2008
        %v2049 = vpack.c.bf16 %v2011, %v2009
        %v2050 = vpack.c.bf16 %v2014, %v2012
        %v2051 = vpack.c.bf16 %v2015, %v2013
        %v2052 = vpack.c.bf16 %v2018, %v2016
        %v2053 = vpack.c.bf16 %v2019, %v2017
        %v2054 = vpack.c.bf16 %v2022, %v2020
        %v2055 = vpack.c.bf16 %v2023, %v2021
        %v2056 = vld [vmem:[%s5 + $0x80] sm:$0xf]
        %v2057 = vld [vmem:[%s5 + $0x84] sm:$0xf]
        %v2058 = vld [vmem:[%s5 + $0x88] sm:$0xf]
        %v2059 = vld [vmem:[%s5 + $0x8c] sm:$0xf]
        %v2060 = vld [vmem:[%s5 + $0x90] sm:$0xf]
        %v2061 = vld [vmem:[%s5 + $0x94] sm:$0xf]
        %v2062 = vld [vmem:[%s5 + $0x98] sm:$0xf]
        %v2063 = vld [vmem:[%s5 + $0x9c] sm:$0xf]
        %v2064 = vld [vmem:[%s5 + $0xa0] sm:$0xf]
        %v2065 = vld [vmem:[%s5 + $0xa4] sm:$0xf]
        %v2066 = vld [vmem:[%s5 + $0xa8] sm:$0xf]
        %v2067 = vld [vmem:[%s5 + $0xac] sm:$0xf]
        %v2068 = vld [vmem:[%s5 + $0xb0] sm:$0xf]
        %v2069 = vld [vmem:[%s5 + $0xb4] sm:$0xf]
        %v2070 = vld [vmem:[%s5 + $0xb8] sm:$0xf]
        %v2071 = vld [vmem:[%s5 + $0xbc] sm:$0xf]
        %v2072 = vld [vmem:[%s5 + $0xc0] sm:$0xf]
        %v2073 = vld [vmem:[%s5 + $0xc4] sm:$0xf]
        %v2074 = vld [vmem:[%s5 + $0xc8] sm:$0xf]
        %v2075 = vld [vmem:[%s5 + $0xcc] sm:$0xf]
        %v2076 = vld [vmem:[%s5 + $0xd0] sm:$0xf]
        %v2077 = vld [vmem:[%s5 + $0xd4] sm:$0xf]
        %v2078 = vld [vmem:[%s5 + $0xd8] sm:$0xf]
        %v2079 = vld [vmem:[%s5 + $0xdc] sm:$0xf]
        %v2080 = vld [vmem:[%s5 + $0xe0] sm:$0xf]
        %v2081 = vld [vmem:[%s5 + $0xe4] sm:$0xf]
        %v2082 = vld [vmem:[%s5 + $0xe8] sm:$0xf]
        %v2083 = vld [vmem:[%s5 + $0xec] sm:$0xf]
        %v2084 = vld [vmem:[%s5 + $0xf0] sm:$0xf]
        %v2085 = vld [vmem:[%s5 + $0xf4] sm:$0xf]
        %v2086 = vld [vmem:[%s5 + $0xf8] sm:$0xf]
        %v2087 = vld [vmem:[%s5 + $0xfc] sm:$0xf]
        %v2088 = vld [vmem:[%s6 + $0x100] sm:$0xff]
        %v2089 = vld [vmem:[%s6 + $0x108] sm:$0xff]
        %v2090 = vld [vmem:[%s6 + $0x110] sm:$0xff]
        %v2091 = vld [vmem:[%s6 + $0x118] sm:$0xff]
        %v2092 = vld [vmem:[%s6 + $0x120] sm:$0xff]
        %v2093 = vld [vmem:[%s6 + $0x128] sm:$0xff]
        %v2094 = vld [vmem:[%s6 + $0x130] sm:$0xff]
        %v2095 = vld [vmem:[%s6 + $0x138] sm:$0xff]
        %v2096 = vld [vmem:[%s6 + $0x140] sm:$0xff]
        %v2097 = vld [vmem:[%s6 + $0x148] sm:$0xff]
        %v2098 = vld [vmem:[%s6 + $0x150] sm:$0xff]
        %v2099 = vld [vmem:[%s6 + $0x158] sm:$0xff]
        %v2100 = vld [vmem:[%s6 + $0x160] sm:$0xff]
        %v2101 = vld [vmem:[%s6 + $0x168] sm:$0xff]
        %v2102 = vld [vmem:[%s6 + $0x170] sm:$0xff]
        %v2103 = vld [vmem:[%s6 + $0x178] sm:$0xff]
        %v2104 = vld [vmem:[%s6 + $0x180] sm:$0xff]
        %v2105 = vld [vmem:[%s6 + $0x188] sm:$0xff]
        %v2106 = vld [vmem:[%s6 + $0x190] sm:$0xff]
        %v2107 = vld [vmem:[%s6 + $0x198] sm:$0xff]
        %v2108 = vld [vmem:[%s6 + $0x1a0] sm:$0xff]
        %v2109 = vld [vmem:[%s6 + $0x1a8] sm:$0xff]
        %v2110 = vld [vmem:[%s6 + $0x1b0] sm:$0xff]
        %v2111 = vld [vmem:[%s6 + $0x1b8] sm:$0xff]
        %v2112 = vld [vmem:[%s6 + $0x1c0] sm:$0xff]
        %v2113 = vld [vmem:[%s6 + $0x1c8] sm:$0xff]
        %v2114 = vld [vmem:[%s6 + $0x1d0] sm:$0xff]
        %v2115 = vld [vmem:[%s6 + $0x1d8] sm:$0xff]
        %v2116 = vld [vmem:[%s6 + $0x1e0] sm:$0xff]
        %v2117 = vld [vmem:[%s6 + $0x1e8] sm:$0xff]
        %v2118 = vld [vmem:[%s6 + $0x1f0] sm:$0xff]
        %v2119 = vld [vmem:[%s6 + $0x1f8] sm:$0xff]
        %v2120 = vld [vmem:[%s7 + $0x2] sm:$0x3]
        %2122 = vset.pattern.permute.xlu0 0
        %2123 = vperm.xlu0 %2122, %v2088
        %v2124 = vpop.permute.xlu0 %2123
        %2127 = vset.pattern.permute.xlu0 0
        %2128 = vperm.xlu0 %2127, %v2089
        %v2129 = vpop.permute.xlu0 %2128
        %2132 = vset.pattern.permute.xlu0 0
        %2133 = vperm.xlu0 %2132, %v2090
        %v2134 = vpop.permute.xlu0 %2133
        %2137 = vset.pattern.permute.xlu0 0
        %2138 = vperm.xlu0 %2137, %v2091
        %v2139 = vpop.permute.xlu0 %2138
        %2142 = vset.pattern.permute.xlu0 0
        %2143 = vperm.xlu0 %2142, %v2092
        %v2144 = vpop.permute.xlu0 %2143
        %2147 = vset.pattern.permute.xlu0 0
        %2148 = vperm.xlu0 %2147, %v2093
        %v2149 = vpop.permute.xlu0 %2148
        %2152 = vset.pattern.permute.xlu0 0
        %2153 = vperm.xlu0 %2152, %v2094
        %v2154 = vpop.permute.xlu0 %2153
        %2157 = vset.pattern.permute.xlu0 0
        %2158 = vperm.xlu0 %2157, %v2095
        %v2159 = vpop.permute.xlu0 %2158
        %2162 = vset.pattern.permute.xlu0 0
        %2163 = vperm.xlu0 %2162, %v2096
        %v2164 = vpop.permute.xlu0 %2163
        %2167 = vset.pattern.permute.xlu0 0
        %2168 = vperm.xlu0 %2167, %v2097
        %v2169 = vpop.permute.xlu0 %2168
        %2172 = vset.pattern.permute.xlu0 0
        %2173 = vperm.xlu0 %2172, %v2098
        %v2174 = vpop.permute.xlu0 %2173
        %2177 = vset.pattern.permute.xlu0 0
        %2178 = vperm.xlu0 %2177, %v2099
        %v2179 = vpop.permute.xlu0 %2178
        %2182 = vset.pattern.permute.xlu0 0
        %2183 = vperm.xlu0 %2182, %v2100
        %v2184 = vpop.permute.xlu0 %2183
        %2187 = vset.pattern.permute.xlu0 0
        %2188 = vperm.xlu0 %2187, %v2101
        %v2189 = vpop.permute.xlu0 %2188
        %2192 = vset.pattern.permute.xlu0 0
        %2193 = vperm.xlu0 %2192, %v2102
        %v2194 = vpop.permute.xlu0 %2193
        %2197 = vset.pattern.permute.xlu0 0
        %2198 = vperm.xlu0 %2197, %v2103
        %v2199 = vpop.permute.xlu0 %2198
        %2202 = vset.pattern.permute.xlu0 0
        %2203 = vperm.xlu0 %2202, %v2104
        %v2204 = vpop.permute.xlu0 %2203
        %2207 = vset.pattern.permute.xlu0 0
        %2208 = vperm.xlu0 %2207, %v2105
        %v2209 = vpop.permute.xlu0 %2208
        %2212 = vset.pattern.permute.xlu0 0
        %2213 = vperm.xlu0 %2212, %v2106
        %v2214 = vpop.permute.xlu0 %2213
        %2217 = vset.pattern.permute.xlu0 0
        %2218 = vperm.xlu0 %2217, %v2107
        %v2219 = vpop.permute.xlu0 %2218
        %2222 = vset.pattern.permute.xlu0 0
        %2223 = vperm.xlu0 %2222, %v2108
        %v2224 = vpop.permute.xlu0 %2223
        %2227 = vset.pattern.permute.xlu0 0
        %2228 = vperm.xlu0 %2227, %v2109
        %v2229 = vpop.permute.xlu0 %2228
        %2232 = vset.pattern.permute.xlu0 0
        %2233 = vperm.xlu0 %2232, %v2110
        %v2234 = vpop.permute.xlu0 %2233
        %2237 = vset.pattern.permute.xlu0 0
        %2238 = vperm.xlu0 %2237, %v2111
        %v2239 = vpop.permute.xlu0 %2238
        %2242 = vset.pattern.permute.xlu0 0
        %2243 = vperm.xlu0 %2242, %v2112
        %v2244 = vpop.permute.xlu0 %2243
        %2247 = vset.pattern.permute.xlu0 0
        %2248 = vperm.xlu0 %2247, %v2113
        %v2249 = vpop.permute.xlu0 %2248
        %2252 = vset.pattern.permute.xlu0 0
        %2253 = vperm.xlu0 %2252, %v2114
        %v2254 = vpop.permute.xlu0 %2253
        %2257 = vset.pattern.permute.xlu0 0
        %2258 = vperm.xlu0 %2257, %v2115
        %v2259 = vpop.permute.xlu0 %2258
        %2262 = vset.pattern.permute.xlu0 0
        %2263 = vperm.xlu0 %2262, %v2116
        %v2264 = vpop.permute.xlu0 %2263
        %2267 = vset.pattern.permute.xlu0 0
        %2268 = vperm.xlu0 %2267, %v2117
        %v2269 = vpop.permute.xlu0 %2268
        %2272 = vset.pattern.permute.xlu0 0
        %2273 = vperm.xlu0 %2272, %v2118
        %v2274 = vpop.permute.xlu0 %2273
        %2277 = vset.pattern.permute.xlu0 0
        %2278 = vperm.xlu0 %2277, %v2119
        %v2279 = vpop.permute.xlu0 %2278
        %v2313 = vunpack.c.l.b16 %v2056
        %v2314 = vunpack.c.l.b16 %v2057
        %v2315 = vunpack.c.l.b16 %v2058
        %v2316 = vunpack.c.l.b16 %v2059
        %v2317 = vunpack.c.l.b16 %v2060
        %v2318 = vunpack.c.l.b16 %v2061
        %v2319 = vunpack.c.l.b16 %v2062
        %v2320 = vunpack.c.l.b16 %v2063
        %v2321 = vunpack.c.l.b16 %v2064
        %v2322 = vunpack.c.l.b16 %v2065
        %v2323 = vunpack.c.l.b16 %v2066
        %v2324 = vunpack.c.l.b16 %v2067
        %v2325 = vunpack.c.l.b16 %v2068
        %v2326 = vunpack.c.l.b16 %v2069
        %v2327 = vunpack.c.l.b16 %v2070
        %v2328 = vunpack.c.l.b16 %v2071
        %v2329 = vunpack.c.l.b16 %v2072
        %v2330 = vunpack.c.l.b16 %v2073
        %v2331 = vunpack.c.l.b16 %v2074
        %v2332 = vunpack.c.l.b16 %v2075
        %v2333 = vunpack.c.l.b16 %v2076
        %v2334 = vunpack.c.l.b16 %v2077
        %v2335 = vunpack.c.l.b16 %v2078
        %v2336 = vunpack.c.l.b16 %v2079
        %v2337 = vunpack.c.l.b16 %v2080
        %v2338 = vunpack.c.l.b16 %v2081
        %v2339 = vunpack.c.l.b16 %v2082
        %v2340 = vunpack.c.l.b16 %v2083
        %v2341 = vunpack.c.l.b16 %v2084
        %v2342 = vunpack.c.l.b16 %v2085
        %v2343 = vunpack.c.l.b16 %v2086
        %v2344 = vunpack.c.l.b16 %v2087
        %v2345 = vpack.c.b16 %v2314, %v2313
        %v2346 = vpack.c.b16 %v2316, %v2315
        %v2347 = vpack.c.b16 %v2318, %v2317
        %v2348 = vpack.c.b16 %v2320, %v2319
        %v2349 = vpack.c.b16 %v2322, %v2321
        %v2350 = vpack.c.b16 %v2324, %v2323
        %v2351 = vpack.c.b16 %v2326, %v2325
        %v2352 = vpack.c.b16 %v2328, %v2327
        %v2353 = vpack.c.b16 %v2330, %v2329
        %v2354 = vpack.c.b16 %v2332, %v2331
        %v2355 = vpack.c.b16 %v2334, %v2333
        %v2356 = vpack.c.b16 %v2336, %v2335
        %v2357 = vpack.c.b16 %v2338, %v2337
        %v2358 = vpack.c.b16 %v2340, %v2339
        %v2359 = vpack.c.b16 %v2342, %v2341
        %v2360 = vpack.c.b16 %v2344, %v2343
        %2377 = vmatprep.subr.bf16.mxu0 %v1349
        %2378 = vmatpush1.bf16.msra.mxu0 %v1348
        %2379 = vmatprep.subr.bf16.mxu0 %v1347
        %2380 = vmatpush1.bf16.msra.mxu0 %v1346
        %2381 = vmatprep.subr.bf16.mxu0 %v1345
        %2382 = vmatpush1.bf16.msra.mxu0 %v1344
        %2383 = vmatprep.subr.bf16.mxu0 %v1343
        %2384 = vmatpush1.bf16.msra.mxu0 %v1342
        %2385 = vmatprep.subr.bf16.mxu0 %v1341
        %2386 = vmatpush1.bf16.msra.mxu0 %v1340
        %2387 = vmatprep.subr.bf16.mxu0 %v1339
        %2388 = vmatpush1.bf16.msra.mxu0 %v1338
        %2389 = vmatprep.subr.bf16.mxu0 %v1337
        %2390 = vmatpush1.bf16.msra.mxu0 %v1336
        %2391 = vmatprep.subr.bf16.mxu0 %v1335
        %2392 = vmatpush1.bf16.msra.mxu0 %v1334
        %2393 = vmatprep.subr.bf16.mxu0 0
        %2394 = vmatpush2.bf16.msra.mxu0 0
        %2395 = vmatprep.subr.bf16.mxu0 0
        %2396 = vmatpush2.bf16.msra.mxu0 0
        %2397 = vmatprep.subr.bf16.mxu0 0
        %2398 = vmatpush2.bf16.msra.mxu0 0
        %2399 = vmatprep.subr.bf16.mxu0 0
        %2400 = vmatpush2.bf16.msra.mxu0 0
        %2401 = vmatprep.subr.bf16.mxu0 0
        %2402 = vmatpush2.bf16.msra.mxu0 0
        %2403 = vmatprep.subr.bf16.mxu0 0
        %2404 = vmatpush2.bf16.msra.mxu0 0
        %2405 = vmatprep.subr.bf16.mxu0 0
        %2406 = vmatpush2.bf16.msra.mxu0 0
        %2407 = vmatprep.subr.bf16.mxu0 0
        %2408 = vmatpush2.bf16.msra.mxu0 0
        %2409 = vmatprep.mubr.bf16.mxu0 0
        %2410 = vmatmul.mubr.bf16.gmra.mxu0 %v2345
        %v2411 = vpop.f32.mrf.mxu0
        %v2412 = vadd.f32 %v2124, %v2411
        %v2413 = vpop.f32.mrf.mxu0
        %v2414 = vadd.f32 %v2124, %v2413
        %v2415 = vpop.f32.mrf.mxu0
        %v2416 = vadd.f32 %v2129, %v2415
        %v2417 = vpop.f32.mrf.mxu0
        %v2418 = vadd.f32 %v2129, %v2417
        %2419 = vmatprep.mubr.bf16.mxu0 0
        %2420 = vmatmul.mubr.bf16.gmra.mxu0 %v2346
        %v2421 = vpop.f32.mrf.mxu0
        %v2422 = vadd.f32 %v2134, %v2421
        %v2423 = vpop.f32.mrf.mxu0
        %v2424 = vadd.f32 %v2134, %v2423
        %v2425 = vpop.f32.mrf.mxu0
        %v2426 = vadd.f32 %v2139, %v2425
        %v2427 = vpop.f32.mrf.mxu0
        %v2428 = vadd.f32 %v2139, %v2427
        %2429 = vmatprep.mubr.bf16.mxu0 0
        %2430 = vmatmul.mubr.bf16.gmra.mxu0 %v2347
        %v2431 = vpop.f32.mrf.mxu0
        %v2432 = vadd.f32 %v2144, %v2431
        %v2433 = vpop.f32.mrf.mxu0
        %v2434 = vadd.f32 %v2144, %v2433
        %v2435 = vpop.f32.mrf.mxu0
        %v2436 = vadd.f32 %v2149, %v2435
        %v2437 = vpop.f32.mrf.mxu0
        %v2438 = vadd.f32 %v2149, %v2437
        %2439 = vmatprep.mubr.bf16.mxu0 0
        %2440 = vmatmul.mubr.bf16.gmra.mxu0 %v2348
        %v2441 = vpop.f32.mrf.mxu0
        %v2442 = vadd.f32 %v2154, %v2441
        %v2443 = vpop.f32.mrf.mxu0
        %v2444 = vadd.f32 %v2154, %v2443
        %v2445 = vpop.f32.mrf.mxu0
        %v2446 = vadd.f32 %v2159, %v2445
        %v2447 = vpop.f32.mrf.mxu0
        %v2448 = vadd.f32 %v2159, %v2447
        %2449 = vmatprep.mubr.bf16.mxu0 0
        %2450 = vmatmul.mubr.bf16.gmra.mxu0 %v2349
        %v2451 = vpop.f32.mrf.mxu0
        %v2452 = vadd.f32 %v2164, %v2451
        %v2453 = vpop.f32.mrf.mxu0
        %v2454 = vadd.f32 %v2164, %v2453
        %v2455 = vpop.f32.mrf.mxu0
        %v2456 = vadd.f32 %v2169, %v2455
        %v2457 = vpop.f32.mrf.mxu0
        %v2458 = vadd.f32 %v2169, %v2457
        %2459 = vmatprep.mubr.bf16.mxu0 0
        %2460 = vmatmul.mubr.bf16.gmra.mxu0 %v2350
        %v2461 = vpop.f32.mrf.mxu0
        %v2462 = vadd.f32 %v2174, %v2461
        %v2463 = vpop.f32.mrf.mxu0
        %v2464 = vadd.f32 %v2174, %v2463
        %v2465 = vpop.f32.mrf.mxu0
        %v2466 = vadd.f32 %v2179, %v2465
        %v2467 = vpop.f32.mrf.mxu0
        %v2468 = vadd.f32 %v2179, %v2467
        %2469 = vmatprep.mubr.bf16.mxu0 0
        %2470 = vmatmul.mubr.bf16.gmra.mxu0 %v2351
        %v2471 = vpop.f32.mrf.mxu0
        %v2472 = vadd.f32 %v2184, %v2471
        %v2473 = vpop.f32.mrf.mxu0
        %v2474 = vadd.f32 %v2184, %v2473
        %v2475 = vpop.f32.mrf.mxu0
        %v2476 = vadd.f32 %v2189, %v2475
        %v2477 = vpop.f32.mrf.mxu0
        %v2478 = vadd.f32 %v2189, %v2477
        %2479 = vmatprep.mubr.bf16.mxu0 0
        %2480 = vmatmul.mubr.bf16.gmra.mxu0 %v2352
        %v2481 = vpop.f32.mrf.mxu0
        %v2482 = vadd.f32 %v2194, %v2481
        %v2483 = vpop.f32.mrf.mxu0
        %v2484 = vadd.f32 %v2194, %v2483
        %v2485 = vpop.f32.mrf.mxu0
        %v2486 = vadd.f32 %v2199, %v2485
        %v2487 = vpop.f32.mrf.mxu0
        %v2488 = vadd.f32 %v2199, %v2487
        %2489 = vmatprep.mubr.bf16.mxu0 0
        %2490 = vmatmul.mubr.bf16.gmra.mxu0 %v2353
        %v2491 = vpop.f32.mrf.mxu0
        %v2492 = vadd.f32 %v2204, %v2491
        %v2493 = vpop.f32.mrf.mxu0
        %v2494 = vadd.f32 %v2204, %v2493
        %v2495 = vpop.f32.mrf.mxu0
        %v2496 = vadd.f32 %v2209, %v2495
        %v2497 = vpop.f32.mrf.mxu0
        %v2498 = vadd.f32 %v2209, %v2497
        %2499 = vmatprep.mubr.bf16.mxu0 0
        %2500 = vmatmul.mubr.bf16.gmra.mxu0 %v2354
        %v2501 = vpop.f32.mrf.mxu0
        %v2502 = vadd.f32 %v2214, %v2501
        %v2503 = vpop.f32.mrf.mxu0
        %v2504 = vadd.f32 %v2214, %v2503
        %v2505 = vpop.f32.mrf.mxu0
        %v2506 = vadd.f32 %v2219, %v2505
        %v2507 = vpop.f32.mrf.mxu0
        %v2508 = vadd.f32 %v2219, %v2507
        %2509 = vmatprep.mubr.bf16.mxu0 0
        %2510 = vmatmul.mubr.bf16.gmra.mxu0 %v2355
        %v2511 = vpop.f32.mrf.mxu0
        %v2512 = vadd.f32 %v2224, %v2511
        %v2513 = vpop.f32.mrf.mxu0
        %v2514 = vadd.f32 %v2224, %v2513
        %v2515 = vpop.f32.mrf.mxu0
        %v2516 = vadd.f32 %v2229, %v2515
        %v2517 = vpop.f32.mrf.mxu0
        %v2518 = vadd.f32 %v2229, %v2517
        %2519 = vmatprep.mubr.bf16.mxu0 0
        %2520 = vmatmul.mubr.bf16.gmra.mxu0 %v2356
        %v2521 = vpop.f32.mrf.mxu0
        %v2522 = vadd.f32 %v2234, %v2521
        %v2523 = vpop.f32.mrf.mxu0
        %v2524 = vadd.f32 %v2234, %v2523
        %v2525 = vpop.f32.mrf.mxu0
        %v2526 = vadd.f32 %v2239, %v2525
        %v2527 = vpop.f32.mrf.mxu0
        %v2528 = vadd.f32 %v2239, %v2527
        %2529 = vmatprep.mubr.bf16.mxu0 0
        %2530 = vmatmul.mubr.bf16.gmra.mxu0 %v2357
        %v2531 = vpop.f32.mrf.mxu0
        %v2532 = vadd.f32 %v2244, %v2531
        %v2533 = vpop.f32.mrf.mxu0
        %v2534 = vadd.f32 %v2244, %v2533
        %v2535 = vpop.f32.mrf.mxu0
        %v2536 = vadd.f32 %v2249, %v2535
        %v2537 = vpop.f32.mrf.mxu0
        %v2538 = vadd.f32 %v2249, %v2537
        %2539 = vmatprep.mubr.bf16.mxu0 0
        %2540 = vmatmul.mubr.bf16.gmra.mxu0 %v2358
        %v2541 = vpop.f32.mrf.mxu0
        %v2542 = vadd.f32 %v2254, %v2541
        %v2543 = vpop.f32.mrf.mxu0
        %v2544 = vadd.f32 %v2254, %v2543
        %v2545 = vpop.f32.mrf.mxu0
        %v2546 = vadd.f32 %v2259, %v2545
        %v2547 = vpop.f32.mrf.mxu0
        %v2548 = vadd.f32 %v2259, %v2547
        %2549 = vmatprep.mubr.bf16.mxu0 0
        %2550 = vmatmul.mubr.bf16.gmra.mxu0 %v2359
        %v2551 = vpop.f32.mrf.mxu0
        %v2552 = vadd.f32 %v2264, %v2551
        %v2553 = vpop.f32.mrf.mxu0
        %v2554 = vadd.f32 %v2264, %v2553
        %v2555 = vpop.f32.mrf.mxu0
        %v2556 = vadd.f32 %v2269, %v2555
        %v2557 = vpop.f32.mrf.mxu0
        %v2558 = vadd.f32 %v2269, %v2557
        %2559 = vmatprep.mubr.bf16.mxu0 0
        %2560 = vmatmul.mubr.bf16.gmra.mxu0 %v2360
        %v2561 = vpop.f32.mrf.mxu0
        %v2562 = vadd.f32 %v2274, %v2561
        %v2563 = vpop.f32.mrf.mxu0
        %v2564 = vadd.f32 %v2274, %v2563
        %v2565 = vpop.f32.mrf.mxu0
        %v2566 = vadd.f32 %v2279, %v2565
        %v2567 = vpop.f32.mrf.mxu0
        %v2568 = vadd.f32 %v2279, %v2567
        %2569 = vdwg.mxu0
        %v2570 = vmax.f32 %v2412, 0.0
        %v2571 = vmax.f32 %v2414, 0.0
        %v2572 = vmax.f32 %v2416, 0.0
        %v2573 = vmax.f32 %v2418, 0.0
        %v2574 = vmax.f32 %v2422, 0.0
        %v2575 = vmax.f32 %v2424, 0.0
        %v2576 = vmax.f32 %v2426, 0.0
        %v2577 = vmax.f32 %v2428, 0.0
        %v2578 = vmax.f32 %v2432, 0.0
        %v2579 = vmax.f32 %v2434, 0.0
        %v2580 = vmax.f32 %v2436, 0.0
        %v2581 = vmax.f32 %v2438, 0.0
        %v2582 = vmax.f32 %v2442, 0.0
        %v2583 = vmax.f32 %v2444, 0.0
        %v2584 = vmax.f32 %v2446, 0.0
        %v2585 = vmax.f32 %v2448, 0.0
        %v2586 = vmax.f32 %v2452, 0.0
        %v2587 = vmax.f32 %v2454, 0.0
        %v2588 = vmax.f32 %v2456, 0.0
        %v2589 = vmax.f32 %v2458, 0.0
        %v2590 = vmax.f32 %v2462, 0.0
        %v2591 = vmax.f32 %v2464, 0.0
        %v2592 = vmax.f32 %v2466, 0.0
        %v2593 = vmax.f32 %v2468, 0.0
        %v2594 = vmax.f32 %v2472, 0.0
        %v2595 = vmax.f32 %v2474, 0.0
        %v2596 = vmax.f32 %v2476, 0.0
        %v2597 = vmax.f32 %v2478, 0.0
        %v2598 = vmax.f32 %v2482, 0.0
        %v2599 = vmax.f32 %v2484, 0.0
        %v2600 = vmax.f32 %v2486, 0.0
        %v2601 = vmax.f32 %v2488, 0.0
        %v2602 = vmax.f32 %v2492, 0.0
        %v2603 = vmax.f32 %v2494, 0.0
        %v2604 = vmax.f32 %v2496, 0.0
        %v2605 = vmax.f32 %v2498, 0.0
        %v2606 = vmax.f32 %v2502, 0.0
        %v2607 = vmax.f32 %v2504, 0.0
        %v2608 = vmax.f32 %v2506, 0.0
        %v2609 = vmax.f32 %v2508, 0.0
        %v2610 = vmax.f32 %v2512, 0.0
        %v2611 = vmax.f32 %v2514, 0.0
        %v2612 = vmax.f32 %v2516, 0.0
        %v2613 = vmax.f32 %v2518, 0.0
        %v2614 = vmax.f32 %v2522, 0.0
        %v2615 = vmax.f32 %v2524, 0.0
        %v2616 = vmax.f32 %v2526, 0.0
        %v2617 = vmax.f32 %v2528, 0.0
        %v2618 = vmax.f32 %v2532, 0.0
        %v2619 = vmax.f32 %v2534, 0.0
        %v2620 = vmax.f32 %v2536, 0.0
        %v2621 = vmax.f32 %v2538, 0.0
        %v2622 = vmax.f32 %v2542, 0.0
        %v2623 = vmax.f32 %v2544, 0.0
        %v2624 = vmax.f32 %v2546, 0.0
        %v2625 = vmax.f32 %v2548, 0.0
        %v2626 = vmax.f32 %v2552, 0.0
        %v2627 = vmax.f32 %v2554, 0.0
        %v2628 = vmax.f32 %v2556, 0.0
        %v2629 = vmax.f32 %v2558, 0.0
        %v2630 = vmax.f32 %v2562, 0.0
        %v2631 = vmax.f32 %v2564, 0.0
        %v2632 = vmax.f32 %v2566, 0.0
        %v2633 = vmax.f32 %v2568, 0.0
        %v2634 = vpack.c.bf16 %v2572, %v2570
        %v2635 = vpack.c.bf16 %v2573, %v2571
        %v2636 = vpack.c.bf16 %v2576, %v2574
        %v2637 = vpack.c.bf16 %v2577, %v2575
        %v2638 = vpack.c.bf16 %v2580, %v2578
        %v2639 = vpack.c.bf16 %v2581, %v2579
        %v2640 = vpack.c.bf16 %v2584, %v2582
        %v2641 = vpack.c.bf16 %v2585, %v2583
        %v2642 = vpack.c.bf16 %v2588, %v2586
        %v2643 = vpack.c.bf16 %v2589, %v2587
        %v2644 = vpack.c.bf16 %v2592, %v2590
        %v2645 = vpack.c.bf16 %v2593, %v2591
        %v2646 = vpack.c.bf16 %v2596, %v2594
        %v2647 = vpack.c.bf16 %v2597, %v2595
        %v2648 = vpack.c.bf16 %v2600, %v2598
        %v2649 = vpack.c.bf16 %v2601, %v2599
        %v2650 = vpack.c.bf16 %v2604, %v2602
        %v2651 = vpack.c.bf16 %v2605, %v2603
        %v2652 = vpack.c.bf16 %v2608, %v2606
        %v2653 = vpack.c.bf16 %v2609, %v2607
        %v2654 = vpack.c.bf16 %v2612, %v2610
        %v2655 = vpack.c.bf16 %v2613, %v2611
        %v2656 = vpack.c.bf16 %v2616, %v2614
        %v2657 = vpack.c.bf16 %v2617, %v2615
        %v2658 = vpack.c.bf16 %v2620, %v2618
        %v2659 = vpack.c.bf16 %v2621, %v2619
        %v2660 = vpack.c.bf16 %v2624, %v2622
        %v2661 = vpack.c.bf16 %v2625, %v2623
        %v2662 = vpack.c.bf16 %v2628, %v2626
        %v2663 = vpack.c.bf16 %v2629, %v2627
        %v2664 = vpack.c.bf16 %v2632, %v2630
        %v2665 = vpack.c.bf16 %v2633, %v2631
        %v2668 = vunpack.c.l.s4 1966171168
        %v2669 = vunpack.c.0.s8 %v2668
        %v2670 = vlaneseq
        %v2671 = vshrl.u32 %v2670, 7
        %v2672 = vsub.s32 %v2669, %v2671
        %v2673 = vrot.slane %v2120, %v2672
        %v2674 = vcombine.high %v2673, %v2673
        %v2676 = vunpack.c.l.s4 1966171168
        %v2677 = vunpack.c.0.s8 %v2676
        %v2678 = vlaneseq
        %v2679 = vshrl.u32 %v2678, 7
        %v2680 = vsub.s32 %v2677, %v2679
        %v2681 = vrot.slane %v2673, %v2680
        %v2683 = vunpack.c.l.s4 1966171168
        %v2684 = vunpack.c.0.s8 %v2683
        %v2685 = vlaneseq
        %v2686 = vshrl.u32 %v2685, 7
        %v2687 = vsub.s32 %v2684, %v2686
        %v2688 = vrot.slane %v2674, %v2687
        %2691 = vmatprep.subr.bf16.mxu0 %v2649
        %2692 = vmatpush1.bf16.msra.mxu0 %v2648
        %2693 = vmatprep.subr.bf16.mxu0 %v2647
        %2694 = vmatpush1.bf16.msra.mxu0 %v2646
        %2695 = vmatprep.subr.bf16.mxu0 %v2645
        %2696 = vmatpush1.bf16.msra.mxu0 %v2644
        %2697 = vmatprep.subr.bf16.mxu0 %v2643
        %2698 = vmatpush1.bf16.msra.mxu0 %v2642
        %2699 = vmatprep.subr.bf16.mxu0 %v2641
        %2700 = vmatpush1.bf16.msra.mxu0 %v2640
        %2701 = vmatprep.subr.bf16.mxu0 %v2639
        %2702 = vmatpush1.bf16.msra.mxu0 %v2638
        %2703 = vmatprep.subr.bf16.mxu0 %v2637
        %2704 = vmatpush1.bf16.msra.mxu0 %v2636
        %2705 = vmatprep.subr.bf16.mxu0 %v2635
        %2706 = vmatpush1.bf16.msra.mxu0 %v2634
        %2707 = vmatprep.subr.bf16.mxu0 %v2665
        %2708 = vmatpush2.bf16.msra.mxu0 %v2664
        %2709 = vmatprep.subr.bf16.mxu0 %v2663
        %2710 = vmatpush2.bf16.msra.mxu0 %v2662
        %2711 = vmatprep.subr.bf16.mxu0 %v2661
        %2712 = vmatpush2.bf16.msra.mxu0 %v2660
        %2713 = vmatprep.subr.bf16.mxu0 %v2659
        %2714 = vmatpush2.bf16.msra.mxu0 %v2658
        %2715 = vmatprep.subr.bf16.mxu0 %v2657
        %2716 = vmatpush2.bf16.msra.mxu0 %v2656
        %2717 = vmatprep.subr.bf16.mxu0 %v2655
        %2718 = vmatpush2.bf16.msra.mxu0 %v2654
        %2719 = vmatprep.subr.bf16.mxu0 %v2653
        %2720 = vmatpush2.bf16.msra.mxu0 %v2652
        %2721 = vmatprep.subr.bf16.mxu0 %v2651
        %2722 = vmatpush2.bf16.msra.mxu0 %v2650
        %2723 = vmatprep.mubr.bf16.mxu0 %v2688
        %2724 = vmatmul.mubr.bf16.gmra.mxu0 %v2681
        %v2725 = vpop.f32.mrf.mxu0
        %v2726 = vadd.f32 0.0, %v2725
        %v2727 = vpop.f32.mrf.mxu0
        %v2728 = vadd.f32 0.0, %v2727
        %v2729 = vpop.f32.mrf.mxu0
        %v2730 = vpop.f32.mrf.mxu0
        %2731 = vdwg.mxu0
        %v2734 = vunpack.c.l.s4 1966171168
        %v2735 = vunpack.c.0.s8 %v2734
        %v2736 = vlaneseq
        %v2737 = vshrl.u32 %v2736, 7
        %v2738 = vsub.s32 %v2735, %v2737
        %v2739 = vrot.slane %v1510, %v2738
        %v2740 = vcombine.high %v2739, %v2739
        %v2742 = vunpack.c.l.s4 1966171168
        %v2743 = vunpack.c.0.s8 %v2742
        %v2744 = vlaneseq
        %v2745 = vshrl.u32 %v2744, 7
        %v2746 = vsub.s32 %v2743, %v2745
        %v2747 = vrot.slane %v2739, %v2746
        %v2749 = vunpack.c.l.s4 1966171168
        %v2750 = vunpack.c.0.s8 %v2749
        %v2751 = vlaneseq
        %v2752 = vshrl.u32 %v2751, 7
        %v2753 = vsub.s32 %v2750, %v2752
        %v2754 = vrot.slane %v2740, %v2753
        %2757 = vmatprep.subr.bf16.mxu0 %v2039
        %2758 = vmatpush1.bf16.msra.mxu0 %v2038
        %2759 = vmatprep.subr.bf16.mxu0 %v2037
        %2760 = vmatpush1.bf16.msra.mxu0 %v2036
        %2761 = vmatprep.subr.bf16.mxu0 %v2035
        %2762 = vmatpush1.bf16.msra.mxu0 %v2034
        %2763 = vmatprep.subr.bf16.mxu0 %v2033
        %2764 = vmatpush1.bf16.msra.mxu0 %v2032
        %2765 = vmatprep.subr.bf16.mxu0 %v2031
        %2766 = vmatpush1.bf16.msra.mxu0 %v2030
        %2767 = vmatprep.subr.bf16.mxu0 %v2029
        %2768 = vmatpush1.bf16.msra.mxu0 %v2028
        %2769 = vmatprep.subr.bf16.mxu0 %v2027
        %2770 = vmatpush1.bf16.msra.mxu0 %v2026
        %2771 = vmatprep.subr.bf16.mxu0 %v2025
        %2772 = vmatpush1.bf16.msra.mxu0 %v2024
        %2773 = vmatprep.subr.bf16.mxu0 %v2055
        %2774 = vmatpush2.bf16.msra.mxu0 %v2054
        %2775 = vmatprep.subr.bf16.mxu0 %v2053
        %2776 = vmatpush2.bf16.msra.mxu0 %v2052
        %2777 = vmatprep.subr.bf16.mxu0 %v2051
        %2778 = vmatpush2.bf16.msra.mxu0 %v2050
        %2779 = vmatprep.subr.bf16.mxu0 %v2049
        %2780 = vmatpush2.bf16.msra.mxu0 %v2048
        %2781 = vmatprep.subr.bf16.mxu0 %v2047
        %2782 = vmatpush2.bf16.msra.mxu0 %v2046
        %2783 = vmatprep.subr.bf16.mxu0 %v2045
        %2784 = vmatpush2.bf16.msra.mxu0 %v2044
        %2785 = vmatprep.subr.bf16.mxu0 %v2043
        %2786 = vmatpush2.bf16.msra.mxu0 %v2042
        %2787 = vmatprep.subr.bf16.mxu0 %v2041
        %2788 = vmatpush2.bf16.msra.mxu0 %v2040
        %2789 = vmatprep.mubr.bf16.mxu0 %v2754
        %2790 = vmatmul.mubr.bf16.gmra.mxu0 %v2747
        %v2791 = vpop.f32.mrf.mxu0
        %v2792 = vadd.f32 %v2726, %v2791
        %v2793 = vpop.f32.mrf.mxu0
        %v2794 = vadd.f32 %v2728, %v2793
        %v2795 = vpop.f32.mrf.mxu0
        %v2796 = vpop.f32.mrf.mxu0
        %2797 = vdwg.mxu0
        %v2798 = vld [vmem:[#allocation3] sm:$0x1]
        %2800 = vset.pattern.permute.xlu0 0
        %2801 = vperm.xlu0 %2800, %v2798
        %v2802 = vpop.permute.xlu0 %2801
        %v2804 = vlaneseq
        %v2805 = vshrl.u32 %v2804, 7
        %v2806 = vsub.s32 0, %v2805
        %v2807 = vrot.slane %v2802, %v2806
        %v2808 = vadd.f32 %v2792, %v2807
        %v2809 = vadd.f32 %v2794, %v2807
        %v2810 = vmax.f32 %v2808, 0.0
        %v2811 = vmax.f32 %v2809, 0.0
        %v2812 = vand.u32 2147483647, %v2808
        %v2813 = vand.u32 2147483647, %v2809
        %v2814 = vsub.f32 0.0, %v2812
        %v2815 = vsub.f32 0.0, %v2813
        %v2816 = vmul.f32 %v2814, 1.442695
        %v2817 = vpow.pop %v2816
        %v2818 = vmul.f32 %v2815, 1.442695
        %v2819 = vpow.pop %v2818
        %v2820 = vadd.f32 %v2817, 1.0
        %v2821 = vadd.f32 %v2819, 1.0
        %v2822 = vlog2.pop %v2820
        %v2823 = vmul.f32 %v2822, 0.6931472
        %v2824 = vlog2.pop %v2821
        %v2825 = vmul.f32 %v2824, 0.6931472
        %v2826 = vadd.f32 %v2810, %v2823
        %v2827 = vadd.f32 %v2811, %v2825
        %v2830 = vcombine.low %v2826, %v2827
        %v2832 = vunpack.c.l.s4 1966171168
        %v2833 = vunpack.c.0.s8 %v2832
        %v2834 = vlaneseq
        %v2835 = vshrl.u32 %v2834, 7
        %v2836 = vsub.s32 %v2833, %v2835
        %v2837 = vrot.slane %v2830, %v2836
        %v2839 = vunpack.c.l.s4 1966171168
        %v2840 = vunpack.c.0.s8 %v2839
        %v2841 = vlaneseq
        %v2842 = vshrl.u32 %v2841, 7
        %v2843 = vsub.s32 %v2840, %v2842
        %v2844 = vrot.slane %v2837, %v2843
        %v2846 = vlaneseq
        %vm2847 = vcmp.ge.s32.totalorder %v2846, 0
        %vm2848 = vcmp.lt.s32.totalorder %v2846, 256
        %vm2849 = vmand %vm2847, %vm2848
        %2850 = vst.msk [vmem:[%s511] sm:$0x3] %vm2849, %v2844
        %v2851 = vld [vmem:[#allocation2] sm:$0xff]
        %v2852 = vld [vmem:[#allocation2 + $0x8] sm:$0xff]
        %v2853 = vld [vmem:[#allocation2 + $0x10] sm:$0xff]
        %v2854 = vld [vmem:[#allocation2 + $0x18] sm:$0xff]
        %v2855 = vld [vmem:[#allocation2 + $0x20] sm:$0xff]
        %v2856 = vld [vmem:[#allocation2 + $0x28] sm:$0xff]
        %v2857 = vld [vmem:[#allocation2 + $0x30] sm:$0xff]
        %v2858 = vld [vmem:[#allocation2 + $0x38] sm:$0xff]
        %v2859 = vld [vmem:[#allocation2 + $0x40] sm:$0xff]
        %v2860 = vld [vmem:[#allocation2 + $0x48] sm:$0xff]
        %v2861 = vld [vmem:[#allocation2 + $0x50] sm:$0xff]
        %v2862 = vld [vmem:[#allocation2 + $0x58] sm:$0xff]
        %v2863 = vld [vmem:[#allocation2 + $0x60] sm:$0xff]
        %v2864 = vld [vmem:[#allocation2 + $0x68] sm:$0xff]
        %v2865 = vld [vmem:[#allocation2 + $0x70] sm:$0xff]
        %v2866 = vld [vmem:[#allocation2 + $0x78] sm:$0xff]
        %v2867 = vlaneseq
        %v2868 = vshrl.u32 %v2867, 7
        %v2869 = vsub.s32 0, %v2868
        %v2870 = vrot.slane %v2826, %v2869
        %v2871 = vlaneseq
        %v2872 = vshrl.u32 %v2871, 7
        %v2873 = vsub.s32 0, %v2872
        %v2874 = vrot.slane %v2827, %v2873
        %v2875 = vmul.f32 %v1302, %v2870
        %v2876 = vmul.f32 %v1303, %v2874
        %v2877 = vmul.f32 %v1304, %v2870
        %v2878 = vmul.f32 %v1305, %v2874
        %v2879 = vmul.f32 %v1306, %v2870
        %v2880 = vmul.f32 %v1307, %v2874
        %v2881 = vmul.f32 %v1308, %v2870
        %v2882 = vmul.f32 %v1309, %v2874
        %v2883 = vmul.f32 %v1310, %v2870
        %v2884 = vmul.f32 %v1311, %v2874
        %v2885 = vmul.f32 %v1312, %v2870
        %v2886 = vmul.f32 %v1313, %v2874
        %v2887 = vmul.f32 %v1314, %v2870
        %v2888 = vmul.f32 %v1315, %v2874
        %v2889 = vmul.f32 %v1316, %v2870
        %v2890 = vmul.f32 %v1317, %v2874
        %v2891 = vmul.f32 %v1318, %v2870
        %v2892 = vmul.f32 %v1319, %v2874
        %v2893 = vmul.f32 %v1320, %v2870
        %v2894 = vmul.f32 %v1321, %v2874
        %v2895 = vmul.f32 %v1322, %v2870
        %v2896 = vmul.f32 %v1323, %v2874
        %v2897 = vmul.f32 %v1324, %v2870
        %v2898 = vmul.f32 %v1325, %v2874
        %v2899 = vmul.f32 %v1326, %v2870
        %v2900 = vmul.f32 %v1327, %v2874
        %v2901 = vmul.f32 %v1328, %v2870
        %v2902 = vmul.f32 %v1329, %v2874
        %v2903 = vmul.f32 %v1330, %v2870
        %v2904 = vmul.f32 %v1331, %v2874
        %v2905 = vmul.f32 %v1332, %v2870
        %v2906 = vmul.f32 %v1333, %v2874
        %v2907 = vadd.f32 %v2875, %v2876
        %2908 = vadd.xlane.f32.xlu0 %v2907
        %v2909 = vpop.xlane.xlu0 %2908
        %v2910 = vadd.f32 %v2877, %v2878
        %2911 = vadd.xlane.f32.xlu0 %v2910
        %v2912 = vpop.xlane.xlu0 %2911
        %v2913 = vadd.f32 %v2879, %v2880
        %2914 = vadd.xlane.f32.xlu0 %v2913
        %v2915 = vpop.xlane.xlu0 %2914
        %v2916 = vadd.f32 %v2881, %v2882
        %2917 = vadd.xlane.f32.xlu0 %v2916
        %v2918 = vpop.xlane.xlu0 %2917
        %v2919 = vadd.f32 %v2883, %v2884
        %2920 = vadd.xlane.f32.xlu0 %v2919
        %v2921 = vpop.xlane.xlu0 %2920
        %v2922 = vadd.f32 %v2885, %v2886
        %2923 = vadd.xlane.f32.xlu0 %v2922
        %v2924 = vpop.xlane.xlu0 %2923
        %v2925 = vadd.f32 %v2887, %v2888
        %2926 = vadd.xlane.f32.xlu0 %v2925
        %v2927 = vpop.xlane.xlu0 %2926
        %v2928 = vadd.f32 %v2889, %v2890
        %2929 = vadd.xlane.f32.xlu0 %v2928
        %v2930 = vpop.xlane.xlu0 %2929
        %v2931 = vadd.f32 %v2891, %v2892
        %2932 = vadd.xlane.f32.xlu0 %v2931
        %v2933 = vpop.xlane.xlu0 %2932
        %v2934 = vadd.f32 %v2893, %v2894
        %2935 = vadd.xlane.f32.xlu0 %v2934
        %v2936 = vpop.xlane.xlu0 %2935
        %v2937 = vadd.f32 %v2895, %v2896
        %2938 = vadd.xlane.f32.xlu0 %v2937
        %v2939 = vpop.xlane.xlu0 %2938
        %v2940 = vadd.f32 %v2897, %v2898
        %2941 = vadd.xlane.f32.xlu0 %v2940
        %v2942 = vpop.xlane.xlu0 %2941
        %v2943 = vadd.f32 %v2899, %v2900
        %2944 = vadd.xlane.f32.xlu0 %v2943
        %v2945 = vpop.xlane.xlu0 %2944
        %v2946 = vadd.f32 %v2901, %v2902
        %2947 = vadd.xlane.f32.xlu0 %v2946
        %v2948 = vpop.xlane.xlu0 %2947
        %v2949 = vadd.f32 %v2903, %v2904
        %2950 = vadd.xlane.f32.xlu0 %v2949
        %v2951 = vpop.xlane.xlu0 %2950
        %v2952 = vadd.f32 %v2905, %v2906
        %2953 = vadd.xlane.f32.xlu0 %v2952
        %v2954 = vpop.xlane.xlu0 %2953
        %v2955 = vadd.f32 %v2851, %v2909
        %v2956 = vadd.f32 %v2852, %v2912
        %v2957 = vadd.f32 %v2853, %v2915
        %v2958 = vadd.f32 %v2854, %v2918
        %v2959 = vadd.f32 %v2855, %v2921
        %v2960 = vadd.f32 %v2856, %v2924
        %v2961 = vadd.f32 %v2857, %v2927
        %v2962 = vadd.f32 %v2858, %v2930
        %v2963 = vadd.f32 %v2859, %v2933
        %v2964 = vadd.f32 %v2860, %v2936
        %v2965 = vadd.f32 %v2861, %v2939
        %v2966 = vadd.f32 %v2862, %v2942
        %v2967 = vadd.f32 %v2863, %v2945
        %v2968 = vadd.f32 %v2864, %v2948
        %v2969 = vadd.f32 %v2865, %v2951
        %v2970 = vadd.f32 %v2866, %v2954
        %vm2971 = vcmask 7168
        %2972 = vst.msk [vmem:[#allocation2] sm:$0xff] %vm2971, %v2955
        %2973 = vst.msk [vmem:[#allocation2 + $0x8] sm:$0xff] %vm2971, %v2956
        %2974 = vst.msk [vmem:[#allocation2 + $0x10] sm:$0xff] %vm2971, %v2957
        %2975 = vst.msk [vmem:[#allocation2 + $0x18] sm:$0xff] %vm2971, %v2958
        %2976 = vst.msk [vmem:[#allocation2 + $0x20] sm:$0xff] %vm2971, %v2959
        %2977 = vst.msk [vmem:[#allocation2 + $0x28] sm:$0xff] %vm2971, %v2960
        %2978 = vst.msk [vmem:[#allocation2 + $0x30] sm:$0xff] %vm2971, %v2961
        %2979 = vst.msk [vmem:[#allocation2 + $0x38] sm:$0xff] %vm2971, %v2962
        %2980 = vst.msk [vmem:[#allocation2 + $0x40] sm:$0xff] %vm2971, %v2963
        %2981 = vst.msk [vmem:[#allocation2 + $0x48] sm:$0xff] %vm2971, %v2964
        %2982 = vst.msk [vmem:[#allocation2 + $0x50] sm:$0xff] %vm2971, %v2965
        %2983 = vst.msk [vmem:[#allocation2 + $0x58] sm:$0xff] %vm2971, %v2966
        %2984 = vst.msk [vmem:[#allocation2 + $0x60] sm:$0xff] %vm2971, %v2967
        %2985 = vst.msk [vmem:[#allocation2 + $0x68] sm:$0xff] %vm2971, %v2968
        %2986 = vst.msk [vmem:[#allocation2 + $0x70] sm:$0xff] %vm2971, %v2969
        %2987 = vst.msk [vmem:[#allocation2 + $0x78] sm:$0xff] %vm2971, %v2970
        // Predicated region
        $region69: #{tpu_custom_call.1} parent=63 // pred_check
          %p2988 = pneg %p534
        $region70: #{tpu_custom_call.1} parent=63 // pred_check_branch
          %2990 = sbr.rel (%p2988) target = $region72
        $region71: #{tpu_custom_call.1} parent=63 // pred_region
          %v2991 = vld [vmem:[%s9] sm:$0x1]
          %v2992 = vld [vmem:[#allocation2] sm:$0xff]
          %v2993 = vld [vmem:[#allocation2 + $0x8] sm:$0xff]
          %v2994 = vld [vmem:[#allocation2 + $0x10] sm:$0xff]
          %v2995 = vld [vmem:[#allocation2 + $0x18] sm:$0xff]
          %v2996 = vld [vmem:[#allocation2 + $0x20] sm:$0xff]
          %v2997 = vld [vmem:[#allocation2 + $0x28] sm:$0xff]
          %v2998 = vld [vmem:[#allocation2 + $0x30] sm:$0xff]
          %v2999 = vld [vmem:[#allocation2 + $0x38] sm:$0xff]
          %v3000 = vld [vmem:[#allocation2 + $0x40] sm:$0xff]
          %v3001 = vld [vmem:[#allocation2 + $0x48] sm:$0xff]
          %v3002 = vld [vmem:[#allocation2 + $0x50] sm:$0xff]
          %v3003 = vld [vmem:[#allocation2 + $0x58] sm:$0xff]
          %v3004 = vld [vmem:[#allocation2 + $0x60] sm:$0xff]
          %v3005 = vld [vmem:[#allocation2 + $0x68] sm:$0xff]
          %v3006 = vld [vmem:[#allocation2 + $0x70] sm:$0xff]
          %v3007 = vld [vmem:[#allocation2 + $0x78] sm:$0xff]
          %v3008 = vld [vmem:[#allocation4] sm:$0x1]
          %3009 = vmatprep.subr.mxu0 0.0
          %3010 = vmatpush1.msra.mxu0 %v3007
          %3011 = vmatprep.subr.mxu0 0.0
          %3012 = vmatpush1.msra.mxu0 %v3006
          %3013 = vmatprep.subr.mxu0 0.0
          %3014 = vmatpush1.msra.mxu0 %v3005
          %3015 = vmatprep.subr.mxu0 0.0
          %3016 = vmatpush1.msra.mxu0 %v3004
          %3017 = vmatprep.subr.mxu0 0.0
          %3018 = vmatpush1.msra.mxu0 %v3003
          %3019 = vmatprep.subr.mxu0 0.0
          %3020 = vmatpush1.msra.mxu0 %v3002
          %3021 = vmatprep.subr.mxu0 0.0
          %3022 = vmatpush1.msra.mxu0 %v3001
          %3023 = vmatprep.subr.mxu0 0.0
          %3024 = vmatpush1.msra.mxu0 %v3000
          %3025 = vmatprep.subr.mxu0 0.0
          %3026 = vmatpush1.msra.mxu0 %v2999
          %3027 = vmatprep.subr.mxu0 0.0
          %3028 = vmatpush1.msra.mxu0 %v2998
          %3029 = vmatprep.subr.mxu0 0.0
          %3030 = vmatpush1.msra.mxu0 %v2997
          %3031 = vmatprep.subr.mxu0 0.0
          %3032 = vmatpush1.msra.mxu0 %v2996
          %3033 = vmatprep.subr.mxu0 0.0
          %3034 = vmatpush1.msra.mxu0 %v2995
          %3035 = vmatprep.subr.mxu0 0.0
          %3036 = vmatpush1.msra.mxu0 %v2994
          %3037 = vmatprep.subr.mxu0 0.0
          %3038 = vmatpush1.msra.mxu0 %v2993
          %3039 = vmatprep.subr.mxu0 0.0
          %3040 = vmatpush1.msra.mxu0 %v2992
          %3041 = vmatprep.subr.mxu0 0.0
          %3042 = vmatpush2.msra.mxu0 0.0
          %3043 = vmatprep.subr.mxu0 0.0
          %3044 = vmatpush2.msra.mxu0 0.0
          %3045 = vmatprep.subr.mxu0 0.0
          %3046 = vmatpush2.msra.mxu0 0.0
          %3047 = vmatprep.subr.mxu0 0.0
          %3048 = vmatpush2.msra.mxu0 0.0
          %3049 = vmatprep.subr.mxu0 0.0
          %3050 = vmatpush2.msra.mxu0 0.0
          %3051 = vmatprep.subr.mxu0 0.0
          %3052 = vmatpush2.msra.mxu0 0.0
          %3053 = vmatprep.subr.mxu0 0.0
          %3054 = vmatpush2.msra.mxu0 0.0
          %3055 = vmatprep.subr.mxu0 0.0
          %3056 = vmatpush2.msra.mxu0 0.0
          %3057 = vmatprep.subr.mxu0 0.0
          %3058 = vmatpush2.msra.mxu0 0.0
          %3059 = vmatprep.subr.mxu0 0.0
          %3060 = vmatpush2.msra.mxu0 0.0
          %3061 = vmatprep.subr.mxu0 0.0
          %3062 = vmatpush2.msra.mxu0 0.0
          %3063 = vmatprep.subr.mxu0 0.0
          %3064 = vmatpush2.msra.mxu0 0.0
          %3065 = vmatprep.subr.mxu0 0.0
          %3066 = vmatpush2.msra.mxu0 0.0
          %3067 = vmatprep.subr.mxu0 0.0
          %3068 = vmatpush2.msra.mxu0 0.0
          %3069 = vmatprep.subr.mxu0 0.0
          %3070 = vmatpush2.msra.mxu0 0.0
          %3071 = vmatprep.subr.mxu0 0.0
          %3072 = vmatpush2.msra.mxu0 0.0
          %3073 = vmatprep.mubr.f32.mxu0 0.0
          %3074 = vmatmul.mubr.f32.gmra.mxu0 %v2991
          %v3075 = vpop.f32.mrf.mxu0
          %v3076 = vadd.f32 %v3008, %v3075
          %v3077 = vpop.f32.mrf.mxu0
          %3078 = vdwg.mxu0
          %vm3079 = vcmask 0
          %3080 = vst.msk [vmem:[%s532] sm:$0x1] %vm3079, %v3076
        $region72: #{tpu_custom_call.1} parent=63 // pred_fallthru
          _
        %s3081 = sand.u32 %s296, 1
        %s3082 = scalar_lea.sflag [#allocation6], %s3081
        %s3083 = sand.u32 %s296, 1
        %s3084 = smul.addr %s3083, 128
        %s3085 = scalar_lea.vmem [#allocation5], %s3084
        %s3086 = sand.u32 %s36, 1
        %s3087 = scalar_lea.sflag [#allocation8], %s3086
        %s3088 = sand.u32 %s324, 1
        %s3089 = smul.addr %s3088, 128
        %s3090 = scalar_lea.vmem [#allocation7], %s3089
        %s3091 = sand.u32 %s36, 1
        %s3092 = scalar_lea.sflag [#allocation8], %s3091
        %s3093 = sand.u32 %s352, 1
        %s3094 = smul.addr %s3093, 2
        %s3095 = scalar_lea.vmem [#allocation9], %s3094
        %p3096 = scmp.lt.s32.totalorder %s40, 1
        %s3097 = scalar_select %p3096, %s40, 1
        %s3098 = scalar_lea.vmem %s14, %s3097
        // Predicated region
        $region73: #{tpu_custom_call.1} parent=63 // pred_check
          %p3099 = pneg %p306
        $region74: #{tpu_custom_call.1} parent=63 // pred_check_branch
          %3101 = sbr.rel (%p3099) target = $region76
        $region75: #{tpu_custom_call.1} parent=63 // pred_region
          %s3102 = smul.u32 2, %s41
          %s3104 = ssub.s32 2048, 2048
          %3105 = vsyncadd %s3082, %s3104
          %s3106 = smul.addr %s40, 32
          %s3107 = sadd.s32 %s3102, %s3106
          %s3108 = smul.addr %s3107, 64
          %s3109 = scalar_lea.hbm %s11, %s3108
          %s3110 = sshll.u32 %s3085, 4
          %s3111 = int_to_ptr.vmem [resolvable:$true] %s3110
          %3116 = dma.vmem_to_hbm [thread:$0]  %s3111, 2048, %s3109, %s3082, 128, 128, 8
        $region76: #{tpu_custom_call.1} parent=63 // pred_fallthru
          _
        // Predicated region
        $region77: #{tpu_custom_call.1} parent=63 // pred_check
          %p3117 = pneg %p334
        $region78: #{tpu_custom_call.1} parent=63 // pred_check_branch
          %3119 = sbr.rel (%p3117) target = $region80
        $region79: #{tpu_custom_call.1} parent=63 // pred_region
          %s3120 = smul.u32 2, %s41
          %s3122 = ssub.s32 2048, 2048
          %3123 = vsyncadd %s3087, %s3122
          %s3124 = smul.addr %s40, 32
          %s3125 = sadd.s32 %s3120, %s3124
          %s3126 = smul.addr %s3125, 64
          %s3127 = scalar_lea.hbm %s12, %s3126
          %s3128 = sshll.u32 %s3090, 4
          %s3129 = int_to_ptr.vmem [resolvable:$true] %s3128
          %3134 = dma.vmem_to_hbm [thread:$0]  %s3129, 2048, %s3127, %s3087, 128, 128, 8
        $region80: #{tpu_custom_call.1} parent=63 // pred_fallthru
          _
        // Predicated region
        $region81: #{tpu_custom_call.1} parent=63 // pred_check
          %p3135 = pneg %p362
        $region82: #{tpu_custom_call.1} parent=63 // pred_check_branch
          %3137 = sbr.rel (%p3135) target = $region84
        $region83: #{tpu_custom_call.1} parent=63 // pred_region
          %s3138 = smul.u32 2, %s41
          %s3140 = ssub.s32 32, 32
          %3141 = vsyncadd %s3092, %s3140
          %s3142 = smul.addr %s40, 2
          %s3143 = sadd.s32 %s3138, %s3142
          %s3144 = smul.addr %s3143, 16
          %s3145 = scalar_lea.hbm %s13, %s3144
          %s3147 = sshll.u32 %s3095, 4
          %s3148 = int_to_ptr.vmem [resolvable:$true] %s3147
          %3150 = dma.vmem_to_hbm [thread:$0]  %s3148, 32, %s3145, %s3092
        $region84: #{tpu_custom_call.1} parent=63 // pred_fallthru
          _
        // Predicated region
        $region85: #{tpu_custom_call.1} parent=63 // pred_check
          %p3151 = pneg %p388
        $region86: #{tpu_custom_call.1} parent=63 // pred_check_branch
          %3153 = sbr.rel (%p3151) target = $region88
        $region87: #{tpu_custom_call.1} parent=63 // pred_region
          _
        $region88: #{tpu_custom_call.1} parent=63 // pred_fallthru
          _
      $region64: #{tpu_custom_call.1} parent=5 // pred_fallthru
        _
      %p3154 = scmp.le.s32.totalorder 2, %s31
      // Predicated region
      $region89: #{tpu_custom_call.1} parent=5 // pred_check
        %p3155 = pneg %p3154
      $region90: #{tpu_custom_call.1} parent=5 // pred_check_branch
        %3157 = sbr.rel (%p3155) target = $region92
      $region91: #{tpu_custom_call.1} parent=5 // pred_region
        %s3158 = ssub.s32 %s31, 2
        // Predicated region
        $region93: #{tpu_custom_call.1} parent=91 // pred_check
          %p3159 = pneg %p312
        $region94: #{tpu_custom_call.1} parent=91 // pred_check_branch
          %3161 = sbr.rel (%p3159) target = $region96
        $region95: #{tpu_custom_call.1} parent=91 // pred_region
          %s3162 = sand.u32 %s297, 1
          %s3163 = scalar_lea.sflag [#allocation6], %s3162
          %s3164 = sand.u32 %s297, 1
          %s3165 = smul.addr %s3164, 128
          %s3166 = scalar_lea.vmem [#allocation5], %s3165
          %3167 = dma.done %s3163, 2048
        $region96: #{tpu_custom_call.1} parent=91 // pred_fallthru
          _
        // Predicated region
        $region97: #{tpu_custom_call.1} parent=91 // pred_check
          %p3168 = pneg %p340
        $region98: #{tpu_custom_call.1} parent=91 // pred_check_branch
          %3170 = sbr.rel (%p3168) target = $region100
        $region99: #{tpu_custom_call.1} parent=91 // pred_region
          %s3171 = sand.u32 %s37, 1
          %s3172 = scalar_lea.sflag [#allocation8], %s3171
          %s3173 = sand.u32 %s325, 1
          %s3174 = smul.addr %s3173, 128
          %s3175 = scalar_lea.vmem [#allocation7], %s3174
          %3176 = dma.done %s3172, 2048
        $region100: #{tpu_custom_call.1} parent=91 // pred_fallthru
          _
        // Predicated region
        $region101: #{tpu_custom_call.1} parent=91 // pred_check
          %p3177 = pneg %p368
        $region102: #{tpu_custom_call.1} parent=91 // pred_check_branch
          %3179 = sbr.rel (%p3177) target = $region104
        $region103: #{tpu_custom_call.1} parent=91 // pred_region
          %s3180 = sand.u32 %s37, 1
          %s3181 = scalar_lea.sflag [#allocation8], %s3180
          %s3182 = sand.u32 %s353, 1
          %s3183 = smul.addr %s3182, 2
          %s3184 = scalar_lea.vmem [#allocation9], %s3183
          %3185 = dma.done %s3181, 32
        $region104: #{tpu_custom_call.1} parent=91 // pred_fallthru
          _
        // Predicated region
        $region105: #{tpu_custom_call.1} parent=91 // pred_check
          %p3186 = pneg %p394
        $region106: #{tpu_custom_call.1} parent=91 // pred_check_branch
          %3188 = sbr.rel (%p3186) target = $region108
        $region107: #{tpu_custom_call.1} parent=91 // pred_region
          %p3189 = scmp.lt.s32.totalorder %s42, 1
          %s3190 = scalar_select %p3189, %s42, 1
          %s3191 = scalar_lea.vmem %s14, %s3190
        $region108: #{tpu_custom_call.1} parent=91 // pred_fallthru
          _
      $region92: #{tpu_custom_call.1} parent=5 // pred_fallthru
        _
    $region6: #{tpu_custom_call.1} parent=1 // loop_footer
      %s35 = sadd.s32 1, %s31
    $region7: #{tpu_custom_call.1} parent=1 // loop_footer_branch
      %30 = sbr.rel target = $region3
    $region8: #{tpu_custom_call.1} parent=1 // loop_exit
      _
    %3192 = vsyncpa [#allocation6], 1
    %s3193 = scalar_lea.sflag [#allocation6], 1
    %3194 = vsyncpa %s3193, 1
    %3195 = vsyncpa [#allocation8], 1
    %s3196 = scalar_lea.sflag [#allocation8], 1
    %3197 = vsyncpa %s3196, 1

</llo_original>
